<compile_context>
chip_gen: v7x
topology: tpu7x:2x2x1
jax: 0.10.0
libtpu: 0.0.40
codegen_flags: <defaults>
</compile_context>

<pallas_src>
import functools

import jax
import jax.numpy as jnp
from jax import lax
from jax.experimental import pallas as pl
from jax.experimental.pallas import tpu as pltpu


def _round_up(n, m):
    return ((n + m - 1) // m) * m


_MAX_STATIC_UNROLL_T = 128


def _neural_pendulum_kernel(scalars_ref, bin_ref, slab_ref, w2_ref, y_ref,
                            *, num_t, z_dim, zc_dim):
    """Full explicit-Euler rollout for one batch tile.

    scalars_ref : (T+1,)       SMEM: [dt_0 .. dt_{T-2}, 0, b3]
    bin_ref     : (TB, z+c+1)  fused per-batch inputs [z | context | theta0]
    slab_ref    : (4+zc+T, H)  rows: [W1_theta, W1_alpha, b2, W3^T, W1_{z,ctx}, t_i*W1_t+b1 (T rows)]
    w2_ref      : (H, H) bf16  hidden-layer weight (single-pass MXU)
    y_ref       : (TB, T)      output trajectory (theta only)
    """
    bin_all = bin_ref[...]
    zc = bin_all[:, 0:zc_dim]                       # (TB, z+c) time-invariant MLP inputs
    omega_sq = bin_all[:, z_dim:z_dim + 1]          # (TB, 1)  context[:, 0]
    theta0 = bin_all[:, zc_dim:zc_dim + 1]          # (TB, 1)  x[:, 0]

    w1_th = slab_ref[0:1, :]
    w1_al = slab_ref[1:2, :]
    b2 = slab_ref[2:3, :]
    w3t = slab_ref[3:4, :]
    w1zc = slab_ref[4:4 + zc_dim, :]
    w2 = w2_ref[...]                                # bf16
    b3 = scalars_ref[num_t]
    tb1_off = 4 + zc_dim

    # Hoisted time-invariant first-layer contribution (kept in f32, computed once).
    base = jnp.dot(zc, w1zc, preferred_element_type=jnp.float32)      # (TB, H)

    # ODE state carried in registers (no VMEM scratch round-trips).
    y0 = theta0
    y1 = jnp.zeros_like(y0)

    def step(y0, y1, dt, tb1):
        # nnet_f = MLP(concat([theta, alpha, t, z], 1), context); concat folded into W1,
        # the time term t*W1_t + b1 precomputed per step (tb1 row).
        pre1 = base + y0 * w1_th + y1 * w1_al + tb1
        h1 = jnp.tanh(pre1)
        # single bf16 x bf16 -> f32 MXU pass on the serial critical path
        h2 = jnp.tanh(jnp.dot(h1.astype(jnp.bfloat16), w2,
                              preferred_element_type=jnp.float32) + b2)
        f_nn = jnp.sum(h2 * w3t, axis=1, keepdims=True) + b3           # (TB, 1)
        # physics (frictionless pendulum) + neural residual on alpha; explicit Euler.
        d1 = -omega_sq * jnp.sin(y0) + f_nn
        return y0 + dt * y1, y1 + dt * d1

    if num_t <= _MAX_STATIC_UNROLL_T:
        # Static unroll: T is a small trace-time constant -> full LLO visibility;
        # the 1-lane per-step stores land in idle vst slots off the critical path.
        for i in range(num_t):
            y_ref[:, i:i + 1] = y0                  # odeint records state at t_i
            if i + 1 < num_t:
                dt = scalars_ref[i]
                tb1 = slab_ref[tb1_off + i:tb1_off + i + 1, :]
                y0, y1 = step(y0, y1, dt, tb1)
    else:
        # Bounded-unroll fallback for large T: keeps code size / vreg pressure bounded.
        def body(i, carry):
            y0, y1 = carry
            y_ref[:, pl.ds(i, 1)] = y0
            dt = scalars_ref[i]
            tb1 = slab_ref[pl.ds(tb1_off + i, 1), :]
            return step(y0, y1, dt, tb1)

        y0, y1 = lax.fori_loop(0, num_t - 1, body, (y0, y1), unroll=4)
        y_ref[:, num_t - 1:num_t] = y0


@functools.partial(jax.jit, static_argnames=("z_dim",))
def neural_pendulum_simulate(x, context, t_intg, params, *, z_dim):
    """Pallas equivalent of NeuralPendulum.simulate (euler solver, no nnet_aux)."""
    B = x.shape[0]
    T = t_intg.shape[0]
    c_dim = context.shape[1]
    H = params["W2"].shape[0]

    # --- zero-pad hidden dim onto full 128-lane vregs (numerically exact) --------------
    H_pad = _round_up(H, 128)
    ph = H_pad - H
    W1 = jnp.pad(params["W1"], ((0, 0), (0, ph)))             # rows: [theta, alpha, t, z, ctx]
    b1 = jnp.pad(params["b1"], ((0, 0), (0, ph)))
    b2 = jnp.pad(params["b2"], ((0, 0), (0, ph)))
    w3t = jnp.pad(params["W3"].T, ((0, 0), (0, ph)))
    W2_bf16 = jnp.pad(params["W2"], ((0, ph), (0, ph))).astype(jnp.bfloat16)
    b3 = params["b3"].reshape(-1)[:1].astype(jnp.float32)     # (1,)

    # --- precompute per-step quantities (kept off the in-kernel serial chain) ----------
    t_intg = t_intg.astype(jnp.float32)
    dt = jnp.concatenate([t_intg[1:] - t_intg[:-1], jnp.zeros((1,), jnp.float32)])  # (T,)
    scalars = jnp.concatenate([dt, b3])                        # (T+1,)  -> SMEM
    tb1_tab = t_intg[:, None] * W1[2:3, :] + b1                # (T, H_pad) = t_i*W1_t + b1

    # single f32 weight slab: [W1_theta, W1_alpha, b2, W3^T, W1_{z,ctx}, tb1_tab]
    zc_dim = z_dim + c_dim
    slab = jnp.concatenate(
        [W1[0:1, :], W1[1:2, :], b2, w3t, W1[3:3 + zc_dim, :], tb1_tab], axis=0)
    slab_rows = slab.shape[0]

    # --- batch tiling: pad to a sublane multiple, tile along a "parallel" grid axis ----
    TB = min(_round_up(B, 8), 256)     # fill v6e/v7x 256-row MXU; >=2 tiles for large B
    B_pad = _round_up(B, TB)
    pb = B_pad - B
    n_bt = B_pad // TB

    # fused per-batch input: [z | context | theta0] (one DMA instead of three)
    z = x[:, x.shape[1] - z_dim:]
    bin_fused = jnp.pad(jnp.concatenate([z, context, x[:, 0:1]], axis=1),
                        ((0, pb), (0, 0))).astype(jnp.float32)
    bin_w = bin_fused.shape[1]          # z + c + 1

    kernel = functools.partial(_neural_pendulum_kernel,
                               num_t=T, z_dim=z_dim, zc_dim=zc_dim)
    rep = lambda shape: pl.BlockSpec(shape, lambda b: tuple(0 for _ in shape))

    cost = pl.CostEstimate(
        flops=int(2 * B_pad * max(T - 1, 1) * H_pad * H_pad
                  + 2 * B_pad * zc_dim * H_pad
                  + 10 * B_pad * max(T - 1, 1) * H_pad),
        transcendentals=int(B_pad * max(T - 1, 1) * (2 * H_pad + 1)),
        bytes_accessed=int(4 * (B_pad * bin_w + slab_rows * H_pad + B_pad * T + T + 1)
                           + 2 * H_pad * H_pad),
    )

    out = pl.pallas_call(
        kernel,
        out_shape=jax.ShapeDtypeStruct((B_pad, T), jnp.float32),
        grid=(n_bt,),
        in_specs=[
            pl.BlockSpec(memory_space=pltpu.MemorySpace.SMEM),   # [dt..., b3]
            pl.BlockSpec((TB, bin_w), lambda b: (b, 0)),         # [z | context | theta0]
            rep((slab_rows, H_pad)),                             # packed f32 weight slab
            rep((H_pad, H_pad)),                                 # W2 (bf16)
        ],
        out_specs=pl.BlockSpec((TB, T), lambda b: (b, 0)),
        compiler_params=pltpu.CompilerParams(dimension_semantics=("parallel",)),
        cost_estimate=cost,
    )(scalars, bin_fused, slab, W2_bf16)

    return out[:B]                                               # (B, T) == yy_seq[:, :, 0].T


def reference_simulate(x, context, t_intg, params, *, z_dim):
    """Pure-JAX f32/HIGHEST reference of the same forward semantics (for verification)."""
    B = x.shape[0]
    T = t_intg.shape[0]
    y0 = x[:, 0:1]
    y1 = jnp.zeros((B, 1), dtype=jnp.float32)
    z = x[:, x.shape[1] - z_dim:]
    hp = jax.lax.Precision.HIGHEST
    rows = [y0[:, 0]]
    for i in range(T - 1):
        t = t_intg[i]
        dt = t_intg[i + 1] - t_intg[i]
        x_in = jnp.concatenate(
            [y0, y1, jnp.full((B, 1), t, jnp.float32), z, context], axis=1)
        h1 = jnp.tanh(jnp.dot(x_in, params["W1"], precision=hp) + params["b1"])
        h2 = jnp.tanh(jnp.dot(h1, params["W2"], precision=hp) + params["b2"])
        f = jnp.dot(h2, params["W3"], precision=hp) + params["b3"]
        d0 = y1
        d1 = -context[:, 0:1] * jnp.sin(y0) + f
        y0 = y0 + dt * d0
        y1 = y1 + dt * d1
        rows.append(y0[:, 0])
    return jnp.stack(rows, axis=1)


if __name__ == "__main__":
    # small shapes consistent with the module
    B, T, z_dim, c_dim, H = 8, 16, 2, 2, 32
    in_dim = 2 + 1 + z_dim + c_dim        # [state(2), t(1), z, context]

    key = jax.random.PRNGKey(0)
    k_x, k_z, k_c, k1, k2, k3, kb1, kb2, kb3 = jax.random.split(key, 9)

    # inputs
    x_obs = jax.random.uniform(k_x, (B, T), jnp.float32, -1.0, 1.0)
    z_lat = 0.1 * jax.random.normal(k_z, (B, z_dim), jnp.float32)
    x = jnp.concatenate([x_obs, z_lat], axis=1)                   # (B, T + z_dim)
    context = jax.random.uniform(k_c, (B, c_dim), jnp.float32, 0.5, 2.0)
    t_intg = jnp.linspace(0.0, 1.5, T, dtype=jnp.float32)

    # deterministic MLP parameters (uniform +/- 1/sqrt(fan_in), like torch defaults)
    def u(k, shape, fan_in):
        s = 1.0 / jnp.sqrt(jnp.float32(fan_in))
        return jax.random.uniform(k, shape, jnp.float32, -s, s)

    params = {
        "W1": u(k1, (in_dim, H), in_dim), "b1": u(kb1, (1, H), in_dim),
        "W2": u(k2, (H, H), H),           "b2": u(kb2, (1, H), H),
        "W3": u(k3, (H, 1), H),           "b3": u(kb3, (1, 1), H),
    }

    Y = neural_pendulum_simulate(x, context, t_intg, params, z_dim=z_dim)
    Y = jax.block_until_ready(Y)

    Y_ref = reference_simulate(x, context, t_intg, params, z_dim=z_dim)
    assert Y.shape == (B, T), Y.shape
    # Tolerance relaxed vs. the pure-f32 version: the per-step W2 matmul now runs as a
    # single bf16 MXU pass (perf-review change) and the Euler rollout compounds its error.
    assert jnp.allclose(Y, Y_ref, rtol=2e-2, atol=2e-2), float(jnp.max(jnp.abs(Y - Y_ref)))

    print("KERNEL_OK")
</pallas_src>

<mosaic_0001>
module attributes {stable_mosaic.version = 11 : i64} {
  func.func @_neural_pendulum_kernel(%arg0: i32, %arg1: memref<17xf32, #tpu.memory_space<smem>>, %arg2: memref<8x5xf32, #tpu.memory_space<vmem>>, %arg3: memref<24x128xf32, #tpu.memory_space<vmem>>, %arg4: memref<128x128xbf16, #tpu.memory_space<vmem>>, %arg5: memref<8x16xf32, #tpu.memory_space<vmem>>) attributes {dimension_semantics = [#tpu.dimension_semantics<parallel>], iteration_bounds = array<i64: 1>, scalar_prefetch = 0 : i64, scratch_operands = 0 : i64, tpu.core_type = #tpu.core_type<tc>, window_params = [{transform_indices = @transform_0, window_bounds = array<i64: 17>}, {transform_indices = @transform_1, window_bounds = array<i64: 8, 5>}, {pipeline_mode = #tpu.pipeline_mode<synchronous>, transform_indices = @transform_2, window_bounds = array<i64: 24, 128>}, {pipeline_mode = #tpu.pipeline_mode<synchronous>, transform_indices = @transform_3, window_bounds = array<i64: 128, 128>}, {transform_indices = @transform_4, window_bounds = array<i64: 8, 16>}]} {
    %c0 = arith.constant 0 : index
    %c0_0 = arith.constant 0 : index
    %0 = vector.load %arg2[%c0, %c0_0] : memref<8x5xf32, #tpu.memory_space<vmem>>, vector<8x5xf32>
    %1 = vector.extract_strided_slice %0 {offsets = [0, 0], sizes = [8, 4], strides = [1, 1]} : vector<8x5xf32> to vector<8x4xf32>
    %2 = vector.extract_strided_slice %0 {offsets = [0, 2], sizes = [8, 1], strides = [1, 1]} : vector<8x5xf32> to vector<8x1xf32>
    %3 = vector.extract_strided_slice %0 {offsets = [0, 4], sizes = [8, 1], strides = [1, 1]} : vector<8x5xf32> to vector<8x1xf32>
    %c0_1 = arith.constant 0 : index
    %c0_2 = arith.constant 0 : index
    %4 = vector.load %arg3[%c0_1, %c0_2] : memref<24x128xf32, #tpu.memory_space<vmem>>, vector<1x128xf32>
    %c1 = arith.constant 1 : index
    %c0_3 = arith.constant 0 : index
    %5 = vector.load %arg3[%c1, %c0_3] : memref<24x128xf32, #tpu.memory_space<vmem>>, vector<1x128xf32>
    %c2 = arith.constant 2 : index
    %c0_4 = arith.constant 0 : index
    %6 = vector.load %arg3[%c2, %c0_4] : memref<24x128xf32, #tpu.memory_space<vmem>>, vector<1x128xf32>
    %c3 = arith.constant 3 : index
    %c0_5 = arith.constant 0 : index
    %7 = vector.load %arg3[%c3, %c0_5] : memref<24x128xf32, #tpu.memory_space<vmem>>, vector<1x128xf32>
    %c4 = arith.constant 4 : index
    %c0_6 = arith.constant 0 : index
    %8 = vector.load %arg3[%c4, %c0_6] : memref<24x128xf32, #tpu.memory_space<vmem>>, vector<4x128xf32>
    %c0_7 = arith.constant 0 : index
    %c0_8 = arith.constant 0 : index
    %9 = vector.load %arg4[%c0_7, %c0_8] : memref<128x128xbf16, #tpu.memory_space<vmem>>, vector<128x128xbf16>
    %c16 = arith.constant 16 : index
    %10 = memref.load %arg1[%c16] : memref<17xf32, #tpu.memory_space<smem>>
    %cst = arith.constant dense<0.000000e+00> : vector<8x128xf32>
    %11 = tpu.matmul %1, %8, %cst {dimension_numbers = #tpu.dot_dimension_numbers<[1], [0], [0], [1], [0, 0, 1, 1], [], []>} : vector<8x4xf32>, vector<4x128xf32>, vector<8x128xf32> -> vector<8x128xf32>
    %cst_9 = arith.constant 0.000000e+00 : f32
    %12 = vector.broadcast %cst_9 : f32 to vector<8x1xf32>
    %c0_10 = arith.constant 0 : index
    %c0_11 = arith.constant 0 : index
    %13 = vector.load %arg5[%c0_10, %c0_11] : memref<8x16xf32, #tpu.memory_space<vmem>>, vector<8x1xf32>
    tpu.vector_store %arg5[%c0_10, %c0_11], %3 {strides = array<i32>} : memref<8x16xf32, #tpu.memory_space<vmem>>, vector<8x1xf32>,
    %c0_12 = arith.constant 0 : index
    %14 = memref.load %arg1[%c0_12] : memref<17xf32, #tpu.memory_space<smem>>
    %c8 = arith.constant 8 : index
    %c0_13 = arith.constant 0 : index
    %15 = vector.load %arg3[%c8, %c0_13] : memref<24x128xf32, #tpu.memory_space<vmem>>, vector<1x128xf32>
    %16 = vector.broadcast %3 : vector<8x1xf32> to vector<8x128xf32>
    %17 = vector.broadcast %4 : vector<1x128xf32> to vector<8x128xf32>
    %18 = arith.mulf %16, %17 : vector<8x128xf32>
    %19 = arith.addf %11, %18 : vector<8x128xf32>
    %20 = vector.broadcast %12 : vector<8x1xf32> to vector<8x128xf32>
    %21 = vector.broadcast %5 : vector<1x128xf32> to vector<8x128xf32>
    %22 = arith.mulf %20, %21 : vector<8x128xf32>
    %23 = arith.addf %19, %22 : vector<8x128xf32>
    %24 = vector.broadcast %15 : vector<1x128xf32> to vector<8x128xf32>
    %25 = arith.addf %23, %24 : vector<8x128xf32>
    %26 = math.tanh %25 : vector<8x128xf32>
    %27 = arith.truncf %26 : vector<8x128xf32> to vector<8x128xbf16>
    %cst_14 = arith.constant dense<0.000000e+00> : vector<8x128xf32>
    %28 = tpu.matmul %27, %9, %cst_14 {dimension_numbers = #tpu.dot_dimension_numbers<[1], [0], [0], [1], [0, 0, 1, 1], [], []>} : vector<8x128xbf16>, vector<128x128xbf16>, vector<8x128xf32> -> vector<8x128xf32>
    %29 = vector.broadcast %6 : vector<1x128xf32> to vector<8x128xf32>
    %30 = arith.addf %28, %29 : vector<8x128xf32>
    %31 = math.tanh %30 : vector<8x128xf32>
    %32 = vector.broadcast %7 : vector<1x128xf32> to vector<8x128xf32>
    %33 = arith.mulf %31, %32 : vector<8x128xf32>
    %cst_15 = arith.constant dense<0.000000e+00> : vector<8xf32>
    %34 = vector.multi_reduction <add>, %33, %cst_15 [1] : vector<8x128xf32> to vector<8xf32>
    %35 = vector.shape_cast %34 : vector<8xf32> to vector<8x1xf32>
    %36 = vector.broadcast %10 : f32 to vector<8x1xf32>
    %37 = arith.addf %35, %36 : vector<8x1xf32>
    %cst_16 = arith.constant 0.000000e+00 : f32
    %38 = vector.broadcast %cst_16 : f32 to vector<8x1xf32>
    %39 = arith.subf %38, %2 : vector<8x1xf32>
    %40 = math.sin %3 : vector<8x1xf32>
    %41 = arith.mulf %39, %40 : vector<8x1xf32>
    %42 = arith.addf %41, %37 : vector<8x1xf32>
    %43 = vector.broadcast %14 : f32 to vector<8x1xf32>
    %44 = arith.mulf %43, %12 : vector<8x1xf32>
    %45 = arith.addf %3, %44 : vector<8x1xf32>
    %46 = vector.broadcast %14 : f32 to vector<8x1xf32>
    %47 = arith.mulf %46, %42 : vector<8x1xf32>
    %48 = arith.addf %12, %47 : vector<8x1xf32>
    %c0_17 = arith.constant 0 : index
    %c1_18 = arith.constant 1 : index
    %49 = vector.load %arg5[%c0_17, %c1_18] : memref<8x16xf32, #tpu.memory_space<vmem>>, vector<8x1xf32>
    tpu.vector_store %arg5[%c0_17, %c1_18], %45 {strides = array<i32>} : memref<8x16xf32, #tpu.memory_space<vmem>>, vector<8x1xf32>,
    %c1_19 = arith.constant 1 : index
    %50 = memref.load %arg1[%c1_19] : memref<17xf32, #tpu.memory_space<smem>>
    %c9 = arith.constant 9 : index
    %c0_20 = arith.constant 0 : index
    %51 = vector.load %arg3[%c9, %c0_20] : memref<24x128xf32, #tpu.memory_space<vmem>>, vector<1x128xf32>
    %52 = vector.broadcast %45 : vector<8x1xf32> to vector<8x128xf32>
    %53 = vector.broadcast %4 : vector<1x128xf32> to vector<8x128xf32>
    %54 = arith.mulf %52, %53 : vector<8x128xf32>
    %55 = arith.addf %11, %54 : vector<8x128xf32>
    %56 = vector.broadcast %48 : vector<8x1xf32> to vector<8x128xf32>
    %57 = vector.broadcast %5 : vector<1x128xf32> to vector<8x128xf32>
    %58 = arith.mulf %56, %57 : vector<8x128xf32>
    %59 = arith.addf %55, %58 : vector<8x128xf32>
    %60 = vector.broadcast %51 : vector<1x128xf32> to vector<8x128xf32>
    %61 = arith.addf %59, %60 : vector<8x128xf32>
    %62 = math.tanh %61 : vector<8x128xf32>
    %63 = arith.truncf %62 : vector<8x128xf32> to vector<8x128xbf16>
    %cst_21 = arith.constant dense<0.000000e+00> : vector<8x128xf32>
    %64 = tpu.matmul %63, %9, %cst_21 {dimension_numbers = #tpu.dot_dimension_numbers<[1], [0], [0], [1], [0, 0, 1, 1], [], []>} : vector<8x128xbf16>, vector<128x128xbf16>, vector<8x128xf32> -> vector<8x128xf32>
    %65 = vector.broadcast %6 : vector<1x128xf32> to vector<8x128xf32>
    %66 = arith.addf %64, %65 : vector<8x128xf32>
    %67 = math.tanh %66 : vector<8x128xf32>
    %68 = vector.broadcast %7 : vector<1x128xf32> to vector<8x128xf32>
    %69 = arith.mulf %67, %68 : vector<8x128xf32>
    %cst_22 = arith.constant dense<0.000000e+00> : vector<8xf32>
    %70 = vector.multi_reduction <add>, %69, %cst_22 [1] : vector<8x128xf32> to vector<8xf32>
    %71 = vector.shape_cast %70 : vector<8xf32> to vector<8x1xf32>
    %72 = vector.broadcast %10 : f32 to vector<8x1xf32>
    %73 = arith.addf %71, %72 : vector<8x1xf32>
    %cst_23 = arith.constant 0.000000e+00 : f32
    %74 = vector.broadcast %cst_23 : f32 to vector<8x1xf32>
    %75 = arith.subf %74, %2 : vector<8x1xf32>
    %76 = math.sin %45 : vector<8x1xf32>
    %77 = arith.mulf %75, %76 : vector<8x1xf32>
    %78 = arith.addf %77, %73 : vector<8x1xf32>
    %79 = vector.broadcast %50 : f32 to vector<8x1xf32>
    %80 = arith.mulf %79, %48 : vector<8x1xf32>
    %81 = arith.addf %45, %80 : vector<8x1xf32>
    %82 = vector.broadcast %50 : f32 to vector<8x1xf32>
    %83 = arith.mulf %82, %78 : vector<8x1xf32>
    %84 = arith.addf %48, %83 : vector<8x1xf32>
    %c0_24 = arith.constant 0 : index
    %c2_25 = arith.constant 2 : index
    %85 = vector.load %arg5[%c0_24, %c2_25] : memref<8x16xf32, #tpu.memory_space<vmem>>, vector<8x1xf32>
    tpu.vector_store %arg5[%c0_24, %c2_25], %81 {strides = array<i32>} : memref<8x16xf32, #tpu.memory_space<vmem>>, vector<8x1xf32>,
    %c2_26 = arith.constant 2 : index
    %86 = memref.load %arg1[%c2_26] : memref<17xf32, #tpu.memory_space<smem>>
    %c10 = arith.constant 10 : index
    %c0_27 = arith.constant 0 : index
    %87 = vector.load %arg3[%c10, %c0_27] : memref<24x128xf32, #tpu.memory_space<vmem>>, vector<1x128xf32>
    %88 = vector.broadcast %81 : vector<8x1xf32> to vector<8x128xf32>
    %89 = vector.broadcast %4 : vector<1x128xf32> to vector<8x128xf32>
    %90 = arith.mulf %88, %89 : vector<8x128xf32>
    %91 = arith.addf %11, %90 : vector<8x128xf32>
    %92 = vector.broadcast %84 : vector<8x1xf32> to vector<8x128xf32>
    %93 = vector.broadcast %5 : vector<1x128xf32> to vector<8x128xf32>
    %94 = arith.mulf %92, %93 : vector<8x128xf32>
    %95 = arith.addf %91, %94 : vector<8x128xf32>
    %96 = vector.broadcast %87 : vector<1x128xf32> to vector<8x128xf32>
    %97 = arith.addf %95, %96 : vector<8x128xf32>
    %98 = math.tanh %97 : vector<8x128xf32>
    %99 = arith.truncf %98 : vector<8x128xf32> to vector<8x128xbf16>
    %cst_28 = arith.constant dense<0.000000e+00> : vector<8x128xf32>
    %100 = tpu.matmul %99, %9, %cst_28 {dimension_numbers = #tpu.dot_dimension_numbers<[1], [0], [0], [1], [0, 0, 1, 1], [], []>} : vector<8x128xbf16>, vector<128x128xbf16>, vector<8x128xf32> -> vector<8x128xf32>
    %101 = vector.broadcast %6 : vector<1x128xf32> to vector<8x128xf32>
    %102 = arith.addf %100, %101 : vector<8x128xf32>
    %103 = math.tanh %102 : vector<8x128xf32>
    %104 = vector.broadcast %7 : vector<1x128xf32> to vector<8x128xf32>
    %105 = arith.mulf %103, %104 : vector<8x128xf32>
    %cst_29 = arith.constant dense<0.000000e+00> : vector<8xf32>
    %106 = vector.multi_reduction <add>, %105, %cst_29 [1] : vector<8x128xf32> to vector<8xf32>
    %107 = vector.shape_cast %106 : vector<8xf32> to vector<8x1xf32>
    %108 = vector.broadcast %10 : f32 to vector<8x1xf32>
    %109 = arith.addf %107, %108 : vector<8x1xf32>
    %cst_30 = arith.constant 0.000000e+00 : f32
    %110 = vector.broadcast %cst_30 : f32 to vector<8x1xf32>
    %111 = arith.subf %110, %2 : vector<8x1xf32>
    %112 = math.sin %81 : vector<8x1xf32>
    %113 = arith.mulf %111, %112 : vector<8x1xf32>
    %114 = arith.addf %113, %109 : vector<8x1xf32>
    %115 = vector.broadcast %86 : f32 to vector<8x1xf32>
    %116 = arith.mulf %115, %84 : vector<8x1xf32>
    %117 = arith.addf %81, %116 : vector<8x1xf32>
    %118 = vector.broadcast %86 : f32 to vector<8x1xf32>
    %119 = arith.mulf %118, %114 : vector<8x1xf32>
    %120 = arith.addf %84, %119 : vector<8x1xf32>
    %c0_31 = arith.constant 0 : index
    %c3_32 = arith.constant 3 : index
    %121 = vector.load %arg5[%c0_31, %c3_32] : memref<8x16xf32, #tpu.memory_space<vmem>>, vector<8x1xf32>
    tpu.vector_store %arg5[%c0_31, %c3_32], %117 {strides = array<i32>} : memref<8x16xf32, #tpu.memory_space<vmem>>, vector<8x1xf32>,
    %c3_33 = arith.constant 3 : index
    %122 = memref.load %arg1[%c3_33] : memref<17xf32, #tpu.memory_space<smem>>
    %c11 = arith.constant 11 : index
    %c0_34 = arith.constant 0 : index
    %123 = vector.load %arg3[%c11, %c0_34] : memref<24x128xf32, #tpu.memory_space<vmem>>, vector<1x128xf32>
    %124 = vector.broadcast %117 : vector<8x1xf32> to vector<8x128xf32>
    %125 = vector.broadcast %4 : vector<1x128xf32> to vector<8x128xf32>
    %126 = arith.mulf %124, %125 : vector<8x128xf32>
    %127 = arith.addf %11, %126 : vector<8x128xf32>
    %128 = vector.broadcast %120 : vector<8x1xf32> to vector<8x128xf32>
    %129 = vector.broadcast %5 : vector<1x128xf32> to vector<8x128xf32>
    %130 = arith.mulf %128, %129 : vector<8x128xf32>
    %131 = arith.addf %127, %130 : vector<8x128xf32>
    %132 = vector.broadcast %123 : vector<1x128xf32> to vector<8x128xf32>
    %133 = arith.addf %131, %132 : vector<8x128xf32>
    %134 = math.tanh %133 : vector<8x128xf32>
    %135 = arith.truncf %134 : vector<8x128xf32> to vector<8x128xbf16>
    %cst_35 = arith.constant dense<0.000000e+00> : vector<8x128xf32>
    %136 = tpu.matmul %135, %9, %cst_35 {dimension_numbers = #tpu.dot_dimension_numbers<[1], [0], [0], [1], [0, 0, 1, 1], [], []>} : vector<8x128xbf16>, vector<128x128xbf16>, vector<8x128xf32> -> vector<8x128xf32>
    %137 = vector.broadcast %6 : vector<1x128xf32> to vector<8x128xf32>
    %138 = arith.addf %136, %137 : vector<8x128xf32>
    %139 = math.tanh %138 : vector<8x128xf32>
    %140 = vector.broadcast %7 : vector<1x128xf32> to vector<8x128xf32>
    %141 = arith.mulf %139, %140 : vector<8x128xf32>
    %cst_36 = arith.constant dense<0.000000e+00> : vector<8xf32>
    %142 = vector.multi_reduction <add>, %141, %cst_36 [1] : vector<8x128xf32> to vector<8xf32>
    %143 = vector.shape_cast %142 : vector<8xf32> to vector<8x1xf32>
    %144 = vector.broadcast %10 : f32 to vector<8x1xf32>
    %145 = arith.addf %143, %144 : vector<8x1xf32>
    %cst_37 = arith.constant 0.000000e+00 : f32
    %146 = vector.broadcast %cst_37 : f32 to vector<8x1xf32>
    %147 = arith.subf %146, %2 : vector<8x1xf32>
    %148 = math.sin %117 : vector<8x1xf32>
    %149 = arith.mulf %147, %148 : vector<8x1xf32>
    %150 = arith.addf %149, %145 : vector<8x1xf32>
    %151 = vector.broadcast %122 : f32 to vector<8x1xf32>
    %152 = arith.mulf %151, %120 : vector<8x1xf32>
    %153 = arith.addf %117, %152 : vector<8x1xf32>
    %154 = vector.broadcast %122 : f32 to vector<8x1xf32>
    %155 = arith.mulf %154, %150 : vector<8x1xf32>
    %156 = arith.addf %120, %155 : vector<8x1xf32>
    %c0_38 = arith.constant 0 : index
    %c4_39 = arith.constant 4 : index
    %157 = vector.load %arg5[%c0_38, %c4_39] : memref<8x16xf32, #tpu.memory_space<vmem>>, vector<8x1xf32>
    tpu.vector_store %arg5[%c0_38, %c4_39], %153 {strides = array<i32>} : memref<8x16xf32, #tpu.memory_space<vmem>>, vector<8x1xf32>,
    %c4_40 = arith.constant 4 : index
    %158 = memref.load %arg1[%c4_40] : memref<17xf32, #tpu.memory_space<smem>>
    %c12 = arith.constant 12 : index
    %c0_41 = arith.constant 0 : index
    %159 = vector.load %arg3[%c12, %c0_41] : memref<24x128xf32, #tpu.memory_space<vmem>>, vector<1x128xf32>
    %160 = vector.broadcast %153 : vector<8x1xf32> to vector<8x128xf32>
    %161 = vector.broadcast %4 : vector<1x128xf32> to vector<8x128xf32>
    %162 = arith.mulf %160, %161 : vector<8x128xf32>
    %163 = arith.addf %11, %162 : vector<8x128xf32>
    %164 = vector.broadcast %156 : vector<8x1xf32> to vector<8x128xf32>
    %165 = vector.broadcast %5 : vector<1x128xf32> to vector<8x128xf32>
    %166 = arith.mulf %164, %165 : vector<8x128xf32>
    %167 = arith.addf %163, %166 : vector<8x128xf32>
    %168 = vector.broadcast %159 : vector<1x128xf32> to vector<8x128xf32>
    %169 = arith.addf %167, %168 : vector<8x128xf32>
    %170 = math.tanh %169 : vector<8x128xf32>
    %171 = arith.truncf %170 : vector<8x128xf32> to vector<8x128xbf16>
    %cst_42 = arith.constant dense<0.000000e+00> : vector<8x128xf32>
    %172 = tpu.matmul %171, %9, %cst_42 {dimension_numbers = #tpu.dot_dimension_numbers<[1], [0], [0], [1], [0, 0, 1, 1], [], []>} : vector<8x128xbf16>, vector<128x128xbf16>, vector<8x128xf32> -> vector<8x128xf32>
    %173 = vector.broadcast %6 : vector<1x128xf32> to vector<8x128xf32>
    %174 = arith.addf %172, %173 : vector<8x128xf32>
    %175 = math.tanh %174 : vector<8x128xf32>
    %176 = vector.broadcast %7 : vector<1x128xf32> to vector<8x128xf32>
    %177 = arith.mulf %175, %176 : vector<8x128xf32>
    %cst_43 = arith.constant dense<0.000000e+00> : vector<8xf32>
    %178 = vector.multi_reduction <add>, %177, %cst_43 [1] : vector<8x128xf32> to vector<8xf32>
    %179 = vector.shape_cast %178 : vector<8xf32> to vector<8x1xf32>
    %180 = vector.broadcast %10 : f32 to vector<8x1xf32>
    %181 = arith.addf %179, %180 : vector<8x1xf32>
    %cst_44 = arith.constant 0.000000e+00 : f32
    %182 = vector.broadcast %cst_44 : f32 to vector<8x1xf32>
    %183 = arith.subf %182, %2 : vector<8x1xf32>
    %184 = math.sin %153 : vector<8x1xf32>
    %185 = arith.mulf %183, %184 : vector<8x1xf32>
    %186 = arith.addf %185, %181 : vector<8x1xf32>
    %187 = vector.broadcast %158 : f32 to vector<8x1xf32>
    %188 = arith.mulf %187, %156 : vector<8x1xf32>
    %189 = arith.addf %153, %188 : vector<8x1xf32>
    %190 = vector.broadcast %158 : f32 to vector<8x1xf32>
    %191 = arith.mulf %190, %186 : vector<8x1xf32>
    %192 = arith.addf %156, %191 : vector<8x1xf32>
    %c0_45 = arith.constant 0 : index
    %c5 = arith.constant 5 : index
    %193 = vector.load %arg5[%c0_45, %c5] : memref<8x16xf32, #tpu.memory_space<vmem>>, vector<8x1xf32>
    tpu.vector_store %arg5[%c0_45, %c5], %189 {strides = array<i32>} : memref<8x16xf32, #tpu.memory_space<vmem>>, vector<8x1xf32>,
    %c5_46 = arith.constant 5 : index
    %194 = memref.load %arg1[%c5_46] : memref<17xf32, #tpu.memory_space<smem>>
    %c13 = arith.constant 13 : index
    %c0_47 = arith.constant 0 : index
    %195 = vector.load %arg3[%c13, %c0_47] : memref<24x128xf32, #tpu.memory_space<vmem>>, vector<1x128xf32>
    %196 = vector.broadcast %189 : vector<8x1xf32> to vector<8x128xf32>
    %197 = vector.broadcast %4 : vector<1x128xf32> to vector<8x128xf32>
    %198 = arith.mulf %196, %197 : vector<8x128xf32>
    %199 = arith.addf %11, %198 : vector<8x128xf32>
    %200 = vector.broadcast %192 : vector<8x1xf32> to vector<8x128xf32>
    %201 = vector.broadcast %5 : vector<1x128xf32> to vector<8x128xf32>
    %202 = arith.mulf %200, %201 : vector<8x128xf32>
    %203 = arith.addf %199, %202 : vector<8x128xf32>
    %204 = vector.broadcast %195 : vector<1x128xf32> to vector<8x128xf32>
    %205 = arith.addf %203, %204 : vector<8x128xf32>
    %206 = math.tanh %205 : vector<8x128xf32>
    %207 = arith.truncf %206 : vector<8x128xf32> to vector<8x128xbf16>
    %cst_48 = arith.constant dense<0.000000e+00> : vector<8x128xf32>
    %208 = tpu.matmul %207, %9, %cst_48 {dimension_numbers = #tpu.dot_dimension_numbers<[1], [0], [0], [1], [0, 0, 1, 1], [], []>} : vector<8x128xbf16>, vector<128x128xbf16>, vector<8x128xf32> -> vector<8x128xf32>
    %209 = vector.broadcast %6 : vector<1x128xf32> to vector<8x128xf32>
    %210 = arith.addf %208, %209 : vector<8x128xf32>
    %211 = math.tanh %210 : vector<8x128xf32>
    %212 = vector.broadcast %7 : vector<1x128xf32> to vector<8x128xf32>
    %213 = arith.mulf %211, %212 : vector<8x128xf32>
    %cst_49 = arith.constant dense<0.000000e+00> : vector<8xf32>
    %214 = vector.multi_reduction <add>, %213, %cst_49 [1] : vector<8x128xf32> to vector<8xf32>
    %215 = vector.shape_cast %214 : vector<8xf32> to vector<8x1xf32>
    %216 = vector.broadcast %10 : f32 to vector<8x1xf32>
    %217 = arith.addf %215, %216 : vector<8x1xf32>
    %cst_50 = arith.constant 0.000000e+00 : f32
    %218 = vector.broadcast %cst_50 : f32 to vector<8x1xf32>
    %219 = arith.subf %218, %2 : vector<8x1xf32>
    %220 = math.sin %189 : vector<8x1xf32>
    %221 = arith.mulf %219, %220 : vector<8x1xf32>
    %222 = arith.addf %221, %217 : vector<8x1xf32>
    %223 = vector.broadcast %194 : f32 to vector<8x1xf32>
    %224 = arith.mulf %223, %192 : vector<8x1xf32>
    %225 = arith.addf %189, %224 : vector<8x1xf32>
    %226 = vector.broadcast %194 : f32 to vector<8x1xf32>
    %227 = arith.mulf %226, %222 : vector<8x1xf32>
    %228 = arith.addf %192, %227 : vector<8x1xf32>
    %c0_51 = arith.constant 0 : index
    %c6 = arith.constant 6 : index
    %229 = vector.load %arg5[%c0_51, %c6] : memref<8x16xf32, #tpu.memory_space<vmem>>, vector<8x1xf32>
    tpu.vector_store %arg5[%c0_51, %c6], %225 {strides = array<i32>} : memref<8x16xf32, #tpu.memory_space<vmem>>, vector<8x1xf32>,
    %c6_52 = arith.constant 6 : index
    %230 = memref.load %arg1[%c6_52] : memref<17xf32, #tpu.memory_space<smem>>
    %c14 = arith.constant 14 : index
    %c0_53 = arith.constant 0 : index
    %231 = vector.load %arg3[%c14, %c0_53] : memref<24x128xf32, #tpu.memory_space<vmem>>, vector<1x128xf32>
    %232 = vector.broadcast %225 : vector<8x1xf32> to vector<8x128xf32>
    %233 = vector.broadcast %4 : vector<1x128xf32> to vector<8x128xf32>
    %234 = arith.mulf %232, %233 : vector<8x128xf32>
    %235 = arith.addf %11, %234 : vector<8x128xf32>
    %236 = vector.broadcast %228 : vector<8x1xf32> to vector<8x128xf32>
    %237 = vector.broadcast %5 : vector<1x128xf32> to vector<8x128xf32>
    %238 = arith.mulf %236, %237 : vector<8x128xf32>
    %239 = arith.addf %235, %238 : vector<8x128xf32>
    %240 = vector.broadcast %231 : vector<1x128xf32> to vector<8x128xf32>
    %241 = arith.addf %239, %240 : vector<8x128xf32>
    %242 = math.tanh %241 : vector<8x128xf32>
    %243 = arith.truncf %242 : vector<8x128xf32> to vector<8x128xbf16>
    %cst_54 = arith.constant dense<0.000000e+00> : vector<8x128xf32>
    %244 = tpu.matmul %243, %9, %cst_54 {dimension_numbers = #tpu.dot_dimension_numbers<[1], [0], [0], [1], [0, 0, 1, 1], [], []>} : vector<8x128xbf16>, vector<128x128xbf16>, vector<8x128xf32> -> vector<8x128xf32>
    %245 = vector.broadcast %6 : vector<1x128xf32> to vector<8x128xf32>
    %246 = arith.addf %244, %245 : vector<8x128xf32>
    %247 = math.tanh %246 : vector<8x128xf32>
    %248 = vector.broadcast %7 : vector<1x128xf32> to vector<8x128xf32>
    %249 = arith.mulf %247, %248 : vector<8x128xf32>
    %cst_55 = arith.constant dense<0.000000e+00> : vector<8xf32>
    %250 = vector.multi_reduction <add>, %249, %cst_55 [1] : vector<8x128xf32> to vector<8xf32>
    %251 = vector.shape_cast %250 : vector<8xf32> to vector<8x1xf32>
    %252 = vector.broadcast %10 : f32 to vector<8x1xf32>
    %253 = arith.addf %251, %252 : vector<8x1xf32>
    %cst_56 = arith.constant 0.000000e+00 : f32
    %254 = vector.broadcast %cst_56 : f32 to vector<8x1xf32>
    %255 = arith.subf %254, %2 : vector<8x1xf32>
    %256 = math.sin %225 : vector<8x1xf32>
    %257 = arith.mulf %255, %256 : vector<8x1xf32>
    %258 = arith.addf %257, %253 : vector<8x1xf32>
    %259 = vector.broadcast %230 : f32 to vector<8x1xf32>
    %260 = arith.mulf %259, %228 : vector<8x1xf32>
    %261 = arith.addf %225, %260 : vector<8x1xf32>
    %262 = vector.broadcast %230 : f32 to vector<8x1xf32>
    %263 = arith.mulf %262, %258 : vector<8x1xf32>
    %264 = arith.addf %228, %263 : vector<8x1xf32>
    %c0_57 = arith.constant 0 : index
    %c7 = arith.constant 7 : index
    %265 = vector.load %arg5[%c0_57, %c7] : memref<8x16xf32, #tpu.memory_space<vmem>>, vector<8x1xf32>
    tpu.vector_store %arg5[%c0_57, %c7], %261 {strides = array<i32>} : memref<8x16xf32, #tpu.memory_space<vmem>>, vector<8x1xf32>,
    %c7_58 = arith.constant 7 : index
    %266 = memref.load %arg1[%c7_58] : memref<17xf32, #tpu.memory_space<smem>>
    %c15 = arith.constant 15 : index
    %c0_59 = arith.constant 0 : index
    %267 = vector.load %arg3[%c15, %c0_59] : memref<24x128xf32, #tpu.memory_space<vmem>>, vector<1x128xf32>
    %268 = vector.broadcast %261 : vector<8x1xf32> to vector<8x128xf32>
    %269 = vector.broadcast %4 : vector<1x128xf32> to vector<8x128xf32>
    %270 = arith.mulf %268, %269 : vector<8x128xf32>
    %271 = arith.addf %11, %270 : vector<8x128xf32>
    %272 = vector.broadcast %264 : vector<8x1xf32> to vector<8x128xf32>
    %273 = vector.broadcast %5 : vector<1x128xf32> to vector<8x128xf32>
    %274 = arith.mulf %272, %273 : vector<8x128xf32>
    %275 = arith.addf %271, %274 : vector<8x128xf32>
    %276 = vector.broadcast %267 : vector<1x128xf32> to vector<8x128xf32>
    %277 = arith.addf %275, %276 : vector<8x128xf32>
    %278 = math.tanh %277 : vector<8x128xf32>
    %279 = arith.truncf %278 : vector<8x128xf32> to vector<8x128xbf16>
    %cst_60 = arith.constant dense<0.000000e+00> : vector<8x128xf32>
    %280 = tpu.matmul %279, %9, %cst_60 {dimension_numbers = #tpu.dot_dimension_numbers<[1], [0], [0], [1], [0, 0, 1, 1], [], []>} : vector<8x128xbf16>, vector<128x128xbf16>, vector<8x128xf32> -> vector<8x128xf32>
    %281 = vector.broadcast %6 : vector<1x128xf32> to vector<8x128xf32>
    %282 = arith.addf %280, %281 : vector<8x128xf32>
    %283 = math.tanh %282 : vector<8x128xf32>
    %284 = vector.broadcast %7 : vector<1x128xf32> to vector<8x128xf32>
    %285 = arith.mulf %283, %284 : vector<8x128xf32>
    %cst_61 = arith.constant dense<0.000000e+00> : vector<8xf32>
    %286 = vector.multi_reduction <add>, %285, %cst_61 [1] : vector<8x128xf32> to vector<8xf32>
    %287 = vector.shape_cast %286 : vector<8xf32> to vector<8x1xf32>
    %288 = vector.broadcast %10 : f32 to vector<8x1xf32>
    %289 = arith.addf %287, %288 : vector<8x1xf32>
    %cst_62 = arith.constant 0.000000e+00 : f32
    %290 = vector.broadcast %cst_62 : f32 to vector<8x1xf32>
    %291 = arith.subf %290, %2 : vector<8x1xf32>
    %292 = math.sin %261 : vector<8x1xf32>
    %293 = arith.mulf %291, %292 : vector<8x1xf32>
    %294 = arith.addf %293, %289 : vector<8x1xf32>
    %295 = vector.broadcast %266 : f32 to vector<8x1xf32>
    %296 = arith.mulf %295, %264 : vector<8x1xf32>
    %297 = arith.addf %261, %296 : vector<8x1xf32>
    %298 = vector.broadcast %266 : f32 to vector<8x1xf32>
    %299 = arith.mulf %298, %294 : vector<8x1xf32>
    %300 = arith.addf %264, %299 : vector<8x1xf32>
    %c0_63 = arith.constant 0 : index
    %c8_64 = arith.constant 8 : index
    %301 = vector.load %arg5[%c0_63, %c8_64] : memref<8x16xf32, #tpu.memory_space<vmem>>, vector<8x1xf32>
    tpu.vector_store %arg5[%c0_63, %c8_64], %297 {strides = array<i32>} : memref<8x16xf32, #tpu.memory_space<vmem>>, vector<8x1xf32>,
    %c8_65 = arith.constant 8 : index
    %302 = memref.load %arg1[%c8_65] : memref<17xf32, #tpu.memory_space<smem>>
    %c16_66 = arith.constant 16 : index
    %c0_67 = arith.constant 0 : index
    %303 = vector.load %arg3[%c16_66, %c0_67] : memref<24x128xf32, #tpu.memory_space<vmem>>, vector<1x128xf32>
    %304 = vector.broadcast %297 : vector<8x1xf32> to vector<8x128xf32>
    %305 = vector.broadcast %4 : vector<1x128xf32> to vector<8x128xf32>
    %306 = arith.mulf %304, %305 : vector<8x128xf32>
    %307 = arith.addf %11, %306 : vector<8x128xf32>
    %308 = vector.broadcast %300 : vector<8x1xf32> to vector<8x128xf32>
    %309 = vector.broadcast %5 : vector<1x128xf32> to vector<8x128xf32>
    %310 = arith.mulf %308, %309 : vector<8x128xf32>
    %311 = arith.addf %307, %310 : vector<8x128xf32>
    %312 = vector.broadcast %303 : vector<1x128xf32> to vector<8x128xf32>
    %313 = arith.addf %311, %312 : vector<8x128xf32>
    %314 = math.tanh %313 : vector<8x128xf32>
    %315 = arith.truncf %314 : vector<8x128xf32> to vector<8x128xbf16>
    %cst_68 = arith.constant dense<0.000000e+00> : vector<8x128xf32>
    %316 = tpu.matmul %315, %9, %cst_68 {dimension_numbers = #tpu.dot_dimension_numbers<[1], [0], [0], [1], [0, 0, 1, 1], [], []>} : vector<8x128xbf16>, vector<128x128xbf16>, vector<8x128xf32> -> vector<8x128xf32>
    %317 = vector.broadcast %6 : vector<1x128xf32> to vector<8x128xf32>
    %318 = arith.addf %316, %317 : vector<8x128xf32>
    %319 = math.tanh %318 : vector<8x128xf32>
    %320 = vector.broadcast %7 : vector<1x128xf32> to vector<8x128xf32>
    %321 = arith.mulf %319, %320 : vector<8x128xf32>
    %cst_69 = arith.constant dense<0.000000e+00> : vector<8xf32>
    %322 = vector.multi_reduction <add>, %321, %cst_69 [1] : vector<8x128xf32> to vector<8xf32>
    %323 = vector.shape_cast %322 : vector<8xf32> to vector<8x1xf32>
    %324 = vector.broadcast %10 : f32 to vector<8x1xf32>
    %325 = arith.addf %323, %324 : vector<8x1xf32>
    %cst_70 = arith.constant 0.000000e+00 : f32
    %326 = vector.broadcast %cst_70 : f32 to vector<8x1xf32>
    %327 = arith.subf %326, %2 : vector<8x1xf32>
    %328 = math.sin %297 : vector<8x1xf32>
    %329 = arith.mulf %327, %328 : vector<8x1xf32>
    %330 = arith.addf %329, %325 : vector<8x1xf32>
    %331 = vector.broadcast %302 : f32 to vector<8x1xf32>
    %332 = arith.mulf %331, %300 : vector<8x1xf32>
    %333 = arith.addf %297, %332 : vector<8x1xf32>
    %334 = vector.broadcast %302 : f32 to vector<8x1xf32>
    %335 = arith.mulf %334, %330 : vector<8x1xf32>
    %336 = arith.addf %300, %335 : vector<8x1xf32>
    %c0_71 = arith.constant 0 : index
    %c9_72 = arith.constant 9 : index
    %337 = vector.load %arg5[%c0_71, %c9_72] : memref<8x16xf32, #tpu.memory_space<vmem>>, vector<8x1xf32>
    tpu.vector_store %arg5[%c0_71, %c9_72], %333 {strides = array<i32>} : memref<8x16xf32, #tpu.memory_space<vmem>>, vector<8x1xf32>,
    %c9_73 = arith.constant 9 : index
    %338 = memref.load %arg1[%c9_73] : memref<17xf32, #tpu.memory_space<smem>>
    %c17 = arith.constant 17 : index
    %c0_74 = arith.constant 0 : index
    %339 = vector.load %arg3[%c17, %c0_74] : memref<24x128xf32, #tpu.memory_space<vmem>>, vector<1x128xf32>
    %340 = vector.broadcast %333 : vector<8x1xf32> to vector<8x128xf32>
    %341 = vector.broadcast %4 : vector<1x128xf32> to vector<8x128xf32>
    %342 = arith.mulf %340, %341 : vector<8x128xf32>
    %343 = arith.addf %11, %342 : vector<8x128xf32>
    %344 = vector.broadcast %336 : vector<8x1xf32> to vector<8x128xf32>
    %345 = vector.broadcast %5 : vector<1x128xf32> to vector<8x128xf32>
    %346 = arith.mulf %344, %345 : vector<8x128xf32>
    %347 = arith.addf %343, %346 : vector<8x128xf32>
    %348 = vector.broadcast %339 : vector<1x128xf32> to vector<8x128xf32>
    %349 = arith.addf %347, %348 : vector<8x128xf32>
    %350 = math.tanh %349 : vector<8x128xf32>
    %351 = arith.truncf %350 : vector<8x128xf32> to vector<8x128xbf16>
    %cst_75 = arith.constant dense<0.000000e+00> : vector<8x128xf32>
    %352 = tpu.matmul %351, %9, %cst_75 {dimension_numbers = #tpu.dot_dimension_numbers<[1], [0], [0], [1], [0, 0, 1, 1], [], []>} : vector<8x128xbf16>, vector<128x128xbf16>, vector<8x128xf32> -> vector<8x128xf32>
    %353 = vector.broadcast %6 : vector<1x128xf32> to vector<8x128xf32>
    %354 = arith.addf %352, %353 : vector<8x128xf32>
    %355 = math.tanh %354 : vector<8x128xf32>
    %356 = vector.broadcast %7 : vector<1x128xf32> to vector<8x128xf32>
    %357 = arith.mulf %355, %356 : vector<8x128xf32>
    %cst_76 = arith.constant dense<0.000000e+00> : vector<8xf32>
    %358 = vector.multi_reduction <add>, %357, %cst_76 [1] : vector<8x128xf32> to vector<8xf32>
    %359 = vector.shape_cast %358 : vector<8xf32> to vector<8x1xf32>
    %360 = vector.broadcast %10 : f32 to vector<8x1xf32>
    %361 = arith.addf %359, %360 : vector<8x1xf32>
    %cst_77 = arith.constant 0.000000e+00 : f32
    %362 = vector.broadcast %cst_77 : f32 to vector<8x1xf32>
    %363 = arith.subf %362, %2 : vector<8x1xf32>
    %364 = math.sin %333 : vector<8x1xf32>
    %365 = arith.mulf %363, %364 : vector<8x1xf32>
    %366 = arith.addf %365, %361 : vector<8x1xf32>
    %367 = vector.broadcast %338 : f32 to vector<8x1xf32>
    %368 = arith.mulf %367, %336 : vector<8x1xf32>
    %369 = arith.addf %333, %368 : vector<8x1xf32>
    %370 = vector.broadcast %338 : f32 to vector<8x1xf32>
    %371 = arith.mulf %370, %366 : vector<8x1xf32>
    %372 = arith.addf %336, %371 : vector<8x1xf32>
    %c0_78 = arith.constant 0 : index
    %c10_79 = arith.constant 10 : index
    %373 = vector.load %arg5[%c0_78, %c10_79] : memref<8x16xf32, #tpu.memory_space<vmem>>, vector<8x1xf32>
    tpu.vector_store %arg5[%c0_78, %c10_79], %369 {strides = array<i32>} : memref<8x16xf32, #tpu.memory_space<vmem>>, vector<8x1xf32>,
    %c10_80 = arith.constant 10 : index
    %374 = memref.load %arg1[%c10_80] : memref<17xf32, #tpu.memory_space<smem>>
    %c18 = arith.constant 18 : index
    %c0_81 = arith.constant 0 : index
    %375 = vector.load %arg3[%c18, %c0_81] : memref<24x128xf32, #tpu.memory_space<vmem>>, vector<1x128xf32>
    %376 = vector.broadcast %369 : vector<8x1xf32> to vector<8x128xf32>
    %377 = vector.broadcast %4 : vector<1x128xf32> to vector<8x128xf32>
    %378 = arith.mulf %376, %377 : vector<8x128xf32>
    %379 = arith.addf %11, %378 : vector<8x128xf32>
    %380 = vector.broadcast %372 : vector<8x1xf32> to vector<8x128xf32>
    %381 = vector.broadcast %5 : vector<1x128xf32> to vector<8x128xf32>
    %382 = arith.mulf %380, %381 : vector<8x128xf32>
    %383 = arith.addf %379, %382 : vector<8x128xf32>
    %384 = vector.broadcast %375 : vector<1x128xf32> to vector<8x128xf32>
    %385 = arith.addf %383, %384 : vector<8x128xf32>
    %386 = math.tanh %385 : vector<8x128xf32>
    %387 = arith.truncf %386 : vector<8x128xf32> to vector<8x128xbf16>
    %cst_82 = arith.constant dense<0.000000e+00> : vector<8x128xf32>
    %388 = tpu.matmul %387, %9, %cst_82 {dimension_numbers = #tpu.dot_dimension_numbers<[1], [0], [0], [1], [0, 0, 1, 1], [], []>} : vector<8x128xbf16>, vector<128x128xbf16>, vector<8x128xf32> -> vector<8x128xf32>
    %389 = vector.broadcast %6 : vector<1x128xf32> to vector<8x128xf32>
    %390 = arith.addf %388, %389 : vector<8x128xf32>
    %391 = math.tanh %390 : vector<8x128xf32>
    %392 = vector.broadcast %7 : vector<1x128xf32> to vector<8x128xf32>
    %393 = arith.mulf %391, %392 : vector<8x128xf32>
    %cst_83 = arith.constant dense<0.000000e+00> : vector<8xf32>
    %394 = vector.multi_reduction <add>, %393, %cst_83 [1] : vector<8x128xf32> to vector<8xf32>
    %395 = vector.shape_cast %394 : vector<8xf32> to vector<8x1xf32>
    %396 = vector.broadcast %10 : f32 to vector<8x1xf32>
    %397 = arith.addf %395, %396 : vector<8x1xf32>
    %cst_84 = arith.constant 0.000000e+00 : f32
    %398 = vector.broadcast %cst_84 : f32 to vector<8x1xf32>
    %399 = arith.subf %398, %2 : vector<8x1xf32>
    %400 = math.sin %369 : vector<8x1xf32>
    %401 = arith.mulf %399, %400 : vector<8x1xf32>
    %402 = arith.addf %401, %397 : vector<8x1xf32>
    %403 = vector.broadcast %374 : f32 to vector<8x1xf32>
    %404 = arith.mulf %403, %372 : vector<8x1xf32>
    %405 = arith.addf %369, %404 : vector<8x1xf32>
    %406 = vector.broadcast %374 : f32 to vector<8x1xf32>
    %407 = arith.mulf %406, %402 : vector<8x1xf32>
    %408 = arith.addf %372, %407 : vector<8x1xf32>
    %c0_85 = arith.constant 0 : index
    %c11_86 = arith.constant 11 : index
    %409 = vector.load %arg5[%c0_85, %c11_86] : memref<8x16xf32, #tpu.memory_space<vmem>>, vector<8x1xf32>
    tpu.vector_store %arg5[%c0_85, %c11_86], %405 {strides = array<i32>} : memref<8x16xf32, #tpu.memory_space<vmem>>, vector<8x1xf32>,
    %c11_87 = arith.constant 11 : index
    %410 = memref.load %arg1[%c11_87] : memref<17xf32, #tpu.memory_space<smem>>
    %c19 = arith.constant 19 : index
    %c0_88 = arith.constant 0 : index
    %411 = vector.load %arg3[%c19, %c0_88] : memref<24x128xf32, #tpu.memory_space<vmem>>, vector<1x128xf32>
    %412 = vector.broadcast %405 : vector<8x1xf32> to vector<8x128xf32>
    %413 = vector.broadcast %4 : vector<1x128xf32> to vector<8x128xf32>
    %414 = arith.mulf %412, %413 : vector<8x128xf32>
    %415 = arith.addf %11, %414 : vector<8x128xf32>
    %416 = vector.broadcast %408 : vector<8x1xf32> to vector<8x128xf32>
    %417 = vector.broadcast %5 : vector<1x128xf32> to vector<8x128xf32>
    %418 = arith.mulf %416, %417 : vector<8x128xf32>
    %419 = arith.addf %415, %418 : vector<8x128xf32>
    %420 = vector.broadcast %411 : vector<1x128xf32> to vector<8x128xf32>
    %421 = arith.addf %419, %420 : vector<8x128xf32>
    %422 = math.tanh %421 : vector<8x128xf32>
    %423 = arith.truncf %422 : vector<8x128xf32> to vector<8x128xbf16>
    %cst_89 = arith.constant dense<0.000000e+00> : vector<8x128xf32>
    %424 = tpu.matmul %423, %9, %cst_89 {dimension_numbers = #tpu.dot_dimension_numbers<[1], [0], [0], [1], [0, 0, 1, 1], [], []>} : vector<8x128xbf16>, vector<128x128xbf16>, vector<8x128xf32> -> vector<8x128xf32>
    %425 = vector.broadcast %6 : vector<1x128xf32> to vector<8x128xf32>
    %426 = arith.addf %424, %425 : vector<8x128xf32>
    %427 = math.tanh %426 : vector<8x128xf32>
    %428 = vector.broadcast %7 : vector<1x128xf32> to vector<8x128xf32>
    %429 = arith.mulf %427, %428 : vector<8x128xf32>
    %cst_90 = arith.constant dense<0.000000e+00> : vector<8xf32>
    %430 = vector.multi_reduction <add>, %429, %cst_90 [1] : vector<8x128xf32> to vector<8xf32>
    %431 = vector.shape_cast %430 : vector<8xf32> to vector<8x1xf32>
    %432 = vector.broadcast %10 : f32 to vector<8x1xf32>
    %433 = arith.addf %431, %432 : vector<8x1xf32>
    %cst_91 = arith.constant 0.000000e+00 : f32
    %434 = vector.broadcast %cst_91 : f32 to vector<8x1xf32>
    %435 = arith.subf %434, %2 : vector<8x1xf32>
    %436 = math.sin %405 : vector<8x1xf32>
    %437 = arith.mulf %435, %436 : vector<8x1xf32>
    %438 = arith.addf %437, %433 : vector<8x1xf32>
    %439 = vector.broadcast %410 : f32 to vector<8x1xf32>
    %440 = arith.mulf %439, %408 : vector<8x1xf32>
    %441 = arith.addf %405, %440 : vector<8x1xf32>
    %442 = vector.broadcast %410 : f32 to vector<8x1xf32>
    %443 = arith.mulf %442, %438 : vector<8x1xf32>
    %444 = arith.addf %408, %443 : vector<8x1xf32>
    %c0_92 = arith.constant 0 : index
    %c12_93 = arith.constant 12 : index
    %445 = vector.load %arg5[%c0_92, %c12_93] : memref<8x16xf32, #tpu.memory_space<vmem>>, vector<8x1xf32>
    tpu.vector_store %arg5[%c0_92, %c12_93], %441 {strides = array<i32>} : memref<8x16xf32, #tpu.memory_space<vmem>>, vector<8x1xf32>,
    %c12_94 = arith.constant 12 : index
    %446 = memref.load %arg1[%c12_94] : memref<17xf32, #tpu.memory_space<smem>>
    %c20 = arith.constant 20 : index
    %c0_95 = arith.constant 0 : index
    %447 = vector.load %arg3[%c20, %c0_95] : memref<24x128xf32, #tpu.memory_space<vmem>>, vector<1x128xf32>
    %448 = vector.broadcast %441 : vector<8x1xf32> to vector<8x128xf32>
    %449 = vector.broadcast %4 : vector<1x128xf32> to vector<8x128xf32>
    %450 = arith.mulf %448, %449 : vector<8x128xf32>
    %451 = arith.addf %11, %450 : vector<8x128xf32>
    %452 = vector.broadcast %444 : vector<8x1xf32> to vector<8x128xf32>
    %453 = vector.broadcast %5 : vector<1x128xf32> to vector<8x128xf32>
    %454 = arith.mulf %452, %453 : vector<8x128xf32>
    %455 = arith.addf %451, %454 : vector<8x128xf32>
    %456 = vector.broadcast %447 : vector<1x128xf32> to vector<8x128xf32>
    %457 = arith.addf %455, %456 : vector<8x128xf32>
    %458 = math.tanh %457 : vector<8x128xf32>
    %459 = arith.truncf %458 : vector<8x128xf32> to vector<8x128xbf16>
    %cst_96 = arith.constant dense<0.000000e+00> : vector<8x128xf32>
    %460 = tpu.matmul %459, %9, %cst_96 {dimension_numbers = #tpu.dot_dimension_numbers<[1], [0], [0], [1], [0, 0, 1, 1], [], []>} : vector<8x128xbf16>, vector<128x128xbf16>, vector<8x128xf32> -> vector<8x128xf32>
    %461 = vector.broadcast %6 : vector<1x128xf32> to vector<8x128xf32>
    %462 = arith.addf %460, %461 : vector<8x128xf32>
    %463 = math.tanh %462 : vector<8x128xf32>
    %464 = vector.broadcast %7 : vector<1x128xf32> to vector<8x128xf32>
    %465 = arith.mulf %463, %464 : vector<8x128xf32>
    %cst_97 = arith.constant dense<0.000000e+00> : vector<8xf32>
    %466 = vector.multi_reduction <add>, %465, %cst_97 [1] : vector<8x128xf32> to vector<8xf32>
    %467 = vector.shape_cast %466 : vector<8xf32> to vector<8x1xf32>
    %468 = vector.broadcast %10 : f32 to vector<8x1xf32>
    %469 = arith.addf %467, %468 : vector<8x1xf32>
    %cst_98 = arith.constant 0.000000e+00 : f32
    %470 = vector.broadcast %cst_98 : f32 to vector<8x1xf32>
    %471 = arith.subf %470, %2 : vector<8x1xf32>
    %472 = math.sin %441 : vector<8x1xf32>
    %473 = arith.mulf %471, %472 : vector<8x1xf32>
    %474 = arith.addf %473, %469 : vector<8x1xf32>
    %475 = vector.broadcast %446 : f32 to vector<8x1xf32>
    %476 = arith.mulf %475, %444 : vector<8x1xf32>
    %477 = arith.addf %441, %476 : vector<8x1xf32>
    %478 = vector.broadcast %446 : f32 to vector<8x1xf32>
    %479 = arith.mulf %478, %474 : vector<8x1xf32>
    %480 = arith.addf %444, %479 : vector<8x1xf32>
    %c0_99 = arith.constant 0 : index
    %c13_100 = arith.constant 13 : index
    %481 = vector.load %arg5[%c0_99, %c13_100] : memref<8x16xf32, #tpu.memory_space<vmem>>, vector<8x1xf32>
    tpu.vector_store %arg5[%c0_99, %c13_100], %477 {strides = array<i32>} : memref<8x16xf32, #tpu.memory_space<vmem>>, vector<8x1xf32>,
    %c13_101 = arith.constant 13 : index
    %482 = memref.load %arg1[%c13_101] : memref<17xf32, #tpu.memory_space<smem>>
    %c21 = arith.constant 21 : index
    %c0_102 = arith.constant 0 : index
    %483 = vector.load %arg3[%c21, %c0_102] : memref<24x128xf32, #tpu.memory_space<vmem>>, vector<1x128xf32>
    %484 = vector.broadcast %477 : vector<8x1xf32> to vector<8x128xf32>
    %485 = vector.broadcast %4 : vector<1x128xf32> to vector<8x128xf32>
    %486 = arith.mulf %484, %485 : vector<8x128xf32>
    %487 = arith.addf %11, %486 : vector<8x128xf32>
    %488 = vector.broadcast %480 : vector<8x1xf32> to vector<8x128xf32>
    %489 = vector.broadcast %5 : vector<1x128xf32> to vector<8x128xf32>
    %490 = arith.mulf %488, %489 : vector<8x128xf32>
    %491 = arith.addf %487, %490 : vector<8x128xf32>
    %492 = vector.broadcast %483 : vector<1x128xf32> to vector<8x128xf32>
    %493 = arith.addf %491, %492 : vector<8x128xf32>
    %494 = math.tanh %493 : vector<8x128xf32>
    %495 = arith.truncf %494 : vector<8x128xf32> to vector<8x128xbf16>
    %cst_103 = arith.constant dense<0.000000e+00> : vector<8x128xf32>
    %496 = tpu.matmul %495, %9, %cst_103 {dimension_numbers = #tpu.dot_dimension_numbers<[1], [0], [0], [1], [0, 0, 1, 1], [], []>} : vector<8x128xbf16>, vector<128x128xbf16>, vector<8x128xf32> -> vector<8x128xf32>
    %497 = vector.broadcast %6 : vector<1x128xf32> to vector<8x128xf32>
    %498 = arith.addf %496, %497 : vector<8x128xf32>
    %499 = math.tanh %498 : vector<8x128xf32>
    %500 = vector.broadcast %7 : vector<1x128xf32> to vector<8x128xf32>
    %501 = arith.mulf %499, %500 : vector<8x128xf32>
    %cst_104 = arith.constant dense<0.000000e+00> : vector<8xf32>
    %502 = vector.multi_reduction <add>, %501, %cst_104 [1] : vector<8x128xf32> to vector<8xf32>
    %503 = vector.shape_cast %502 : vector<8xf32> to vector<8x1xf32>
    %504 = vector.broadcast %10 : f32 to vector<8x1xf32>
    %505 = arith.addf %503, %504 : vector<8x1xf32>
    %cst_105 = arith.constant 0.000000e+00 : f32
    %506 = vector.broadcast %cst_105 : f32 to vector<8x1xf32>
    %507 = arith.subf %506, %2 : vector<8x1xf32>
    %508 = math.sin %477 : vector<8x1xf32>
    %509 = arith.mulf %507, %508 : vector<8x1xf32>
    %510 = arith.addf %509, %505 : vector<8x1xf32>
    %511 = vector.broadcast %482 : f32 to vector<8x1xf32>
    %512 = arith.mulf %511, %480 : vector<8x1xf32>
    %513 = arith.addf %477, %512 : vector<8x1xf32>
    %514 = vector.broadcast %482 : f32 to vector<8x1xf32>
    %515 = arith.mulf %514, %510 : vector<8x1xf32>
    %516 = arith.addf %480, %515 : vector<8x1xf32>
    %c0_106 = arith.constant 0 : index
    %c14_107 = arith.constant 14 : index
    %517 = vector.load %arg5[%c0_106, %c14_107] : memref<8x16xf32, #tpu.memory_space<vmem>>, vector<8x1xf32>
    tpu.vector_store %arg5[%c0_106, %c14_107], %513 {strides = array<i32>} : memref<8x16xf32, #tpu.memory_space<vmem>>, vector<8x1xf32>,
    %c14_108 = arith.constant 14 : index
    %518 = memref.load %arg1[%c14_108] : memref<17xf32, #tpu.memory_space<smem>>
    %519 = vector.broadcast %518 : f32 to vector<8x1xf32>
    %520 = arith.mulf %519, %516 : vector<8x1xf32>
    %521 = arith.addf %513, %520 : vector<8x1xf32>
    %c0_109 = arith.constant 0 : index
    %c15_110 = arith.constant 15 : index
    %522 = vector.load %arg5[%c0_109, %c15_110] : memref<8x16xf32, #tpu.memory_space<vmem>>, vector<8x1xf32>
    tpu.vector_store %arg5[%c0_109, %c15_110], %521 {strides = array<i32>} : memref<8x16xf32, #tpu.memory_space<vmem>>, vector<8x1xf32>,
    return
  }
  func.func @transform_0(%arg0: i32) -> i32 {
    %c0_i32 = arith.constant 0 : i32
    %c0_i32_0 = arith.constant 0 : i32
    return %c0_i32 : i32
  }
  func.func @transform_1(%arg0: i32) -> (i32, i32) {
    %c0_i32 = arith.constant 0 : i32
    %c0_i32_0 = arith.constant 0 : i32
    return %arg0, %c0_i32 : i32, i32
  }
  func.func @transform_2(%arg0: i32) -> (i32, i32) {
    %c0_i32 = arith.constant 0 : i32
    %c0_i32_0 = arith.constant 0 : i32
    %c0_i32_1 = arith.constant 0 : i32
    return %c0_i32, %c0_i32_0 : i32, i32
  }
  func.func @transform_3(%arg0: i32) -> (i32, i32) {
    %c0_i32 = arith.constant 0 : i32
    %c0_i32_0 = arith.constant 0 : i32
    %c0_i32_1 = arith.constant 0 : i32
    return %c0_i32, %c0_i32_0 : i32, i32
  }
  func.func @transform_4(%arg0: i32) -> (i32, i32) {
    %c0_i32 = arith.constant 0 : i32
    %c0_i32_0 = arith.constant 0 : i32
    return %arg0, %c0_i32 : i32, i32
  }
}

</mosaic_0001>

<llo_original>
// kernel: neural_pendulum_simulate.1
$region0: #{neural_pendulum_simulate.1}
  #allocation0 [shape = 'u32[]', space=smem, size = 0x4, offset = 0x4, fixed_abs, tag = 'smem constant byte address 0x4 - core index']
  #allocation1 [shape = 'u32[144,128]{1,0:T(1,128)}', space=vmem, size = 0x12000, scoped, tag = 'internal scratch']
  %s0 = inlined_call_operand.vmem [shape: f32[17], index: 0, kind: input, shape index: {}]
  %s1 = inlined_call_operand.vmem [shape: f32[8,5], index: 1, kind: input, shape index: {}]
  %s2 = inlined_call_operand.vmem [shape: f32[24,128], index: 2, kind: input, shape index: {}]
  %s3 = inlined_call_operand.vmem [shape: bf16[128,128], index: 3, kind: input, shape index: {}]
  %s4 = inlined_call_operand.hbm [shape: f32[8,16], index: 4, kind: output, shape index: {}]
  %s5 = sld [smem:[#allocation0]]
  $region30: #{neural_pendulum_simulate.1} parent=0
    _
  %s7 = ssub.s32 1, %s5
  %s8 = scalar_select 0, %s7, %s5
  $region1: #{neural_pendulum_simulate.1} parent=0
    #allocation2 [shape = 'u8[512]{0}', space=smem, size = 0x200, scoped, tag = 'input window, operand 0, single buffered']
    #allocation3 [shape = 's32[1]{0}', space=sflag, size = 0x4, scoped, tag = 'scoped memory for neural_pendulum_simulate.1']
    #allocation4 [shape = 's32[1]{0}', space=sflag, size = 0x4, scoped, tag = 'scoped memory for neural_pendulum_simulate.1']
    #allocation5 [shape = 'u8[4096]{0}', space=vmem, size = 0x1000, scoped, tag = 'output window, operand 0, single buffered']
    %9 = vsyncpa [#allocation4], 0
    %10 = vsyncpa [#allocation3], 0
    // Predicated region
    $region2: #{neural_pendulum_simulate.1} parent=1 // pred_check
      _
    $region3: #{neural_pendulum_simulate.1} parent=1 // pred_check_branch
      %12 = sbr.rel (0) target = $region5
    $region4: #{neural_pendulum_simulate.1} parent=1 // pred_region
      %s14 = ssub.s32 16, 16
      %15 = vsyncadd [#allocation4], %s14
      %s17 = sshll.u32 %s0, 4
      %s18 = int_to_ptr.vmem [resolvable:$true] %s17
      %20 = dma.vmem_to_smem %s18, 16, [#allocation2], [#allocation4]
    $region5: #{neural_pendulum_simulate.1} parent=1 // pred_fallthru
      _
    // Predicated region
    $region6: #{neural_pendulum_simulate.1} parent=1 // pred_check
      _
    $region7: #{neural_pendulum_simulate.1} parent=1 // pred_check_branch
      %22 = sbr.rel (0) target = $region9
    $region8: #{neural_pendulum_simulate.1} parent=1 // pred_region
      _
    $region9: #{neural_pendulum_simulate.1} parent=1 // pred_fallthru
      _
    // Predicated region
    $region10: #{neural_pendulum_simulate.1} parent=1 // pred_check
      _
    $region11: #{neural_pendulum_simulate.1} parent=1 // pred_check_branch
      %24 = sbr.rel (0) target = $region13
    $region12: #{neural_pendulum_simulate.1} parent=1 // pred_region
      _
    $region13: #{neural_pendulum_simulate.1} parent=1 // pred_fallthru
      _
    // Predicated region
    $region14: #{neural_pendulum_simulate.1} parent=1 // pred_check
      _
    $region15: #{neural_pendulum_simulate.1} parent=1 // pred_check_branch
      %26 = sbr.rel (0) target = $region17
    $region16: #{neural_pendulum_simulate.1} parent=1 // pred_region
      _
    $region17: #{neural_pendulum_simulate.1} parent=1 // pred_fallthru
      _
    // Predicated region
    $region18: #{neural_pendulum_simulate.1} parent=1 // pred_check
      _
    $region19: #{neural_pendulum_simulate.1} parent=1 // pred_check_branch
      %28 = sbr.rel (0) target = $region21
    $region20: #{neural_pendulum_simulate.1} parent=1 // pred_region
      %29 = dma.done [#allocation4], 16
    $region21: #{neural_pendulum_simulate.1} parent=1 // pred_fallthru
      _
    %30 = sfence
    %v32 = vld [vmem:[%s1] sm:$0xff]
    %v33 = vld [vmem:[%s2] sm:$0x1]
    %v34 = vld [vmem:[%s2 + $0x1] sm:$0x1]
    %v35 = vld [vmem:[%s2 + $0x2] sm:$0x1]
    %v36 = vld [vmem:[%s2 + $0x3] sm:$0x1]
    %v37 = vld [vmem:[%s2 + $0x4] sm:$0xf]
    %v38 = vld [vmem:[%s3] sm:$0xf]
    %v39 = vld [vmem:[%s3 + $0x4] sm:$0xf]
    %v40 = vld [vmem:[%s3 + $0x8] sm:$0xf]
    %v41 = vld [vmem:[%s3 + $0xc] sm:$0xf]
    %v42 = vld [vmem:[%s3 + $0x10] sm:$0xf]
    %v43 = vld [vmem:[%s3 + $0x14] sm:$0xf]
    %v44 = vld [vmem:[%s3 + $0x18] sm:$0xf]
    %v45 = vld [vmem:[%s3 + $0x1c] sm:$0xf]
    %v46 = vld [vmem:[%s3 + $0x20] sm:$0xf]
    %v47 = vld [vmem:[%s3 + $0x24] sm:$0xf]
    %v48 = vld [vmem:[%s3 + $0x28] sm:$0xf]
    %v49 = vld [vmem:[%s3 + $0x2c] sm:$0xf]
    %v50 = vld [vmem:[%s3 + $0x30] sm:$0xf]
    %v51 = vld [vmem:[%s3 + $0x34] sm:$0xf]
    %v52 = vld [vmem:[%s3 + $0x38] sm:$0xf]
    %v53 = vld [vmem:[%s3 + $0x3c] sm:$0xf]
    %s54 = sld [smem:[#allocation2 + $0x10]]
    %vm55 = vcmask 31744
    %v57 = vsel %vm55, %v32, 0
    %vm59 = vcmask 1043456
    %v61 = vsel %vm59, %v37, 0
    %63 = vmatprep.subr.mxu0 0.0
    %64 = vmatpush1.msra.mxu0 %v61
    %65 = vmatprep.subr.mxu0 0.0
    %66 = vmatpush1.msra.mxu0 0.0
    %67 = vmatprep.subr.mxu0 0.0
    %68 = vmatpush1.msra.mxu0 0.0
    %69 = vmatprep.subr.mxu0 0.0
    %70 = vmatpush1.msra.mxu0 0.0
    %71 = vmatprep.subr.mxu0 0.0
    %72 = vmatpush1.msra.mxu0 0.0
    %73 = vmatprep.subr.mxu0 0.0
    %74 = vmatpush1.msra.mxu0 0.0
    %75 = vmatprep.subr.mxu0 0.0
    %76 = vmatpush1.msra.mxu0 0.0
    %77 = vmatprep.subr.mxu0 0.0
    %78 = vmatpush1.msra.mxu0 0.0
    %79 = vmatprep.subr.mxu0 0.0
    %80 = vmatpush1.msra.mxu0 0.0
    %81 = vmatprep.subr.mxu0 0.0
    %82 = vmatpush1.msra.mxu0 0.0
    %83 = vmatprep.subr.mxu0 0.0
    %84 = vmatpush1.msra.mxu0 0.0
    %85 = vmatprep.subr.mxu0 0.0
    %86 = vmatpush1.msra.mxu0 0.0
    %87 = vmatprep.subr.mxu0 0.0
    %88 = vmatpush1.msra.mxu0 0.0
    %89 = vmatprep.subr.mxu0 0.0
    %90 = vmatpush1.msra.mxu0 0.0
    %91 = vmatprep.subr.mxu0 0.0
    %92 = vmatpush1.msra.mxu0 0.0
    %93 = vmatprep.subr.mxu0 0.0
    %94 = vmatpush1.msra.mxu0 0.0
    %95 = vmatprep.subr.mxu0 0.0
    %96 = vmatpush1.msra.mxu0 0.0
    %97 = vmatprep.subr.mxu0 0.0
    %98 = vmatpush1.msra.mxu0 0.0
    %99 = vmatprep.subr.mxu0 0.0
    %100 = vmatpush1.msra.mxu0 0.0
    %101 = vmatprep.subr.mxu0 0.0
    %102 = vmatpush1.msra.mxu0 0.0
    %103 = vmatprep.subr.mxu0 0.0
    %104 = vmatpush1.msra.mxu0 0.0
    %105 = vmatprep.subr.mxu0 0.0
    %106 = vmatpush1.msra.mxu0 0.0
    %107 = vmatprep.subr.mxu0 0.0
    %108 = vmatpush1.msra.mxu0 0.0
    %109 = vmatprep.subr.mxu0 0.0
    %110 = vmatpush1.msra.mxu0 0.0
    %111 = vmatprep.subr.mxu0 0.0
    %112 = vmatpush1.msra.mxu0 0.0
    %113 = vmatprep.subr.mxu0 0.0
    %114 = vmatpush1.msra.mxu0 0.0
    %115 = vmatprep.subr.mxu0 0.0
    %116 = vmatpush1.msra.mxu0 0.0
    %117 = vmatprep.subr.mxu0 0.0
    %118 = vmatpush1.msra.mxu0 0.0
    %119 = vmatprep.subr.mxu0 0.0
    %120 = vmatpush1.msra.mxu0 0.0
    %121 = vmatprep.subr.mxu0 0.0
    %122 = vmatpush1.msra.mxu0 0.0
    %123 = vmatprep.subr.mxu0 0.0
    %124 = vmatpush1.msra.mxu0 0.0
    %125 = vmatprep.subr.mxu0 0.0
    %126 = vmatpush1.msra.mxu0 0.0
    %127 = vmatprep.mubr.f32.mxu0 0.0
    %128 = vmatmul.mubr.f32.gmra.mrb[0].mxu0 %v57
    %v129 = vpop.f32.mrb[0].mxu0
    %v130 = vadd.f32 0.0, %v129
    %v131 = vpop.f32.mrb[0].mxu0
    %132 = vdwg.mxu0
    %133 = vrot.lane.b32.xlu0 %v32, 124
    %v134 = vpop.permute.xlu0 %133
    %vm136 = vcmask 7168
    %137 = vst.msk [vmem:[#allocation5] sm:$0xff] %vm136, %v134
    %s138 = sld [smem:[#allocation2]]
    %v139 = vld [vmem:[%s2 + $0x8] sm:$0x1]
    %140 = vset.pattern.permute.xlu0 4
    %141 = vperm.xlu0 %140, %v32
    %v142 = vpop.permute.xlu0 %141
    %v144 = vlaneseq
    %v145 = vshrl.u32 %v144, 7
    %v146 = vsub.s32 0, %v145
    %v147 = vrot.slane %v33, %v146
    %v148 = vmul.f32 %v142, %v147
    %v149 = vadd.f32 %v130, %v148
    %v150 = vlaneseq
    %v151 = vshrl.u32 %v150, 7
    %v152 = vsub.s32 0, %v151
    %v153 = vrot.slane %v34, %v152
    %v154 = vmul.f32 %v153, 0.0
    %v155 = vadd.f32 %v149, %v154
    %v156 = vlaneseq
    %v157 = vshrl.u32 %v156, 7
    %v158 = vsub.s32 0, %v157
    %v159 = vrot.slane %v139, %v158
    %v160 = vadd.f32 %v155, %v159
    %v161 = vtanh.pop %v160
    %v162 = vpack.c.bf16 %v161, %v161
    %v163 = vlaneseq
    %v164 = vshrl.u32 %v163, 7
    %v165 = vsub.s32 0, %v164
    %v166 = vrot.slane %v35, %v165
    %v183 = vunpack.c.l.b16 %v38
    %v184 = vunpack.c.l.b16 %v39
    %v185 = vunpack.c.l.b16 %v40
    %v186 = vunpack.c.l.b16 %v41
    %v187 = vunpack.c.l.b16 %v42
    %v188 = vunpack.c.l.b16 %v43
    %v189 = vunpack.c.l.b16 %v44
    %v190 = vunpack.c.l.b16 %v45
    %v191 = vunpack.c.l.b16 %v46
    %v192 = vunpack.c.l.b16 %v47
    %v193 = vunpack.c.l.b16 %v48
    %v194 = vunpack.c.l.b16 %v49
    %v195 = vunpack.c.l.b16 %v50
    %v196 = vunpack.c.l.b16 %v51
    %v197 = vunpack.c.l.b16 %v52
    %v198 = vunpack.c.l.b16 %v53
    %v199 = vpack.c.b16 %v184, %v183
    %v200 = vpack.c.b16 %v186, %v185
    %v201 = vpack.c.b16 %v188, %v187
    %v202 = vpack.c.b16 %v190, %v189
    %v203 = vpack.c.b16 %v192, %v191
    %v204 = vpack.c.b16 %v194, %v193
    %v205 = vpack.c.b16 %v196, %v195
    %v206 = vpack.c.b16 %v198, %v197
    %215 = vmatprep.subr.bf16.mxu0 0
    %216 = vmatpush1.bf16.msra.mxu0 %v199
    %217 = vmatprep.subr.bf16.mxu0 0
    %218 = vmatpush1.bf16.msra.mxu0 %v200
    %219 = vmatprep.subr.bf16.mxu0 0
    %220 = vmatpush1.bf16.msra.mxu0 %v201
    %221 = vmatprep.subr.bf16.mxu0 0
    %222 = vmatpush1.bf16.msra.mxu0 %v202
    %223 = vmatprep.subr.bf16.mxu0 0
    %224 = vmatpush1.bf16.msra.mxu0 %v203
    %225 = vmatprep.subr.bf16.mxu0 0
    %226 = vmatpush1.bf16.msra.mxu0 %v204
    %227 = vmatprep.subr.bf16.mxu0 0
    %228 = vmatpush1.bf16.msra.mxu0 %v205
    %229 = vmatprep.subr.bf16.mxu0 0
    %230 = vmatpush1.bf16.msra.mxu0 %v206
    %231 = vmatprep.subr.bf16.mxu0 0
    %232 = vmatpush1.bf16.msra.mxu0 0
    %233 = vmatprep.subr.bf16.mxu0 0
    %234 = vmatpush1.bf16.msra.mxu0 0
    %235 = vmatprep.subr.bf16.mxu0 0
    %236 = vmatpush1.bf16.msra.mxu0 0
    %237 = vmatprep.subr.bf16.mxu0 0
    %238 = vmatpush1.bf16.msra.mxu0 0
    %239 = vmatprep.subr.bf16.mxu0 0
    %240 = vmatpush1.bf16.msra.mxu0 0
    %241 = vmatprep.subr.bf16.mxu0 0
    %242 = vmatpush1.bf16.msra.mxu0 0
    %243 = vmatprep.subr.bf16.mxu0 0
    %244 = vmatpush1.bf16.msra.mxu0 0
    %245 = vmatprep.subr.bf16.mxu0 0
    %246 = vmatpush1.bf16.msra.mxu0 0
    %247 = vmatprep.mubr.bf16.mxu0 0
    %248 = vmatmul.mubr.bf16.gmra.mrb[0].mxu0 %v162
    %v249 = vpop.f32.mrb[0].mxu0
    %v250 = vadd.f32 %v166, %v249
    %v251 = vpop.f32.mrb[0].mxu0
    %v252 = vpop.f32.mrb[0].mxu0
    %v253 = vpop.f32.mrb[0].mxu0
    %254 = vdwg.mxu0
    %v255 = vtanh.pop %v250
    %v256 = vlaneseq
    %v257 = vshrl.u32 %v256, 7
    %v258 = vsub.s32 0, %v257
    %v259 = vrot.slane %v36, %v258
    %v260 = vmul.f32 %v255, %v259
    %261 = vadd.xlane.f32.xlu0 %v260
    %v262 = vpop.xlane.xlu0 %261
    %v263 = vstv %s54
    %v264 = vadd.f32 %v262, %v263
    %v265 = vsub.f32 0.0, %v32
    %v266 = vand.u32 2147483647, %v32
    %vm267 = vcmp.le.f32.partialorder %v266, 0.7853982
    %vm268 = vcmp.lt.s32.totalorder %v32, 0
    %v269 = vand.u32 %v32, 2139095040
    %v270 = vshrl.u32 %v269, 23
    %v271 = vsub.s32 %v270, 127
    %v272 = vand.u32 2147483647, %v32
    %v273 = vand.u32 %v272, 8388607
    %v274 = vor.u32 %v273, 8388608
    %v275 = vsub.s32 0, %v274
    %v276 = vadd.s32 %v271, 1
    %vm277 = vcmp.gt.s32.totalorder %v276, 0
    %v278 = vsel %vm277, %v276, 0
    %v279 = vshrl.u32 %v278, 5
    %v280 = vand.u32 %v278, 31
    %v281 = vsub.s32 32, %v280
    %v282 = vshrl.u32 683565275, %v281
    %v283 = vshll.u32 683565275, %v280
    %v284 = vshrl.u32 2475754826, %v281
    %v285 = vor.u32 %v283, %v284
    %v286 = vshll.u32 2475754826, %v280
    %v287 = vshrl.u32 2131351028, %v281
    %v288 = vor.u32 %v286, %v287
    %v289 = vshll.u32 2131351028, %v280
    %v290 = vshrl.u32 2102212464, %v281
    %v291 = vor.u32 %v289, %v290
    %v292 = vshll.u32 2102212464, %v280
    %v293 = vshrl.u32 920167782, %v281
    %v294 = vor.u32 %v292, %v293
    %v295 = vshll.u32 920167782, %v280
    %v296 = vshrl.u32 1326507024, %v281
    %v297 = vor.u32 %v295, %v296
    %vm298 = vcmp.lt.s32.totalorder %v279, 1
    %vm299 = vcmp.lt.s32.totalorder %v279, 2
    %vm300 = vcmp.lt.s32.totalorder %v279, 3
    %vm301 = vcmp.lt.s32.totalorder %v279, 4
    %v302 = vsel %vm298, %v282, %v285
    %v303 = vsel %vm301, %v291, 2102212464
    %v304 = vsel %vm300, %v288, %v303
    %v305 = vsel %vm299, %v302, %v304
    %v306 = vsel %vm298, %v285, %v288
    %v307 = vsel %vm301, %v294, 920167782
    %v308 = vsel %vm300, %v291, %v307
    %v309 = vsel %vm299, %v306, %v308
    %v310 = vsel %vm298, %v288, %v291
    %v311 = vsel %vm301, %v297, 1326507024
    %v312 = vsel %vm300, %v294, %v311
    %v313 = vsel %vm299, %v310, %v312
    %v314 = vshll.u32 %v274, 8
    %v315 = vmul.u32.u64.compose %v314, %v313
    %v316 = vextract.low.u32 %v315
    %v317 = vextract.high.u32 %v315
    %v318 = vmul.u32.u64.compose %v314, %v309
    %v319 = vextract.low.u32 %v318
    %v320 = vextract.high.u32 %v318
    %v321 = vmul.u32 %v314, %v305
    %v322 = vadd.s32 %v317, %v319
    %vm323 = vc.u32 %v317, %v319
    %v324 = vadd.s32 %v320, 1
    %v325 = vsel %vm323, %v324, %v320
    %v326 = vadd.s32 %v321, %v325
    %v327 = vadd.s32 %v326, 536870912
    %v328 = vshrl.u32 %v327, 30
    %v329 = vshll.u32 %v328, 30
    %v330 = vsub.s32 %v326, %v329
    %vm331 = vcmp.lt.s32.totalorder %v330, 0
    %v332 = vsub.s32 0, %v330
    %v333 = vsel %vm331, %v332, %v330
    %v334 = vclz %v333
    %v335 = vsub.s32 %v334, 2
    %vm336 = vcmp.gt.s32.totalorder 0, %v335
    %v337 = vsel %vm336, 0, %v335
    %v338 = vsub.s32 32, %v337
    %v339 = vshll.u32 %v330, %v337
    %v340 = vshrl.u32 %v322, %v338
    %v341 = vor.u32 %v339, %v340
    %v342 = vsub.s32 4294967266, %v337
    %v343 = vadd.s32 %v342, 127
    %v344 = vshll.u32 %v343, 23
    %v345 = vor.u32 4788187, %v344
    %v346 = vand.u32 2147483647, %v345
    %v348 = vcvt.s32.f32 %v341
    %v349 = vmul.f32 %v348, %v346
    %v350 = vxor.u32 %v349, 2147483648
    %v351 = vsel %vm268, %v350, %v349
    %v352 = vsub.s32 4, %v328
    %v353 = vsel %vm268, %v352, %v328
    %v354 = vsel %vm267, %v32, %v351
    %v355 = vsel %vm267, 0, %v353
    %v356 = vcosq.f32.pop %v354
    %v357 = vsinq.f32.pop %v354
    %vm358 = vweird.f32 %v32
    %v359 = vadd.s32 %v355, 3
    %v360 = vand.u32 %v359, 3
    %vm361 = vcmp.lt.s32.totalorder %v360, 2
    %vm362 = vcmp.eq.s32.totalorder %v360, 0
    %v363 = vxor.u32 %v357, 2147483648
    %v364 = vsel %vm362, %v356, %v363
    %vm365 = vcmp.eq.s32.totalorder %v360, 2
    %v366 = vxor.u32 %v356, 2147483648
    %v367 = vsel %vm365, %v366, %v357
    %v368 = vsel %vm361, %v364, %v367
    %v369 = vsel %vm358, nan, %v368
    %371 = vrot.lane.b32.xlu0 %v369, 126
    %v372 = vpop.permute.xlu0 %371
    %v374 = vmul.f32 %v265, %v372
    %v375 = vadd.f32 %v374, %v264
    %v376 = vstv %s138
    %v377 = vmul.f32 %v376, 0.0
    %v378 = vadd.f32 %v32, %v377
    %v379 = vmul.f32 %v376, %v375
    %v380 = vadd.f32 %v379, 0.0
    %382 = vrot.lane.b32.xlu0 %v378, 125
    %v383 = vpop.permute.xlu0 %382
    %vm385 = vcmask 15368
    %386 = vst.msk [vmem:[#allocation5] sm:$0xff] %vm385, %v383
    %s387 = sld [smem:[#allocation2 + $0x1]]
    %v388 = vld [vmem:[%s2 + $0x9] sm:$0x1]
    %389 = vset.pattern.permute.xlu0 4
    %390 = vperm.xlu0 %389, %v378
    %v391 = vpop.permute.xlu0 %390
    %v393 = vmul.f32 %v391, %v147
    %v394 = vadd.f32 %v130, %v393
    %396 = vset.pattern.permute.xlu0 2
    %397 = vperm.xlu0 %396, %v380
    %v398 = vpop.permute.xlu0 %397
    %v400 = vmul.f32 %v398, %v153
    %v401 = vadd.f32 %v394, %v400
    %v402 = vlaneseq
    %v403 = vshrl.u32 %v402, 7
    %v404 = vsub.s32 0, %v403
    %v405 = vrot.slane %v388, %v404
    %v406 = vadd.f32 %v401, %v405
    %v407 = vtanh.pop %v406
    %v408 = vpack.c.bf16 %v407, %v407
    %409 = vmatprep.subr.bf16.mxu0 0
    %410 = vmatpush1.bf16.msra.mxu0 %v199
    %411 = vmatprep.subr.bf16.mxu0 0
    %412 = vmatpush1.bf16.msra.mxu0 %v200
    %413 = vmatprep.subr.bf16.mxu0 0
    %414 = vmatpush1.bf16.msra.mxu0 %v201
    %415 = vmatprep.subr.bf16.mxu0 0
    %416 = vmatpush1.bf16.msra.mxu0 %v202
    %417 = vmatprep.subr.bf16.mxu0 0
    %418 = vmatpush1.bf16.msra.mxu0 %v203
    %419 = vmatprep.subr.bf16.mxu0 0
    %420 = vmatpush1.bf16.msra.mxu0 %v204
    %421 = vmatprep.subr.bf16.mxu0 0
    %422 = vmatpush1.bf16.msra.mxu0 %v205
    %423 = vmatprep.subr.bf16.mxu0 0
    %424 = vmatpush1.bf16.msra.mxu0 %v206
    %425 = vmatprep.subr.bf16.mxu0 0
    %426 = vmatpush1.bf16.msra.mxu0 0
    %427 = vmatprep.subr.bf16.mxu0 0
    %428 = vmatpush1.bf16.msra.mxu0 0
    %429 = vmatprep.subr.bf16.mxu0 0
    %430 = vmatpush1.bf16.msra.mxu0 0
    %431 = vmatprep.subr.bf16.mxu0 0
    %432 = vmatpush1.bf16.msra.mxu0 0
    %433 = vmatprep.subr.bf16.mxu0 0
    %434 = vmatpush1.bf16.msra.mxu0 0
    %435 = vmatprep.subr.bf16.mxu0 0
    %436 = vmatpush1.bf16.msra.mxu0 0
    %437 = vmatprep.subr.bf16.mxu0 0
    %438 = vmatpush1.bf16.msra.mxu0 0
    %439 = vmatprep.subr.bf16.mxu0 0
    %440 = vmatpush1.bf16.msra.mxu0 0
    %441 = vmatprep.mubr.bf16.mxu0 0
    %442 = vmatmul.mubr.bf16.gmra.mrb[0].mxu0 %v408
    %v443 = vpop.f32.mrb[0].mxu0
    %v444 = vadd.f32 %v166, %v443
    %v445 = vpop.f32.mrb[0].mxu0
    %v446 = vpop.f32.mrb[0].mxu0
    %v447 = vpop.f32.mrb[0].mxu0
    %448 = vdwg.mxu0
    %v449 = vtanh.pop %v444
    %v450 = vmul.f32 %v449, %v259
    %451 = vadd.xlane.f32.xlu0 %v450
    %v452 = vpop.xlane.xlu0 %451
    %v453 = vadd.f32 %v452, %v263
    %v454 = vand.u32 2147483647, %v378
    %vm455 = vcmp.le.f32.partialorder %v454, 0.7853982
    %vm456 = vcmp.lt.s32.totalorder %v378, 0
    %v457 = vand.u32 %v378, 2139095040
    %v458 = vshrl.u32 %v457, 23
    %v459 = vsub.s32 %v458, 127
    %v460 = vand.u32 2147483647, %v378
    %v461 = vand.u32 %v460, 8388607
    %v462 = vor.u32 %v461, 8388608
    %v463 = vsub.s32 0, %v462
    %v464 = vadd.s32 %v459, 1
    %vm465 = vcmp.gt.s32.totalorder %v464, 0
    %v466 = vsel %vm465, %v464, 0
    %v467 = vshrl.u32 %v466, 5
    %v468 = vand.u32 %v466, 31
    %v469 = vsub.s32 32, %v468
    %v470 = vshrl.u32 683565275, %v469
    %v471 = vshll.u32 683565275, %v468
    %v472 = vshrl.u32 2475754826, %v469
    %v473 = vor.u32 %v471, %v472
    %v474 = vshll.u32 2475754826, %v468
    %v475 = vshrl.u32 2131351028, %v469
    %v476 = vor.u32 %v474, %v475
    %v477 = vshll.u32 2131351028, %v468
    %v478 = vshrl.u32 2102212464, %v469
    %v479 = vor.u32 %v477, %v478
    %v480 = vshll.u32 2102212464, %v468
    %v481 = vshrl.u32 920167782, %v469
    %v482 = vor.u32 %v480, %v481
    %v483 = vshll.u32 920167782, %v468
    %v484 = vshrl.u32 1326507024, %v469
    %v485 = vor.u32 %v483, %v484
    %vm486 = vcmp.lt.s32.totalorder %v467, 1
    %vm487 = vcmp.lt.s32.totalorder %v467, 2
    %vm488 = vcmp.lt.s32.totalorder %v467, 3
    %vm489 = vcmp.lt.s32.totalorder %v467, 4
    %v490 = vsel %vm486, %v470, %v473
    %v491 = vsel %vm489, %v479, 2102212464
    %v492 = vsel %vm488, %v476, %v491
    %v493 = vsel %vm487, %v490, %v492
    %v494 = vsel %vm486, %v473, %v476
    %v495 = vsel %vm489, %v482, 920167782
    %v496 = vsel %vm488, %v479, %v495
    %v497 = vsel %vm487, %v494, %v496
    %v498 = vsel %vm486, %v476, %v479
    %v499 = vsel %vm489, %v485, 1326507024
    %v500 = vsel %vm488, %v482, %v499
    %v501 = vsel %vm487, %v498, %v500
    %v502 = vshll.u32 %v462, 8
    %v503 = vmul.u32.u64.compose %v502, %v501
    %v504 = vextract.low.u32 %v503
    %v505 = vextract.high.u32 %v503
    %v506 = vmul.u32.u64.compose %v502, %v497
    %v507 = vextract.low.u32 %v506
    %v508 = vextract.high.u32 %v506
    %v509 = vmul.u32 %v502, %v493
    %v510 = vadd.s32 %v505, %v507
    %vm511 = vc.u32 %v505, %v507
    %v512 = vadd.s32 %v508, 1
    %v513 = vsel %vm511, %v512, %v508
    %v514 = vadd.s32 %v509, %v513
    %v515 = vadd.s32 %v514, 536870912
    %v516 = vshrl.u32 %v515, 30
    %v517 = vshll.u32 %v516, 30
    %v518 = vsub.s32 %v514, %v517
    %vm519 = vcmp.lt.s32.totalorder %v518, 0
    %v520 = vsub.s32 0, %v518
    %v521 = vsel %vm519, %v520, %v518
    %v522 = vclz %v521
    %v523 = vsub.s32 %v522, 2
    %vm524 = vcmp.gt.s32.totalorder 0, %v523
    %v525 = vsel %vm524, 0, %v523
    %v526 = vsub.s32 32, %v525
    %v527 = vshll.u32 %v518, %v525
    %v528 = vshrl.u32 %v510, %v526
    %v529 = vor.u32 %v527, %v528
    %v530 = vsub.s32 4294967266, %v525
    %v531 = vadd.s32 %v530, 127
    %v532 = vshll.u32 %v531, 23
    %v533 = vor.u32 4788187, %v532
    %v534 = vand.u32 2147483647, %v533
    %v536 = vcvt.s32.f32 %v529
    %v537 = vmul.f32 %v536, %v534
    %v538 = vxor.u32 %v537, 2147483648
    %v539 = vsel %vm456, %v538, %v537
    %v540 = vsub.s32 4, %v516
    %v541 = vsel %vm456, %v540, %v516
    %v542 = vsel %vm455, %v378, %v539
    %v543 = vsel %vm455, 0, %v541
    %v544 = vcosq.f32.pop %v542
    %v545 = vsinq.f32.pop %v542
    %vm546 = vweird.f32 %v378
    %v547 = vadd.s32 %v543, 3
    %v548 = vand.u32 %v547, 3
    %vm549 = vcmp.lt.s32.totalorder %v548, 2
    %vm550 = vcmp.eq.s32.totalorder %v548, 0
    %v551 = vxor.u32 %v545, 2147483648
    %v552 = vsel %vm550, %v544, %v551
    %vm553 = vcmp.eq.s32.totalorder %v548, 2
    %v554 = vxor.u32 %v544, 2147483648
    %v555 = vsel %vm553, %v554, %v545
    %v556 = vsel %vm549, %v552, %v555
    %v557 = vsel %vm546, nan, %v556
    %559 = vrot.lane.b32.xlu0 %v557, 126
    %v560 = vpop.permute.xlu0 %559
    %v562 = vmul.f32 %v265, %v560
    %v563 = vadd.f32 %v562, %v453
    %v564 = vstv %s387
    %v565 = vmul.f32 %v564, %v380
    %567 = vrot.lane.b32.xlu0 %v565, 2
    %v568 = vpop.permute.xlu0 %567
    %v570 = vadd.f32 %v378, %v568
    %v571 = vmul.f32 %v564, %v563
    %v572 = vadd.f32 %v380, %v571
    %574 = vrot.lane.b32.xlu0 %v570, 126
    %v575 = vpop.permute.xlu0 %574
    %vm577 = vcmask 23568
    %578 = vst.msk [vmem:[#allocation5] sm:$0xff] %vm577, %v575
    %s579 = sld [smem:[#allocation2 + $0x2]]
    %v580 = vld [vmem:[%s2 + $0xa] sm:$0x1]
    %581 = vset.pattern.permute.xlu0 4
    %582 = vperm.xlu0 %581, %v570
    %v583 = vpop.permute.xlu0 %582
    %v585 = vmul.f32 %v583, %v147
    %v586 = vadd.f32 %v130, %v585
    %588 = vset.pattern.permute.xlu0 2
    %589 = vperm.xlu0 %588, %v572
    %v590 = vpop.permute.xlu0 %589
    %v592 = vmul.f32 %v590, %v153
    %v593 = vadd.f32 %v586, %v592
    %v594 = vlaneseq
    %v595 = vshrl.u32 %v594, 7
    %v596 = vsub.s32 0, %v595
    %v597 = vrot.slane %v580, %v596
    %v598 = vadd.f32 %v593, %v597
    %v599 = vtanh.pop %v598
    %v600 = vpack.c.bf16 %v599, %v599
    %601 = vmatprep.subr.bf16.mxu0 0
    %602 = vmatpush1.bf16.msra.mxu0 %v199
    %603 = vmatprep.subr.bf16.mxu0 0
    %604 = vmatpush1.bf16.msra.mxu0 %v200
    %605 = vmatprep.subr.bf16.mxu0 0
    %606 = vmatpush1.bf16.msra.mxu0 %v201
    %607 = vmatprep.subr.bf16.mxu0 0
    %608 = vmatpush1.bf16.msra.mxu0 %v202
    %609 = vmatprep.subr.bf16.mxu0 0
    %610 = vmatpush1.bf16.msra.mxu0 %v203
    %611 = vmatprep.subr.bf16.mxu0 0
    %612 = vmatpush1.bf16.msra.mxu0 %v204
    %613 = vmatprep.subr.bf16.mxu0 0
    %614 = vmatpush1.bf16.msra.mxu0 %v205
    %615 = vmatprep.subr.bf16.mxu0 0
    %616 = vmatpush1.bf16.msra.mxu0 %v206
    %617 = vmatprep.subr.bf16.mxu0 0
    %618 = vmatpush1.bf16.msra.mxu0 0
    %619 = vmatprep.subr.bf16.mxu0 0
    %620 = vmatpush1.bf16.msra.mxu0 0
    %621 = vmatprep.subr.bf16.mxu0 0
    %622 = vmatpush1.bf16.msra.mxu0 0
    %623 = vmatprep.subr.bf16.mxu0 0
    %624 = vmatpush1.bf16.msra.mxu0 0
    %625 = vmatprep.subr.bf16.mxu0 0
    %626 = vmatpush1.bf16.msra.mxu0 0
    %627 = vmatprep.subr.bf16.mxu0 0
    %628 = vmatpush1.bf16.msra.mxu0 0
    %629 = vmatprep.subr.bf16.mxu0 0
    %630 = vmatpush1.bf16.msra.mxu0 0
    %631 = vmatprep.subr.bf16.mxu0 0
    %632 = vmatpush1.bf16.msra.mxu0 0
    %633 = vmatprep.mubr.bf16.mxu0 0
    %634 = vmatmul.mubr.bf16.gmra.mrb[0].mxu0 %v600
    %v635 = vpop.f32.mrb[0].mxu0
    %v636 = vadd.f32 %v166, %v635
    %v637 = vpop.f32.mrb[0].mxu0
    %v638 = vpop.f32.mrb[0].mxu0
    %v639 = vpop.f32.mrb[0].mxu0
    %640 = vdwg.mxu0
    %v641 = vtanh.pop %v636
    %v642 = vmul.f32 %v641, %v259
    %643 = vadd.xlane.f32.xlu0 %v642
    %v644 = vpop.xlane.xlu0 %643
    %v645 = vadd.f32 %v644, %v263
    %v646 = vand.u32 2147483647, %v570
    %vm647 = vcmp.le.f32.partialorder %v646, 0.7853982
    %vm648 = vcmp.lt.s32.totalorder %v570, 0
    %v649 = vand.u32 %v570, 2139095040
    %v650 = vshrl.u32 %v649, 23
    %v651 = vsub.s32 %v650, 127
    %v652 = vand.u32 2147483647, %v570
    %v653 = vand.u32 %v652, 8388607
    %v654 = vor.u32 %v653, 8388608
    %v655 = vsub.s32 0, %v654
    %v656 = vadd.s32 %v651, 1
    %vm657 = vcmp.gt.s32.totalorder %v656, 0
    %v658 = vsel %vm657, %v656, 0
    %v659 = vshrl.u32 %v658, 5
    %v660 = vand.u32 %v658, 31
    %v661 = vsub.s32 32, %v660
    %v662 = vshrl.u32 683565275, %v661
    %v663 = vshll.u32 683565275, %v660
    %v664 = vshrl.u32 2475754826, %v661
    %v665 = vor.u32 %v663, %v664
    %v666 = vshll.u32 2475754826, %v660
    %v667 = vshrl.u32 2131351028, %v661
    %v668 = vor.u32 %v666, %v667
    %v669 = vshll.u32 2131351028, %v660
    %v670 = vshrl.u32 2102212464, %v661
    %v671 = vor.u32 %v669, %v670
    %v672 = vshll.u32 2102212464, %v660
    %v673 = vshrl.u32 920167782, %v661
    %v674 = vor.u32 %v672, %v673
    %v675 = vshll.u32 920167782, %v660
    %v676 = vshrl.u32 1326507024, %v661
    %v677 = vor.u32 %v675, %v676
    %vm678 = vcmp.lt.s32.totalorder %v659, 1
    %vm679 = vcmp.lt.s32.totalorder %v659, 2
    %vm680 = vcmp.lt.s32.totalorder %v659, 3
    %vm681 = vcmp.lt.s32.totalorder %v659, 4
    %v682 = vsel %vm678, %v662, %v665
    %v683 = vsel %vm681, %v671, 2102212464
    %v684 = vsel %vm680, %v668, %v683
    %v685 = vsel %vm679, %v682, %v684
    %v686 = vsel %vm678, %v665, %v668
    %v687 = vsel %vm681, %v674, 920167782
    %v688 = vsel %vm680, %v671, %v687
    %v689 = vsel %vm679, %v686, %v688
    %v690 = vsel %vm678, %v668, %v671
    %v691 = vsel %vm681, %v677, 1326507024
    %v692 = vsel %vm680, %v674, %v691
    %v693 = vsel %vm679, %v690, %v692
    %v694 = vshll.u32 %v654, 8
    %v695 = vmul.u32.u64.compose %v694, %v693
    %v696 = vextract.low.u32 %v695
    %v697 = vextract.high.u32 %v695
    %v698 = vmul.u32.u64.compose %v694, %v689
    %v699 = vextract.low.u32 %v698
    %v700 = vextract.high.u32 %v698
    %v701 = vmul.u32 %v694, %v685
    %v702 = vadd.s32 %v697, %v699
    %vm703 = vc.u32 %v697, %v699
    %v704 = vadd.s32 %v700, 1
    %v705 = vsel %vm703, %v704, %v700
    %v706 = vadd.s32 %v701, %v705
    %v707 = vadd.s32 %v706, 536870912
    %v708 = vshrl.u32 %v707, 30
    %v709 = vshll.u32 %v708, 30
    %v710 = vsub.s32 %v706, %v709
    %vm711 = vcmp.lt.s32.totalorder %v710, 0
    %v712 = vsub.s32 0, %v710
    %v713 = vsel %vm711, %v712, %v710
    %v714 = vclz %v713
    %v715 = vsub.s32 %v714, 2
    %vm716 = vcmp.gt.s32.totalorder 0, %v715
    %v717 = vsel %vm716, 0, %v715
    %v718 = vsub.s32 32, %v717
    %v719 = vshll.u32 %v710, %v717
    %v720 = vshrl.u32 %v702, %v718
    %v721 = vor.u32 %v719, %v720
    %v722 = vsub.s32 4294967266, %v717
    %v723 = vadd.s32 %v722, 127
    %v724 = vshll.u32 %v723, 23
    %v725 = vor.u32 4788187, %v724
    %v726 = vand.u32 2147483647, %v725
    %v728 = vcvt.s32.f32 %v721
    %v729 = vmul.f32 %v728, %v726
    %v730 = vxor.u32 %v729, 2147483648
    %v731 = vsel %vm648, %v730, %v729
    %v732 = vsub.s32 4, %v708
    %v733 = vsel %vm648, %v732, %v708
    %v734 = vsel %vm647, %v570, %v731
    %v735 = vsel %vm647, 0, %v733
    %v736 = vcosq.f32.pop %v734
    %v737 = vsinq.f32.pop %v734
    %vm738 = vweird.f32 %v570
    %v739 = vadd.s32 %v735, 3
    %v740 = vand.u32 %v739, 3
    %vm741 = vcmp.lt.s32.totalorder %v740, 2
    %vm742 = vcmp.eq.s32.totalorder %v740, 0
    %v743 = vxor.u32 %v737, 2147483648
    %v744 = vsel %vm742, %v736, %v743
    %vm745 = vcmp.eq.s32.totalorder %v740, 2
    %v746 = vxor.u32 %v736, 2147483648
    %v747 = vsel %vm745, %v746, %v737
    %v748 = vsel %vm741, %v744, %v747
    %v749 = vsel %vm738, nan, %v748
    %751 = vrot.lane.b32.xlu0 %v749, 126
    %v752 = vpop.permute.xlu0 %751
    %v754 = vmul.f32 %v265, %v752
    %v755 = vadd.f32 %v754, %v645
    %v756 = vstv %s579
    %v757 = vmul.f32 %v756, %v572
    %759 = vrot.lane.b32.xlu0 %v757, 2
    %v760 = vpop.permute.xlu0 %759
    %v762 = vadd.f32 %v570, %v760
    %v763 = vmul.f32 %v756, %v755
    %v764 = vadd.f32 %v572, %v763
    %766 = vrot.lane.b32.xlu0 %v762, 127
    %v767 = vpop.permute.xlu0 %766
    %vm769 = vcmask 31768
    %770 = vst.msk [vmem:[#allocation5] sm:$0xff] %vm769, %v767
    %s771 = sld [smem:[#allocation2 + $0x3]]
    %v772 = vld [vmem:[%s2 + $0xb] sm:$0x1]
    %773 = vset.pattern.permute.xlu0 4
    %774 = vperm.xlu0 %773, %v762
    %v775 = vpop.permute.xlu0 %774
    %v777 = vmul.f32 %v775, %v147
    %v778 = vadd.f32 %v130, %v777
    %780 = vset.pattern.permute.xlu0 2
    %781 = vperm.xlu0 %780, %v764
    %v782 = vpop.permute.xlu0 %781
    %v784 = vmul.f32 %v782, %v153
    %v785 = vadd.f32 %v778, %v784
    %v786 = vlaneseq
    %v787 = vshrl.u32 %v786, 7
    %v788 = vsub.s32 0, %v787
    %v789 = vrot.slane %v772, %v788
    %v790 = vadd.f32 %v785, %v789
    %v791 = vtanh.pop %v790
    %v792 = vpack.c.bf16 %v791, %v791
    %793 = vmatprep.subr.bf16.mxu0 0
    %794 = vmatpush1.bf16.msra.mxu0 %v199
    %795 = vmatprep.subr.bf16.mxu0 0
    %796 = vmatpush1.bf16.msra.mxu0 %v200
    %797 = vmatprep.subr.bf16.mxu0 0
    %798 = vmatpush1.bf16.msra.mxu0 %v201
    %799 = vmatprep.subr.bf16.mxu0 0
    %800 = vmatpush1.bf16.msra.mxu0 %v202
    %801 = vmatprep.subr.bf16.mxu0 0
    %802 = vmatpush1.bf16.msra.mxu0 %v203
    %803 = vmatprep.subr.bf16.mxu0 0
    %804 = vmatpush1.bf16.msra.mxu0 %v204
    %805 = vmatprep.subr.bf16.mxu0 0
    %806 = vmatpush1.bf16.msra.mxu0 %v205
    %807 = vmatprep.subr.bf16.mxu0 0
    %808 = vmatpush1.bf16.msra.mxu0 %v206
    %809 = vmatprep.subr.bf16.mxu0 0
    %810 = vmatpush1.bf16.msra.mxu0 0
    %811 = vmatprep.subr.bf16.mxu0 0
    %812 = vmatpush1.bf16.msra.mxu0 0
    %813 = vmatprep.subr.bf16.mxu0 0
    %814 = vmatpush1.bf16.msra.mxu0 0
    %815 = vmatprep.subr.bf16.mxu0 0
    %816 = vmatpush1.bf16.msra.mxu0 0
    %817 = vmatprep.subr.bf16.mxu0 0
    %818 = vmatpush1.bf16.msra.mxu0 0
    %819 = vmatprep.subr.bf16.mxu0 0
    %820 = vmatpush1.bf16.msra.mxu0 0
    %821 = vmatprep.subr.bf16.mxu0 0
    %822 = vmatpush1.bf16.msra.mxu0 0
    %823 = vmatprep.subr.bf16.mxu0 0
    %824 = vmatpush1.bf16.msra.mxu0 0
    %825 = vmatprep.mubr.bf16.mxu0 0
    %826 = vmatmul.mubr.bf16.gmra.mrb[0].mxu0 %v792
    %v827 = vpop.f32.mrb[0].mxu0
    %v828 = vadd.f32 %v166, %v827
    %v829 = vpop.f32.mrb[0].mxu0
    %v830 = vpop.f32.mrb[0].mxu0
    %v831 = vpop.f32.mrb[0].mxu0
    %832 = vdwg.mxu0
    %v833 = vtanh.pop %v828
    %v834 = vmul.f32 %v833, %v259
    %835 = vadd.xlane.f32.xlu0 %v834
    %v836 = vpop.xlane.xlu0 %835
    %v837 = vadd.f32 %v836, %v263
    %v838 = vand.u32 2147483647, %v762
    %vm839 = vcmp.le.f32.partialorder %v838, 0.7853982
    %vm840 = vcmp.lt.s32.totalorder %v762, 0
    %v841 = vand.u32 %v762, 2139095040
    %v842 = vshrl.u32 %v841, 23
    %v843 = vsub.s32 %v842, 127
    %v844 = vand.u32 2147483647, %v762
    %v845 = vand.u32 %v844, 8388607
    %v846 = vor.u32 %v845, 8388608
    %v847 = vsub.s32 0, %v846
    %v848 = vadd.s32 %v843, 1
    %vm849 = vcmp.gt.s32.totalorder %v848, 0
    %v850 = vsel %vm849, %v848, 0
    %v851 = vshrl.u32 %v850, 5
    %v852 = vand.u32 %v850, 31
    %v853 = vsub.s32 32, %v852
    %v854 = vshrl.u32 683565275, %v853
    %v855 = vshll.u32 683565275, %v852
    %v856 = vshrl.u32 2475754826, %v853
    %v857 = vor.u32 %v855, %v856
    %v858 = vshll.u32 2475754826, %v852
    %v859 = vshrl.u32 2131351028, %v853
    %v860 = vor.u32 %v858, %v859
    %v861 = vshll.u32 2131351028, %v852
    %v862 = vshrl.u32 2102212464, %v853
    %v863 = vor.u32 %v861, %v862
    %v864 = vshll.u32 2102212464, %v852
    %v865 = vshrl.u32 920167782, %v853
    %v866 = vor.u32 %v864, %v865
    %v867 = vshll.u32 920167782, %v852
    %v868 = vshrl.u32 1326507024, %v853
    %v869 = vor.u32 %v867, %v868
    %vm870 = vcmp.lt.s32.totalorder %v851, 1
    %vm871 = vcmp.lt.s32.totalorder %v851, 2
    %vm872 = vcmp.lt.s32.totalorder %v851, 3
    %vm873 = vcmp.lt.s32.totalorder %v851, 4
    %v874 = vsel %vm870, %v854, %v857
    %v875 = vsel %vm873, %v863, 2102212464
    %v876 = vsel %vm872, %v860, %v875
    %v877 = vsel %vm871, %v874, %v876
    %v878 = vsel %vm870, %v857, %v860
    %v879 = vsel %vm873, %v866, 920167782
    %v880 = vsel %vm872, %v863, %v879
    %v881 = vsel %vm871, %v878, %v880
    %v882 = vsel %vm870, %v860, %v863
    %v883 = vsel %vm873, %v869, 1326507024
    %v884 = vsel %vm872, %v866, %v883
    %v885 = vsel %vm871, %v882, %v884
    %v886 = vshll.u32 %v846, 8
    %v887 = vmul.u32.u64.compose %v886, %v885
    %v888 = vextract.low.u32 %v887
    %v889 = vextract.high.u32 %v887
    %v890 = vmul.u32.u64.compose %v886, %v881
    %v891 = vextract.low.u32 %v890
    %v892 = vextract.high.u32 %v890
    %v893 = vmul.u32 %v886, %v877
    %v894 = vadd.s32 %v889, %v891
    %vm895 = vc.u32 %v889, %v891
    %v896 = vadd.s32 %v892, 1
    %v897 = vsel %vm895, %v896, %v892
    %v898 = vadd.s32 %v893, %v897
    %v899 = vadd.s32 %v898, 536870912
    %v900 = vshrl.u32 %v899, 30
    %v901 = vshll.u32 %v900, 30
    %v902 = vsub.s32 %v898, %v901
    %vm903 = vcmp.lt.s32.totalorder %v902, 0
    %v904 = vsub.s32 0, %v902
    %v905 = vsel %vm903, %v904, %v902
    %v906 = vclz %v905
    %v907 = vsub.s32 %v906, 2
    %vm908 = vcmp.gt.s32.totalorder 0, %v907
    %v909 = vsel %vm908, 0, %v907
    %v910 = vsub.s32 32, %v909
    %v911 = vshll.u32 %v902, %v909
    %v912 = vshrl.u32 %v894, %v910
    %v913 = vor.u32 %v911, %v912
    %v914 = vsub.s32 4294967266, %v909
    %v915 = vadd.s32 %v914, 127
    %v916 = vshll.u32 %v915, 23
    %v917 = vor.u32 4788187, %v916
    %v918 = vand.u32 2147483647, %v917
    %v920 = vcvt.s32.f32 %v913
    %v921 = vmul.f32 %v920, %v918
    %v922 = vxor.u32 %v921, 2147483648
    %v923 = vsel %vm840, %v922, %v921
    %v924 = vsub.s32 4, %v900
    %v925 = vsel %vm840, %v924, %v900
    %v926 = vsel %vm839, %v762, %v923
    %v927 = vsel %vm839, 0, %v925
    %v928 = vcosq.f32.pop %v926
    %v929 = vsinq.f32.pop %v926
    %vm930 = vweird.f32 %v762
    %v931 = vadd.s32 %v927, 3
    %v932 = vand.u32 %v931, 3
    %vm933 = vcmp.lt.s32.totalorder %v932, 2
    %vm934 = vcmp.eq.s32.totalorder %v932, 0
    %v935 = vxor.u32 %v929, 2147483648
    %v936 = vsel %vm934, %v928, %v935
    %vm937 = vcmp.eq.s32.totalorder %v932, 2
    %v938 = vxor.u32 %v928, 2147483648
    %v939 = vsel %vm937, %v938, %v929
    %v940 = vsel %vm933, %v936, %v939
    %v941 = vsel %vm930, nan, %v940
    %943 = vrot.lane.b32.xlu0 %v941, 126
    %v944 = vpop.permute.xlu0 %943
    %v946 = vmul.f32 %v265, %v944
    %v947 = vadd.f32 %v946, %v837
    %v948 = vstv %s771
    %v949 = vmul.f32 %v948, %v764
    %951 = vrot.lane.b32.xlu0 %v949, 2
    %v952 = vpop.permute.xlu0 %951
    %v954 = vadd.f32 %v762, %v952
    %v955 = vmul.f32 %v948, %v947
    %v956 = vadd.f32 %v764, %v955
    %vm957 = vcmask 39968
    %958 = vst.msk [vmem:[#allocation5] sm:$0xff] %vm957, %v954
    %s959 = sld [smem:[#allocation2 + $0x4]]
    %v960 = vld [vmem:[%s2 + $0xc] sm:$0x1]
    %962 = vset.pattern.permute.xlu0 4
    %963 = vperm.xlu0 %962, %v954
    %v964 = vpop.permute.xlu0 %963
    %v966 = vmul.f32 %v964, %v147
    %v967 = vadd.f32 %v130, %v966
    %969 = vset.pattern.permute.xlu0 2
    %970 = vperm.xlu0 %969, %v956
    %v971 = vpop.permute.xlu0 %970
    %v973 = vmul.f32 %v971, %v153
    %v974 = vadd.f32 %v967, %v973
    %v975 = vlaneseq
    %v976 = vshrl.u32 %v975, 7
    %v977 = vsub.s32 0, %v976
    %v978 = vrot.slane %v960, %v977
    %v979 = vadd.f32 %v974, %v978
    %v980 = vtanh.pop %v979
    %v981 = vpack.c.bf16 %v980, %v980
    %982 = vmatprep.subr.bf16.mxu0 0
    %983 = vmatpush1.bf16.msra.mxu0 %v199
    %984 = vmatprep.subr.bf16.mxu0 0
    %985 = vmatpush1.bf16.msra.mxu0 %v200
    %986 = vmatprep.subr.bf16.mxu0 0
    %987 = vmatpush1.bf16.msra.mxu0 %v201
    %988 = vmatprep.subr.bf16.mxu0 0
    %989 = vmatpush1.bf16.msra.mxu0 %v202
    %990 = vmatprep.subr.bf16.mxu0 0
    %991 = vmatpush1.bf16.msra.mxu0 %v203
    %992 = vmatprep.subr.bf16.mxu0 0
    %993 = vmatpush1.bf16.msra.mxu0 %v204
    %994 = vmatprep.subr.bf16.mxu0 0
    %995 = vmatpush1.bf16.msra.mxu0 %v205
    %996 = vmatprep.subr.bf16.mxu0 0
    %997 = vmatpush1.bf16.msra.mxu0 %v206
    %998 = vmatprep.subr.bf16.mxu0 0
    %999 = vmatpush1.bf16.msra.mxu0 0
    %1000 = vmatprep.subr.bf16.mxu0 0
    %1001 = vmatpush1.bf16.msra.mxu0 0
    %1002 = vmatprep.subr.bf16.mxu0 0
    %1003 = vmatpush1.bf16.msra.mxu0 0
    %1004 = vmatprep.subr.bf16.mxu0 0
    %1005 = vmatpush1.bf16.msra.mxu0 0
    %1006 = vmatprep.subr.bf16.mxu0 0
    %1007 = vmatpush1.bf16.msra.mxu0 0
    %1008 = vmatprep.subr.bf16.mxu0 0
    %1009 = vmatpush1.bf16.msra.mxu0 0
    %1010 = vmatprep.subr.bf16.mxu0 0
    %1011 = vmatpush1.bf16.msra.mxu0 0
    %1012 = vmatprep.subr.bf16.mxu0 0
    %1013 = vmatpush1.bf16.msra.mxu0 0
    %1014 = vmatprep.mubr.bf16.mxu0 0
    %1015 = vmatmul.mubr.bf16.gmra.mrb[0].mxu0 %v981
    %v1016 = vpop.f32.mrb[0].mxu0
    %v1017 = vadd.f32 %v166, %v1016
    %v1018 = vpop.f32.mrb[0].mxu0
    %v1019 = vpop.f32.mrb[0].mxu0
    %v1020 = vpop.f32.mrb[0].mxu0
    %1021 = vdwg.mxu0
    %v1022 = vtanh.pop %v1017
    %v1023 = vmul.f32 %v1022, %v259
    %1024 = vadd.xlane.f32.xlu0 %v1023
    %v1025 = vpop.xlane.xlu0 %1024
    %v1026 = vadd.f32 %v1025, %v263
    %v1027 = vand.u32 2147483647, %v954
    %vm1028 = vcmp.le.f32.partialorder %v1027, 0.7853982
    %vm1029 = vcmp.lt.s32.totalorder %v954, 0
    %v1030 = vand.u32 %v954, 2139095040
    %v1031 = vshrl.u32 %v1030, 23
    %v1032 = vsub.s32 %v1031, 127
    %v1033 = vand.u32 2147483647, %v954
    %v1034 = vand.u32 %v1033, 8388607
    %v1035 = vor.u32 %v1034, 8388608
    %v1036 = vsub.s32 0, %v1035
    %v1037 = vadd.s32 %v1032, 1
    %vm1038 = vcmp.gt.s32.totalorder %v1037, 0
    %v1039 = vsel %vm1038, %v1037, 0
    %v1040 = vshrl.u32 %v1039, 5
    %v1041 = vand.u32 %v1039, 31
    %v1042 = vsub.s32 32, %v1041
    %v1043 = vshrl.u32 683565275, %v1042
    %v1044 = vshll.u32 683565275, %v1041
    %v1045 = vshrl.u32 2475754826, %v1042
    %v1046 = vor.u32 %v1044, %v1045
    %v1047 = vshll.u32 2475754826, %v1041
    %v1048 = vshrl.u32 2131351028, %v1042
    %v1049 = vor.u32 %v1047, %v1048
    %v1050 = vshll.u32 2131351028, %v1041
    %v1051 = vshrl.u32 2102212464, %v1042
    %v1052 = vor.u32 %v1050, %v1051
    %v1053 = vshll.u32 2102212464, %v1041
    %v1054 = vshrl.u32 920167782, %v1042
    %v1055 = vor.u32 %v1053, %v1054
    %v1056 = vshll.u32 920167782, %v1041
    %v1057 = vshrl.u32 1326507024, %v1042
    %v1058 = vor.u32 %v1056, %v1057
    %vm1059 = vcmp.lt.s32.totalorder %v1040, 1
    %vm1060 = vcmp.lt.s32.totalorder %v1040, 2
    %vm1061 = vcmp.lt.s32.totalorder %v1040, 3
    %vm1062 = vcmp.lt.s32.totalorder %v1040, 4
    %v1063 = vsel %vm1059, %v1043, %v1046
    %v1064 = vsel %vm1062, %v1052, 2102212464
    %v1065 = vsel %vm1061, %v1049, %v1064
    %v1066 = vsel %vm1060, %v1063, %v1065
    %v1067 = vsel %vm1059, %v1046, %v1049
    %v1068 = vsel %vm1062, %v1055, 920167782
    %v1069 = vsel %vm1061, %v1052, %v1068
    %v1070 = vsel %vm1060, %v1067, %v1069
    %v1071 = vsel %vm1059, %v1049, %v1052
    %v1072 = vsel %vm1062, %v1058, 1326507024
    %v1073 = vsel %vm1061, %v1055, %v1072
    %v1074 = vsel %vm1060, %v1071, %v1073
    %v1075 = vshll.u32 %v1035, 8
    %v1076 = vmul.u32.u64.compose %v1075, %v1074
    %v1077 = vextract.low.u32 %v1076
    %v1078 = vextract.high.u32 %v1076
    %v1079 = vmul.u32.u64.compose %v1075, %v1070
    %v1080 = vextract.low.u32 %v1079
    %v1081 = vextract.high.u32 %v1079
    %v1082 = vmul.u32 %v1075, %v1066
    %v1083 = vadd.s32 %v1078, %v1080
    %vm1084 = vc.u32 %v1078, %v1080
    %v1085 = vadd.s32 %v1081, 1
    %v1086 = vsel %vm1084, %v1085, %v1081
    %v1087 = vadd.s32 %v1082, %v1086
    %v1088 = vadd.s32 %v1087, 536870912
    %v1089 = vshrl.u32 %v1088, 30
    %v1090 = vshll.u32 %v1089, 30
    %v1091 = vsub.s32 %v1087, %v1090
    %vm1092 = vcmp.lt.s32.totalorder %v1091, 0
    %v1093 = vsub.s32 0, %v1091
    %v1094 = vsel %vm1092, %v1093, %v1091
    %v1095 = vclz %v1094
    %v1096 = vsub.s32 %v1095, 2
    %vm1097 = vcmp.gt.s32.totalorder 0, %v1096
    %v1098 = vsel %vm1097, 0, %v1096
    %v1099 = vsub.s32 32, %v1098
    %v1100 = vshll.u32 %v1091, %v1098
    %v1101 = vshrl.u32 %v1083, %v1099
    %v1102 = vor.u32 %v1100, %v1101
    %v1103 = vsub.s32 4294967266, %v1098
    %v1104 = vadd.s32 %v1103, 127
    %v1105 = vshll.u32 %v1104, 23
    %v1106 = vor.u32 4788187, %v1105
    %v1107 = vand.u32 2147483647, %v1106
    %v1109 = vcvt.s32.f32 %v1102
    %v1110 = vmul.f32 %v1109, %v1107
    %v1111 = vxor.u32 %v1110, 2147483648
    %v1112 = vsel %vm1029, %v1111, %v1110
    %v1113 = vsub.s32 4, %v1089
    %v1114 = vsel %vm1029, %v1113, %v1089
    %v1115 = vsel %vm1028, %v954, %v1112
    %v1116 = vsel %vm1028, 0, %v1114
    %v1117 = vcosq.f32.pop %v1115
    %v1118 = vsinq.f32.pop %v1115
    %vm1119 = vweird.f32 %v954
    %v1120 = vadd.s32 %v1116, 3
    %v1121 = vand.u32 %v1120, 3
    %vm1122 = vcmp.lt.s32.totalorder %v1121, 2
    %vm1123 = vcmp.eq.s32.totalorder %v1121, 0
    %v1124 = vxor.u32 %v1118, 2147483648
    %v1125 = vsel %vm1123, %v1117, %v1124
    %vm1126 = vcmp.eq.s32.totalorder %v1121, 2
    %v1127 = vxor.u32 %v1117, 2147483648
    %v1128 = vsel %vm1126, %v1127, %v1118
    %v1129 = vsel %vm1122, %v1125, %v1128
    %v1130 = vsel %vm1119, nan, %v1129
    %1132 = vrot.lane.b32.xlu0 %v1130, 126
    %v1133 = vpop.permute.xlu0 %1132
    %v1135 = vmul.f32 %v265, %v1133
    %v1136 = vadd.f32 %v1135, %v1026
    %v1137 = vstv %s959
    %v1138 = vmul.f32 %v1137, %v956
    %1140 = vrot.lane.b32.xlu0 %v1138, 2
    %v1141 = vpop.permute.xlu0 %1140
    %v1143 = vadd.f32 %v954, %v1141
    %v1144 = vmul.f32 %v1137, %v1136
    %v1145 = vadd.f32 %v956, %v1144
    %1147 = vrot.lane.b32.xlu0 %v1143, 1
    %v1148 = vpop.permute.xlu0 %1147
    %vm1150 = vcmask 48168
    %1151 = vst.msk [vmem:[#allocation5] sm:$0xff] %vm1150, %v1148
    %s1152 = sld [smem:[#allocation2 + $0x5]]
    %v1153 = vld [vmem:[%s2 + $0xd] sm:$0x1]
    %1154 = vset.pattern.permute.xlu0 4
    %1155 = vperm.xlu0 %1154, %v1143
    %v1156 = vpop.permute.xlu0 %1155
    %v1158 = vmul.f32 %v1156, %v147
    %v1159 = vadd.f32 %v130, %v1158
    %1161 = vset.pattern.permute.xlu0 2
    %1162 = vperm.xlu0 %1161, %v1145
    %v1163 = vpop.permute.xlu0 %1162
    %v1165 = vmul.f32 %v1163, %v153
    %v1166 = vadd.f32 %v1159, %v1165
    %v1167 = vlaneseq
    %v1168 = vshrl.u32 %v1167, 7
    %v1169 = vsub.s32 0, %v1168
    %v1170 = vrot.slane %v1153, %v1169
    %v1171 = vadd.f32 %v1166, %v1170
    %v1172 = vtanh.pop %v1171
    %v1173 = vpack.c.bf16 %v1172, %v1172
    %1174 = vmatprep.subr.bf16.mxu0 0
    %1175 = vmatpush1.bf16.msra.mxu0 %v199
    %1176 = vmatprep.subr.bf16.mxu0 0
    %1177 = vmatpush1.bf16.msra.mxu0 %v200
    %1178 = vmatprep.subr.bf16.mxu0 0
    %1179 = vmatpush1.bf16.msra.mxu0 %v201
    %1180 = vmatprep.subr.bf16.mxu0 0
    %1181 = vmatpush1.bf16.msra.mxu0 %v202
    %1182 = vmatprep.subr.bf16.mxu0 0
    %1183 = vmatpush1.bf16.msra.mxu0 %v203
    %1184 = vmatprep.subr.bf16.mxu0 0
    %1185 = vmatpush1.bf16.msra.mxu0 %v204
    %1186 = vmatprep.subr.bf16.mxu0 0
    %1187 = vmatpush1.bf16.msra.mxu0 %v205
    %1188 = vmatprep.subr.bf16.mxu0 0
    %1189 = vmatpush1.bf16.msra.mxu0 %v206
    %1190 = vmatprep.subr.bf16.mxu0 0
    %1191 = vmatpush1.bf16.msra.mxu0 0
    %1192 = vmatprep.subr.bf16.mxu0 0
    %1193 = vmatpush1.bf16.msra.mxu0 0
    %1194 = vmatprep.subr.bf16.mxu0 0
    %1195 = vmatpush1.bf16.msra.mxu0 0
    %1196 = vmatprep.subr.bf16.mxu0 0
    %1197 = vmatpush1.bf16.msra.mxu0 0
    %1198 = vmatprep.subr.bf16.mxu0 0
    %1199 = vmatpush1.bf16.msra.mxu0 0
    %1200 = vmatprep.subr.bf16.mxu0 0
    %1201 = vmatpush1.bf16.msra.mxu0 0
    %1202 = vmatprep.subr.bf16.mxu0 0
    %1203 = vmatpush1.bf16.msra.mxu0 0
    %1204 = vmatprep.subr.bf16.mxu0 0
    %1205 = vmatpush1.bf16.msra.mxu0 0
    %1206 = vmatprep.mubr.bf16.mxu0 0
    %1207 = vmatmul.mubr.bf16.gmra.mrb[0].mxu0 %v1173
    %v1208 = vpop.f32.mrb[0].mxu0
    %v1209 = vadd.f32 %v166, %v1208
    %v1210 = vpop.f32.mrb[0].mxu0
    %v1211 = vpop.f32.mrb[0].mxu0
    %v1212 = vpop.f32.mrb[0].mxu0
    %1213 = vdwg.mxu0
    %v1214 = vtanh.pop %v1209
    %v1215 = vmul.f32 %v1214, %v259
    %1216 = vadd.xlane.f32.xlu0 %v1215
    %v1217 = vpop.xlane.xlu0 %1216
    %v1218 = vadd.f32 %v1217, %v263
    %v1219 = vand.u32 2147483647, %v1143
    %vm1220 = vcmp.le.f32.partialorder %v1219, 0.7853982
    %vm1221 = vcmp.lt.s32.totalorder %v1143, 0
    %v1222 = vand.u32 %v1143, 2139095040
    %v1223 = vshrl.u32 %v1222, 23
    %v1224 = vsub.s32 %v1223, 127
    %v1225 = vand.u32 2147483647, %v1143
    %v1226 = vand.u32 %v1225, 8388607
    %v1227 = vor.u32 %v1226, 8388608
    %v1228 = vsub.s32 0, %v1227
    %v1229 = vadd.s32 %v1224, 1
    %vm1230 = vcmp.gt.s32.totalorder %v1229, 0
    %v1231 = vsel %vm1230, %v1229, 0
    %v1232 = vshrl.u32 %v1231, 5
    %v1233 = vand.u32 %v1231, 31
    %v1234 = vsub.s32 32, %v1233
    %v1235 = vshrl.u32 683565275, %v1234
    %v1236 = vshll.u32 683565275, %v1233
    %v1237 = vshrl.u32 2475754826, %v1234
    %v1238 = vor.u32 %v1236, %v1237
    %v1239 = vshll.u32 2475754826, %v1233
    %v1240 = vshrl.u32 2131351028, %v1234
    %v1241 = vor.u32 %v1239, %v1240
    %v1242 = vshll.u32 2131351028, %v1233
    %v1243 = vshrl.u32 2102212464, %v1234
    %v1244 = vor.u32 %v1242, %v1243
    %v1245 = vshll.u32 2102212464, %v1233
    %v1246 = vshrl.u32 920167782, %v1234
    %v1247 = vor.u32 %v1245, %v1246
    %v1248 = vshll.u32 920167782, %v1233
    %v1249 = vshrl.u32 1326507024, %v1234
    %v1250 = vor.u32 %v1248, %v1249
    %vm1251 = vcmp.lt.s32.totalorder %v1232, 1
    %vm1252 = vcmp.lt.s32.totalorder %v1232, 2
    %vm1253 = vcmp.lt.s32.totalorder %v1232, 3
    %vm1254 = vcmp.lt.s32.totalorder %v1232, 4
    %v1255 = vsel %vm1251, %v1235, %v1238
    %v1256 = vsel %vm1254, %v1244, 2102212464
    %v1257 = vsel %vm1253, %v1241, %v1256
    %v1258 = vsel %vm1252, %v1255, %v1257
    %v1259 = vsel %vm1251, %v1238, %v1241
    %v1260 = vsel %vm1254, %v1247, 920167782
    %v1261 = vsel %vm1253, %v1244, %v1260
    %v1262 = vsel %vm1252, %v1259, %v1261
    %v1263 = vsel %vm1251, %v1241, %v1244
    %v1264 = vsel %vm1254, %v1250, 1326507024
    %v1265 = vsel %vm1253, %v1247, %v1264
    %v1266 = vsel %vm1252, %v1263, %v1265
    %v1267 = vshll.u32 %v1227, 8
    %v1268 = vmul.u32.u64.compose %v1267, %v1266
    %v1269 = vextract.low.u32 %v1268
    %v1270 = vextract.high.u32 %v1268
    %v1271 = vmul.u32.u64.compose %v1267, %v1262
    %v1272 = vextract.low.u32 %v1271
    %v1273 = vextract.high.u32 %v1271
    %v1274 = vmul.u32 %v1267, %v1258
    %v1275 = vadd.s32 %v1270, %v1272
    %vm1276 = vc.u32 %v1270, %v1272
    %v1277 = vadd.s32 %v1273, 1
    %v1278 = vsel %vm1276, %v1277, %v1273
    %v1279 = vadd.s32 %v1274, %v1278
    %v1280 = vadd.s32 %v1279, 536870912
    %v1281 = vshrl.u32 %v1280, 30
    %v1282 = vshll.u32 %v1281, 30
    %v1283 = vsub.s32 %v1279, %v1282
    %vm1284 = vcmp.lt.s32.totalorder %v1283, 0
    %v1285 = vsub.s32 0, %v1283
    %v1286 = vsel %vm1284, %v1285, %v1283
    %v1287 = vclz %v1286
    %v1288 = vsub.s32 %v1287, 2
    %vm1289 = vcmp.gt.s32.totalorder 0, %v1288
    %v1290 = vsel %vm1289, 0, %v1288
    %v1291 = vsub.s32 32, %v1290
    %v1292 = vshll.u32 %v1283, %v1290
    %v1293 = vshrl.u32 %v1275, %v1291
    %v1294 = vor.u32 %v1292, %v1293
    %v1295 = vsub.s32 4294967266, %v1290
    %v1296 = vadd.s32 %v1295, 127
    %v1297 = vshll.u32 %v1296, 23
    %v1298 = vor.u32 4788187, %v1297
    %v1299 = vand.u32 2147483647, %v1298
    %v1301 = vcvt.s32.f32 %v1294
    %v1302 = vmul.f32 %v1301, %v1299
    %v1303 = vxor.u32 %v1302, 2147483648
    %v1304 = vsel %vm1221, %v1303, %v1302
    %v1305 = vsub.s32 4, %v1281
    %v1306 = vsel %vm1221, %v1305, %v1281
    %v1307 = vsel %vm1220, %v1143, %v1304
    %v1308 = vsel %vm1220, 0, %v1306
    %v1309 = vcosq.f32.pop %v1307
    %v1310 = vsinq.f32.pop %v1307
    %vm1311 = vweird.f32 %v1143
    %v1312 = vadd.s32 %v1308, 3
    %v1313 = vand.u32 %v1312, 3
    %vm1314 = vcmp.lt.s32.totalorder %v1313, 2
    %vm1315 = vcmp.eq.s32.totalorder %v1313, 0
    %v1316 = vxor.u32 %v1310, 2147483648
    %v1317 = vsel %vm1315, %v1309, %v1316
    %vm1318 = vcmp.eq.s32.totalorder %v1313, 2
    %v1319 = vxor.u32 %v1309, 2147483648
    %v1320 = vsel %vm1318, %v1319, %v1310
    %v1321 = vsel %vm1314, %v1317, %v1320
    %v1322 = vsel %vm1311, nan, %v1321
    %1324 = vrot.lane.b32.xlu0 %v1322, 126
    %v1325 = vpop.permute.xlu0 %1324
    %v1327 = vmul.f32 %v265, %v1325
    %v1328 = vadd.f32 %v1327, %v1218
    %v1329 = vstv %s1152
    %v1330 = vmul.f32 %v1329, %v1145
    %1332 = vrot.lane.b32.xlu0 %v1330, 2
    %v1333 = vpop.permute.xlu0 %1332
    %v1335 = vadd.f32 %v1143, %v1333
    %v1336 = vmul.f32 %v1329, %v1328
    %v1337 = vadd.f32 %v1145, %v1336
    %1339 = vrot.lane.b32.xlu0 %v1335, 2
    %v1340 = vpop.permute.xlu0 %1339
    %vm1342 = vcmask 56368
    %1343 = vst.msk [vmem:[#allocation5] sm:$0xff] %vm1342, %v1340
    %s1344 = sld [smem:[#allocation2 + $0x6]]
    %v1345 = vld [vmem:[%s2 + $0xe] sm:$0x1]
    %1346 = vset.pattern.permute.xlu0 4
    %1347 = vperm.xlu0 %1346, %v1335
    %v1348 = vpop.permute.xlu0 %1347
    %v1350 = vmul.f32 %v1348, %v147
    %v1351 = vadd.f32 %v130, %v1350
    %1353 = vset.pattern.permute.xlu0 2
    %1354 = vperm.xlu0 %1353, %v1337
    %v1355 = vpop.permute.xlu0 %1354
    %v1357 = vmul.f32 %v1355, %v153
    %v1358 = vadd.f32 %v1351, %v1357
    %v1359 = vlaneseq
    %v1360 = vshrl.u32 %v1359, 7
    %v1361 = vsub.s32 0, %v1360
    %v1362 = vrot.slane %v1345, %v1361
    %v1363 = vadd.f32 %v1358, %v1362
    %v1364 = vtanh.pop %v1363
    %v1365 = vpack.c.bf16 %v1364, %v1364
    %1366 = vmatprep.subr.bf16.mxu0 0
    %1367 = vmatpush1.bf16.msra.mxu0 %v199
    %1368 = vmatprep.subr.bf16.mxu0 0
    %1369 = vmatpush1.bf16.msra.mxu0 %v200
    %1370 = vmatprep.subr.bf16.mxu0 0
    %1371 = vmatpush1.bf16.msra.mxu0 %v201
    %1372 = vmatprep.subr.bf16.mxu0 0
    %1373 = vmatpush1.bf16.msra.mxu0 %v202
    %1374 = vmatprep.subr.bf16.mxu0 0
    %1375 = vmatpush1.bf16.msra.mxu0 %v203
    %1376 = vmatprep.subr.bf16.mxu0 0
    %1377 = vmatpush1.bf16.msra.mxu0 %v204
    %1378 = vmatprep.subr.bf16.mxu0 0
    %1379 = vmatpush1.bf16.msra.mxu0 %v205
    %1380 = vmatprep.subr.bf16.mxu0 0
    %1381 = vmatpush1.bf16.msra.mxu0 %v206
    %1382 = vmatprep.subr.bf16.mxu0 0
    %1383 = vmatpush1.bf16.msra.mxu0 0
    %1384 = vmatprep.subr.bf16.mxu0 0
    %1385 = vmatpush1.bf16.msra.mxu0 0
    %1386 = vmatprep.subr.bf16.mxu0 0
    %1387 = vmatpush1.bf16.msra.mxu0 0
    %1388 = vmatprep.subr.bf16.mxu0 0
    %1389 = vmatpush1.bf16.msra.mxu0 0
    %1390 = vmatprep.subr.bf16.mxu0 0
    %1391 = vmatpush1.bf16.msra.mxu0 0
    %1392 = vmatprep.subr.bf16.mxu0 0
    %1393 = vmatpush1.bf16.msra.mxu0 0
    %1394 = vmatprep.subr.bf16.mxu0 0
    %1395 = vmatpush1.bf16.msra.mxu0 0
    %1396 = vmatprep.subr.bf16.mxu0 0
    %1397 = vmatpush1.bf16.msra.mxu0 0
    %1398 = vmatprep.mubr.bf16.mxu0 0
    %1399 = vmatmul.mubr.bf16.gmra.mrb[0].mxu0 %v1365
    %v1400 = vpop.f32.mrb[0].mxu0
    %v1401 = vadd.f32 %v166, %v1400
    %v1402 = vpop.f32.mrb[0].mxu0
    %v1403 = vpop.f32.mrb[0].mxu0
    %v1404 = vpop.f32.mrb[0].mxu0
    %1405 = vdwg.mxu0
    %v1406 = vtanh.pop %v1401
    %v1407 = vmul.f32 %v1406, %v259
    %1408 = vadd.xlane.f32.xlu0 %v1407
    %v1409 = vpop.xlane.xlu0 %1408
    %v1410 = vadd.f32 %v1409, %v263
    %v1411 = vand.u32 2147483647, %v1335
    %vm1412 = vcmp.le.f32.partialorder %v1411, 0.7853982
    %vm1413 = vcmp.lt.s32.totalorder %v1335, 0
    %v1414 = vand.u32 %v1335, 2139095040
    %v1415 = vshrl.u32 %v1414, 23
    %v1416 = vsub.s32 %v1415, 127
    %v1417 = vand.u32 2147483647, %v1335
    %v1418 = vand.u32 %v1417, 8388607
    %v1419 = vor.u32 %v1418, 8388608
    %v1420 = vsub.s32 0, %v1419
    %v1421 = vadd.s32 %v1416, 1
    %vm1422 = vcmp.gt.s32.totalorder %v1421, 0
    %v1423 = vsel %vm1422, %v1421, 0
    %v1424 = vshrl.u32 %v1423, 5
    %v1425 = vand.u32 %v1423, 31
    %v1426 = vsub.s32 32, %v1425
    %v1427 = vshrl.u32 683565275, %v1426
    %v1428 = vshll.u32 683565275, %v1425
    %v1429 = vshrl.u32 2475754826, %v1426
    %v1430 = vor.u32 %v1428, %v1429
    %v1431 = vshll.u32 2475754826, %v1425
    %v1432 = vshrl.u32 2131351028, %v1426
    %v1433 = vor.u32 %v1431, %v1432
    %v1434 = vshll.u32 2131351028, %v1425
    %v1435 = vshrl.u32 2102212464, %v1426
    %v1436 = vor.u32 %v1434, %v1435
    %v1437 = vshll.u32 2102212464, %v1425
    %v1438 = vshrl.u32 920167782, %v1426
    %v1439 = vor.u32 %v1437, %v1438
    %v1440 = vshll.u32 920167782, %v1425
    %v1441 = vshrl.u32 1326507024, %v1426
    %v1442 = vor.u32 %v1440, %v1441
    %vm1443 = vcmp.lt.s32.totalorder %v1424, 1
    %vm1444 = vcmp.lt.s32.totalorder %v1424, 2
    %vm1445 = vcmp.lt.s32.totalorder %v1424, 3
    %vm1446 = vcmp.lt.s32.totalorder %v1424, 4
    %v1447 = vsel %vm1443, %v1427, %v1430
    %v1448 = vsel %vm1446, %v1436, 2102212464
    %v1449 = vsel %vm1445, %v1433, %v1448
    %v1450 = vsel %vm1444, %v1447, %v1449
    %v1451 = vsel %vm1443, %v1430, %v1433
    %v1452 = vsel %vm1446, %v1439, 920167782
    %v1453 = vsel %vm1445, %v1436, %v1452
    %v1454 = vsel %vm1444, %v1451, %v1453
    %v1455 = vsel %vm1443, %v1433, %v1436
    %v1456 = vsel %vm1446, %v1442, 1326507024
    %v1457 = vsel %vm1445, %v1439, %v1456
    %v1458 = vsel %vm1444, %v1455, %v1457
    %v1459 = vshll.u32 %v1419, 8
    %v1460 = vmul.u32.u64.compose %v1459, %v1458
    %v1461 = vextract.low.u32 %v1460
    %v1462 = vextract.high.u32 %v1460
    %v1463 = vmul.u32.u64.compose %v1459, %v1454
    %v1464 = vextract.low.u32 %v1463
    %v1465 = vextract.high.u32 %v1463
    %v1466 = vmul.u32 %v1459, %v1450
    %v1467 = vadd.s32 %v1462, %v1464
    %vm1468 = vc.u32 %v1462, %v1464
    %v1469 = vadd.s32 %v1465, 1
    %v1470 = vsel %vm1468, %v1469, %v1465
    %v1471 = vadd.s32 %v1466, %v1470
    %v1472 = vadd.s32 %v1471, 536870912
    %v1473 = vshrl.u32 %v1472, 30
    %v1474 = vshll.u32 %v1473, 30
    %v1475 = vsub.s32 %v1471, %v1474
    %vm1476 = vcmp.lt.s32.totalorder %v1475, 0
    %v1477 = vsub.s32 0, %v1475
    %v1478 = vsel %vm1476, %v1477, %v1475
    %v1479 = vclz %v1478
    %v1480 = vsub.s32 %v1479, 2
    %vm1481 = vcmp.gt.s32.totalorder 0, %v1480
    %v1482 = vsel %vm1481, 0, %v1480
    %v1483 = vsub.s32 32, %v1482
    %v1484 = vshll.u32 %v1475, %v1482
    %v1485 = vshrl.u32 %v1467, %v1483
    %v1486 = vor.u32 %v1484, %v1485
    %v1487 = vsub.s32 4294967266, %v1482
    %v1488 = vadd.s32 %v1487, 127
    %v1489 = vshll.u32 %v1488, 23
    %v1490 = vor.u32 4788187, %v1489
    %v1491 = vand.u32 2147483647, %v1490
    %v1493 = vcvt.s32.f32 %v1486
    %v1494 = vmul.f32 %v1493, %v1491
    %v1495 = vxor.u32 %v1494, 2147483648
    %v1496 = vsel %vm1413, %v1495, %v1494
    %v1497 = vsub.s32 4, %v1473
    %v1498 = vsel %vm1413, %v1497, %v1473
    %v1499 = vsel %vm1412, %v1335, %v1496
    %v1500 = vsel %vm1412, 0, %v1498
    %v1501 = vcosq.f32.pop %v1499
    %v1502 = vsinq.f32.pop %v1499
    %vm1503 = vweird.f32 %v1335
    %v1504 = vadd.s32 %v1500, 3
    %v1505 = vand.u32 %v1504, 3
    %vm1506 = vcmp.lt.s32.totalorder %v1505, 2
    %vm1507 = vcmp.eq.s32.totalorder %v1505, 0
    %v1508 = vxor.u32 %v1502, 2147483648
    %v1509 = vsel %vm1507, %v1501, %v1508
    %vm1510 = vcmp.eq.s32.totalorder %v1505, 2
    %v1511 = vxor.u32 %v1501, 2147483648
    %v1512 = vsel %vm1510, %v1511, %v1502
    %v1513 = vsel %vm1506, %v1509, %v1512
    %v1514 = vsel %vm1503, nan, %v1513
    %1516 = vrot.lane.b32.xlu0 %v1514, 126
    %v1517 = vpop.permute.xlu0 %1516
    %v1519 = vmul.f32 %v265, %v1517
    %v1520 = vadd.f32 %v1519, %v1410
    %v1521 = vstv %s1344
    %v1522 = vmul.f32 %v1521, %v1337
    %1524 = vrot.lane.b32.xlu0 %v1522, 2
    %v1525 = vpop.permute.xlu0 %1524
    %v1527 = vadd.f32 %v1335, %v1525
    %v1528 = vmul.f32 %v1521, %v1520
    %v1529 = vadd.f32 %v1337, %v1528
    %1531 = vrot.lane.b32.xlu0 %v1527, 3
    %v1532 = vpop.permute.xlu0 %1531
    %vm1534 = vcmask 64568
    %1535 = vst.msk [vmem:[#allocation5] sm:$0xff] %vm1534, %v1532
    %s1536 = sld [smem:[#allocation2 + $0x7]]
    %v1537 = vld [vmem:[%s2 + $0xf] sm:$0x1]
    %1538 = vset.pattern.permute.xlu0 4
    %1539 = vperm.xlu0 %1538, %v1527
    %v1540 = vpop.permute.xlu0 %1539
    %v1542 = vmul.f32 %v1540, %v147
    %v1543 = vadd.f32 %v130, %v1542
    %1545 = vset.pattern.permute.xlu0 2
    %1546 = vperm.xlu0 %1545, %v1529
    %v1547 = vpop.permute.xlu0 %1546
    %v1549 = vmul.f32 %v1547, %v153
    %v1550 = vadd.f32 %v1543, %v1549
    %v1551 = vlaneseq
    %v1552 = vshrl.u32 %v1551, 7
    %v1553 = vsub.s32 0, %v1552
    %v1554 = vrot.slane %v1537, %v1553
    %v1555 = vadd.f32 %v1550, %v1554
    %v1556 = vtanh.pop %v1555
    %v1557 = vpack.c.bf16 %v1556, %v1556
    %1558 = vmatprep.subr.bf16.mxu0 0
    %1559 = vmatpush1.bf16.msra.mxu0 %v199
    %1560 = vmatprep.subr.bf16.mxu0 0
    %1561 = vmatpush1.bf16.msra.mxu0 %v200
    %1562 = vmatprep.subr.bf16.mxu0 0
    %1563 = vmatpush1.bf16.msra.mxu0 %v201
    %1564 = vmatprep.subr.bf16.mxu0 0
    %1565 = vmatpush1.bf16.msra.mxu0 %v202
    %1566 = vmatprep.subr.bf16.mxu0 0
    %1567 = vmatpush1.bf16.msra.mxu0 %v203
    %1568 = vmatprep.subr.bf16.mxu0 0
    %1569 = vmatpush1.bf16.msra.mxu0 %v204
    %1570 = vmatprep.subr.bf16.mxu0 0
    %1571 = vmatpush1.bf16.msra.mxu0 %v205
    %1572 = vmatprep.subr.bf16.mxu0 0
    %1573 = vmatpush1.bf16.msra.mxu0 %v206
    %1574 = vmatprep.subr.bf16.mxu0 0
    %1575 = vmatpush1.bf16.msra.mxu0 0
    %1576 = vmatprep.subr.bf16.mxu0 0
    %1577 = vmatpush1.bf16.msra.mxu0 0
    %1578 = vmatprep.subr.bf16.mxu0 0
    %1579 = vmatpush1.bf16.msra.mxu0 0
    %1580 = vmatprep.subr.bf16.mxu0 0
    %1581 = vmatpush1.bf16.msra.mxu0 0
    %1582 = vmatprep.subr.bf16.mxu0 0
    %1583 = vmatpush1.bf16.msra.mxu0 0
    %1584 = vmatprep.subr.bf16.mxu0 0
    %1585 = vmatpush1.bf16.msra.mxu0 0
    %1586 = vmatprep.subr.bf16.mxu0 0
    %1587 = vmatpush1.bf16.msra.mxu0 0
    %1588 = vmatprep.subr.bf16.mxu0 0
    %1589 = vmatpush1.bf16.msra.mxu0 0
    %1590 = vmatprep.mubr.bf16.mxu0 0
    %1591 = vmatmul.mubr.bf16.gmra.mrb[0].mxu0 %v1557
    %v1592 = vpop.f32.mrb[0].mxu0
    %v1593 = vadd.f32 %v166, %v1592
    %v1594 = vpop.f32.mrb[0].mxu0
    %v1595 = vpop.f32.mrb[0].mxu0
    %v1596 = vpop.f32.mrb[0].mxu0
    %1597 = vdwg.mxu0
    %v1598 = vtanh.pop %v1593
    %v1599 = vmul.f32 %v1598, %v259
    %1600 = vadd.xlane.f32.xlu0 %v1599
    %v1601 = vpop.xlane.xlu0 %1600
    %v1602 = vadd.f32 %v1601, %v263
    %v1603 = vand.u32 2147483647, %v1527
    %vm1604 = vcmp.le.f32.partialorder %v1603, 0.7853982
    %vm1605 = vcmp.lt.s32.totalorder %v1527, 0
    %v1606 = vand.u32 %v1527, 2139095040
    %v1607 = vshrl.u32 %v1606, 23
    %v1608 = vsub.s32 %v1607, 127
    %v1609 = vand.u32 2147483647, %v1527
    %v1610 = vand.u32 %v1609, 8388607
    %v1611 = vor.u32 %v1610, 8388608
    %v1612 = vsub.s32 0, %v1611
    %v1613 = vadd.s32 %v1608, 1
    %vm1614 = vcmp.gt.s32.totalorder %v1613, 0
    %v1615 = vsel %vm1614, %v1613, 0
    %v1616 = vshrl.u32 %v1615, 5
    %v1617 = vand.u32 %v1615, 31
    %v1618 = vsub.s32 32, %v1617
    %v1619 = vshrl.u32 683565275, %v1618
    %v1620 = vshll.u32 683565275, %v1617
    %v1621 = vshrl.u32 2475754826, %v1618
    %v1622 = vor.u32 %v1620, %v1621
    %v1623 = vshll.u32 2475754826, %v1617
    %v1624 = vshrl.u32 2131351028, %v1618
    %v1625 = vor.u32 %v1623, %v1624
    %v1626 = vshll.u32 2131351028, %v1617
    %v1627 = vshrl.u32 2102212464, %v1618
    %v1628 = vor.u32 %v1626, %v1627
    %v1629 = vshll.u32 2102212464, %v1617
    %v1630 = vshrl.u32 920167782, %v1618
    %v1631 = vor.u32 %v1629, %v1630
    %v1632 = vshll.u32 920167782, %v1617
    %v1633 = vshrl.u32 1326507024, %v1618
    %v1634 = vor.u32 %v1632, %v1633
    %vm1635 = vcmp.lt.s32.totalorder %v1616, 1
    %vm1636 = vcmp.lt.s32.totalorder %v1616, 2
    %vm1637 = vcmp.lt.s32.totalorder %v1616, 3
    %vm1638 = vcmp.lt.s32.totalorder %v1616, 4
    %v1639 = vsel %vm1635, %v1619, %v1622
    %v1640 = vsel %vm1638, %v1628, 2102212464
    %v1641 = vsel %vm1637, %v1625, %v1640
    %v1642 = vsel %vm1636, %v1639, %v1641
    %v1643 = vsel %vm1635, %v1622, %v1625
    %v1644 = vsel %vm1638, %v1631, 920167782
    %v1645 = vsel %vm1637, %v1628, %v1644
    %v1646 = vsel %vm1636, %v1643, %v1645
    %v1647 = vsel %vm1635, %v1625, %v1628
    %v1648 = vsel %vm1638, %v1634, 1326507024
    %v1649 = vsel %vm1637, %v1631, %v1648
    %v1650 = vsel %vm1636, %v1647, %v1649
    %v1651 = vshll.u32 %v1611, 8
    %v1652 = vmul.u32.u64.compose %v1651, %v1650
    %v1653 = vextract.low.u32 %v1652
    %v1654 = vextract.high.u32 %v1652
    %v1655 = vmul.u32.u64.compose %v1651, %v1646
    %v1656 = vextract.low.u32 %v1655
    %v1657 = vextract.high.u32 %v1655
    %v1658 = vmul.u32 %v1651, %v1642
    %v1659 = vadd.s32 %v1654, %v1656
    %vm1660 = vc.u32 %v1654, %v1656
    %v1661 = vadd.s32 %v1657, 1
    %v1662 = vsel %vm1660, %v1661, %v1657
    %v1663 = vadd.s32 %v1658, %v1662
    %v1664 = vadd.s32 %v1663, 536870912
    %v1665 = vshrl.u32 %v1664, 30
    %v1666 = vshll.u32 %v1665, 30
    %v1667 = vsub.s32 %v1663, %v1666
    %vm1668 = vcmp.lt.s32.totalorder %v1667, 0
    %v1669 = vsub.s32 0, %v1667
    %v1670 = vsel %vm1668, %v1669, %v1667
    %v1671 = vclz %v1670
    %v1672 = vsub.s32 %v1671, 2
    %vm1673 = vcmp.gt.s32.totalorder 0, %v1672
    %v1674 = vsel %vm1673, 0, %v1672
    %v1675 = vsub.s32 32, %v1674
    %v1676 = vshll.u32 %v1667, %v1674
    %v1677 = vshrl.u32 %v1659, %v1675
    %v1678 = vor.u32 %v1676, %v1677
    %v1679 = vsub.s32 4294967266, %v1674
    %v1680 = vadd.s32 %v1679, 127
    %v1681 = vshll.u32 %v1680, 23
    %v1682 = vor.u32 4788187, %v1681
    %v1683 = vand.u32 2147483647, %v1682
    %v1685 = vcvt.s32.f32 %v1678
    %v1686 = vmul.f32 %v1685, %v1683
    %v1687 = vxor.u32 %v1686, 2147483648
    %v1688 = vsel %vm1605, %v1687, %v1686
    %v1689 = vsub.s32 4, %v1665
    %v1690 = vsel %vm1605, %v1689, %v1665
    %v1691 = vsel %vm1604, %v1527, %v1688
    %v1692 = vsel %vm1604, 0, %v1690
    %v1693 = vcosq.f32.pop %v1691
    %v1694 = vsinq.f32.pop %v1691
    %vm1695 = vweird.f32 %v1527
    %v1696 = vadd.s32 %v1692, 3
    %v1697 = vand.u32 %v1696, 3
    %vm1698 = vcmp.lt.s32.totalorder %v1697, 2
    %vm1699 = vcmp.eq.s32.totalorder %v1697, 0
    %v1700 = vxor.u32 %v1694, 2147483648
    %v1701 = vsel %vm1699, %v1693, %v1700
    %vm1702 = vcmp.eq.s32.totalorder %v1697, 2
    %v1703 = vxor.u32 %v1693, 2147483648
    %v1704 = vsel %vm1702, %v1703, %v1694
    %v1705 = vsel %vm1698, %v1701, %v1704
    %v1706 = vsel %vm1695, nan, %v1705
    %1708 = vrot.lane.b32.xlu0 %v1706, 126
    %v1709 = vpop.permute.xlu0 %1708
    %v1711 = vmul.f32 %v265, %v1709
    %v1712 = vadd.f32 %v1711, %v1602
    %v1713 = vstv %s1536
    %v1714 = vmul.f32 %v1713, %v1529
    %1716 = vrot.lane.b32.xlu0 %v1714, 2
    %v1717 = vpop.permute.xlu0 %1716
    %v1719 = vadd.f32 %v1527, %v1717
    %v1720 = vmul.f32 %v1713, %v1712
    %v1721 = vadd.f32 %v1529, %v1720
    %1723 = vrot.lane.b32.xlu0 %v1719, 4
    %v1724 = vpop.permute.xlu0 %1723
    %vm1726 = vcmask 72768
    %1727 = vst.msk [vmem:[#allocation5] sm:$0xff] %vm1726, %v1724
    %s1728 = sld [smem:[#allocation2 + $0x8]]
    %v1729 = vld [vmem:[%s2 + $0x10] sm:$0x1]
    %1730 = vset.pattern.permute.xlu0 4
    %1731 = vperm.xlu0 %1730, %v1719
    %v1732 = vpop.permute.xlu0 %1731
    %v1734 = vmul.f32 %v1732, %v147
    %v1735 = vadd.f32 %v130, %v1734
    %1737 = vset.pattern.permute.xlu0 2
    %1738 = vperm.xlu0 %1737, %v1721
    %v1739 = vpop.permute.xlu0 %1738
    %v1741 = vmul.f32 %v1739, %v153
    %v1742 = vadd.f32 %v1735, %v1741
    %v1743 = vlaneseq
    %v1744 = vshrl.u32 %v1743, 7
    %v1745 = vsub.s32 0, %v1744
    %v1746 = vrot.slane %v1729, %v1745
    %v1747 = vadd.f32 %v1742, %v1746
    %v1748 = vtanh.pop %v1747
    %v1749 = vpack.c.bf16 %v1748, %v1748
    %1750 = vmatprep.subr.bf16.mxu0 0
    %1751 = vmatpush1.bf16.msra.mxu0 %v199
    %1752 = vmatprep.subr.bf16.mxu0 0
    %1753 = vmatpush1.bf16.msra.mxu0 %v200
    %1754 = vmatprep.subr.bf16.mxu0 0
    %1755 = vmatpush1.bf16.msra.mxu0 %v201
    %1756 = vmatprep.subr.bf16.mxu0 0
    %1757 = vmatpush1.bf16.msra.mxu0 %v202
    %1758 = vmatprep.subr.bf16.mxu0 0
    %1759 = vmatpush1.bf16.msra.mxu0 %v203
    %1760 = vmatprep.subr.bf16.mxu0 0
    %1761 = vmatpush1.bf16.msra.mxu0 %v204
    %1762 = vmatprep.subr.bf16.mxu0 0
    %1763 = vmatpush1.bf16.msra.mxu0 %v205
    %1764 = vmatprep.subr.bf16.mxu0 0
    %1765 = vmatpush1.bf16.msra.mxu0 %v206
    %1766 = vmatprep.subr.bf16.mxu0 0
    %1767 = vmatpush1.bf16.msra.mxu0 0
    %1768 = vmatprep.subr.bf16.mxu0 0
    %1769 = vmatpush1.bf16.msra.mxu0 0
    %1770 = vmatprep.subr.bf16.mxu0 0
    %1771 = vmatpush1.bf16.msra.mxu0 0
    %1772 = vmatprep.subr.bf16.mxu0 0
    %1773 = vmatpush1.bf16.msra.mxu0 0
    %1774 = vmatprep.subr.bf16.mxu0 0
    %1775 = vmatpush1.bf16.msra.mxu0 0
    %1776 = vmatprep.subr.bf16.mxu0 0
    %1777 = vmatpush1.bf16.msra.mxu0 0
    %1778 = vmatprep.subr.bf16.mxu0 0
    %1779 = vmatpush1.bf16.msra.mxu0 0
    %1780 = vmatprep.subr.bf16.mxu0 0
    %1781 = vmatpush1.bf16.msra.mxu0 0
    %1782 = vmatprep.mubr.bf16.mxu0 0
    %1783 = vmatmul.mubr.bf16.gmra.mrb[0].mxu0 %v1749
    %v1784 = vpop.f32.mrb[0].mxu0
    %v1785 = vadd.f32 %v166, %v1784
    %v1786 = vpop.f32.mrb[0].mxu0
    %v1787 = vpop.f32.mrb[0].mxu0
    %v1788 = vpop.f32.mrb[0].mxu0
    %1789 = vdwg.mxu0
    %v1790 = vtanh.pop %v1785
    %v1791 = vmul.f32 %v1790, %v259
    %1792 = vadd.xlane.f32.xlu0 %v1791
    %v1793 = vpop.xlane.xlu0 %1792
    %v1794 = vadd.f32 %v1793, %v263
    %v1795 = vand.u32 2147483647, %v1719
    %vm1796 = vcmp.le.f32.partialorder %v1795, 0.7853982
    %vm1797 = vcmp.lt.s32.totalorder %v1719, 0
    %v1798 = vand.u32 %v1719, 2139095040
    %v1799 = vshrl.u32 %v1798, 23
    %v1800 = vsub.s32 %v1799, 127
    %v1801 = vand.u32 2147483647, %v1719
    %v1802 = vand.u32 %v1801, 8388607
    %v1803 = vor.u32 %v1802, 8388608
    %v1804 = vsub.s32 0, %v1803
    %v1805 = vadd.s32 %v1800, 1
    %vm1806 = vcmp.gt.s32.totalorder %v1805, 0
    %v1807 = vsel %vm1806, %v1805, 0
    %v1808 = vshrl.u32 %v1807, 5
    %v1809 = vand.u32 %v1807, 31
    %v1810 = vsub.s32 32, %v1809
    %v1811 = vshrl.u32 683565275, %v1810
    %v1812 = vshll.u32 683565275, %v1809
    %v1813 = vshrl.u32 2475754826, %v1810
    %v1814 = vor.u32 %v1812, %v1813
    %v1815 = vshll.u32 2475754826, %v1809
    %v1816 = vshrl.u32 2131351028, %v1810
    %v1817 = vor.u32 %v1815, %v1816
    %v1818 = vshll.u32 2131351028, %v1809
    %v1819 = vshrl.u32 2102212464, %v1810
    %v1820 = vor.u32 %v1818, %v1819
    %v1821 = vshll.u32 2102212464, %v1809
    %v1822 = vshrl.u32 920167782, %v1810
    %v1823 = vor.u32 %v1821, %v1822
    %v1824 = vshll.u32 920167782, %v1809
    %v1825 = vshrl.u32 1326507024, %v1810
    %v1826 = vor.u32 %v1824, %v1825
    %vm1827 = vcmp.lt.s32.totalorder %v1808, 1
    %vm1828 = vcmp.lt.s32.totalorder %v1808, 2
    %vm1829 = vcmp.lt.s32.totalorder %v1808, 3
    %vm1830 = vcmp.lt.s32.totalorder %v1808, 4
    %v1831 = vsel %vm1827, %v1811, %v1814
    %v1832 = vsel %vm1830, %v1820, 2102212464
    %v1833 = vsel %vm1829, %v1817, %v1832
    %v1834 = vsel %vm1828, %v1831, %v1833
    %v1835 = vsel %vm1827, %v1814, %v1817
    %v1836 = vsel %vm1830, %v1823, 920167782
    %v1837 = vsel %vm1829, %v1820, %v1836
    %v1838 = vsel %vm1828, %v1835, %v1837
    %v1839 = vsel %vm1827, %v1817, %v1820
    %v1840 = vsel %vm1830, %v1826, 1326507024
    %v1841 = vsel %vm1829, %v1823, %v1840
    %v1842 = vsel %vm1828, %v1839, %v1841
    %v1843 = vshll.u32 %v1803, 8
    %v1844 = vmul.u32.u64.compose %v1843, %v1842
    %v1845 = vextract.low.u32 %v1844
    %v1846 = vextract.high.u32 %v1844
    %v1847 = vmul.u32.u64.compose %v1843, %v1838
    %v1848 = vextract.low.u32 %v1847
    %v1849 = vextract.high.u32 %v1847
    %v1850 = vmul.u32 %v1843, %v1834
    %v1851 = vadd.s32 %v1846, %v1848
    %vm1852 = vc.u32 %v1846, %v1848
    %v1853 = vadd.s32 %v1849, 1
    %v1854 = vsel %vm1852, %v1853, %v1849
    %v1855 = vadd.s32 %v1850, %v1854
    %v1856 = vadd.s32 %v1855, 536870912
    %v1857 = vshrl.u32 %v1856, 30
    %v1858 = vshll.u32 %v1857, 30
    %v1859 = vsub.s32 %v1855, %v1858
    %vm1860 = vcmp.lt.s32.totalorder %v1859, 0
    %v1861 = vsub.s32 0, %v1859
    %v1862 = vsel %vm1860, %v1861, %v1859
    %v1863 = vclz %v1862
    %v1864 = vsub.s32 %v1863, 2
    %vm1865 = vcmp.gt.s32.totalorder 0, %v1864
    %v1866 = vsel %vm1865, 0, %v1864
    %v1867 = vsub.s32 32, %v1866
    %v1868 = vshll.u32 %v1859, %v1866
    %v1869 = vshrl.u32 %v1851, %v1867
    %v1870 = vor.u32 %v1868, %v1869
    %v1871 = vsub.s32 4294967266, %v1866
    %v1872 = vadd.s32 %v1871, 127
    %v1873 = vshll.u32 %v1872, 23
    %v1874 = vor.u32 4788187, %v1873
    %v1875 = vand.u32 2147483647, %v1874
    %v1877 = vcvt.s32.f32 %v1870
    %v1878 = vmul.f32 %v1877, %v1875
    %v1879 = vxor.u32 %v1878, 2147483648
    %v1880 = vsel %vm1797, %v1879, %v1878
    %v1881 = vsub.s32 4, %v1857
    %v1882 = vsel %vm1797, %v1881, %v1857
    %v1883 = vsel %vm1796, %v1719, %v1880
    %v1884 = vsel %vm1796, 0, %v1882
    %v1885 = vcosq.f32.pop %v1883
    %v1886 = vsinq.f32.pop %v1883
    %vm1887 = vweird.f32 %v1719
    %v1888 = vadd.s32 %v1884, 3
    %v1889 = vand.u32 %v1888, 3
    %vm1890 = vcmp.lt.s32.totalorder %v1889, 2
    %vm1891 = vcmp.eq.s32.totalorder %v1889, 0
    %v1892 = vxor.u32 %v1886, 2147483648
    %v1893 = vsel %vm1891, %v1885, %v1892
    %vm1894 = vcmp.eq.s32.totalorder %v1889, 2
    %v1895 = vxor.u32 %v1885, 2147483648
    %v1896 = vsel %vm1894, %v1895, %v1886
    %v1897 = vsel %vm1890, %v1893, %v1896
    %v1898 = vsel %vm1887, nan, %v1897
    %1900 = vrot.lane.b32.xlu0 %v1898, 126
    %v1901 = vpop.permute.xlu0 %1900
    %v1903 = vmul.f32 %v265, %v1901
    %v1904 = vadd.f32 %v1903, %v1794
    %v1905 = vstv %s1728
    %v1906 = vmul.f32 %v1905, %v1721
    %1908 = vrot.lane.b32.xlu0 %v1906, 2
    %v1909 = vpop.permute.xlu0 %1908
    %v1911 = vadd.f32 %v1719, %v1909
    %v1912 = vmul.f32 %v1905, %v1904
    %v1913 = vadd.f32 %v1721, %v1912
    %1915 = vrot.lane.b32.xlu0 %v1911, 5
    %v1916 = vpop.permute.xlu0 %1915
    %vm1918 = vcmask 80968
    %1919 = vst.msk [vmem:[#allocation5] sm:$0xff] %vm1918, %v1916
    %s1920 = sld [smem:[#allocation2 + $0x9]]
    %v1921 = vld [vmem:[%s2 + $0x11] sm:$0x1]
    %1922 = vset.pattern.permute.xlu0 4
    %1923 = vperm.xlu0 %1922, %v1911
    %v1924 = vpop.permute.xlu0 %1923
    %v1926 = vmul.f32 %v1924, %v147
    %v1927 = vadd.f32 %v130, %v1926
    %1929 = vset.pattern.permute.xlu0 2
    %1930 = vperm.xlu0 %1929, %v1913
    %v1931 = vpop.permute.xlu0 %1930
    %v1933 = vmul.f32 %v1931, %v153
    %v1934 = vadd.f32 %v1927, %v1933
    %v1935 = vlaneseq
    %v1936 = vshrl.u32 %v1935, 7
    %v1937 = vsub.s32 0, %v1936
    %v1938 = vrot.slane %v1921, %v1937
    %v1939 = vadd.f32 %v1934, %v1938
    %v1940 = vtanh.pop %v1939
    %v1941 = vpack.c.bf16 %v1940, %v1940
    %1942 = vmatprep.subr.bf16.mxu0 0
    %1943 = vmatpush1.bf16.msra.mxu0 %v199
    %1944 = vmatprep.subr.bf16.mxu0 0
    %1945 = vmatpush1.bf16.msra.mxu0 %v200
    %1946 = vmatprep.subr.bf16.mxu0 0
    %1947 = vmatpush1.bf16.msra.mxu0 %v201
    %1948 = vmatprep.subr.bf16.mxu0 0
    %1949 = vmatpush1.bf16.msra.mxu0 %v202
    %1950 = vmatprep.subr.bf16.mxu0 0
    %1951 = vmatpush1.bf16.msra.mxu0 %v203
    %1952 = vmatprep.subr.bf16.mxu0 0
    %1953 = vmatpush1.bf16.msra.mxu0 %v204
    %1954 = vmatprep.subr.bf16.mxu0 0
    %1955 = vmatpush1.bf16.msra.mxu0 %v205
    %1956 = vmatprep.subr.bf16.mxu0 0
    %1957 = vmatpush1.bf16.msra.mxu0 %v206
    %1958 = vmatprep.subr.bf16.mxu0 0
    %1959 = vmatpush1.bf16.msra.mxu0 0
    %1960 = vmatprep.subr.bf16.mxu0 0
    %1961 = vmatpush1.bf16.msra.mxu0 0
    %1962 = vmatprep.subr.bf16.mxu0 0
    %1963 = vmatpush1.bf16.msra.mxu0 0
    %1964 = vmatprep.subr.bf16.mxu0 0
    %1965 = vmatpush1.bf16.msra.mxu0 0
    %1966 = vmatprep.subr.bf16.mxu0 0
    %1967 = vmatpush1.bf16.msra.mxu0 0
    %1968 = vmatprep.subr.bf16.mxu0 0
    %1969 = vmatpush1.bf16.msra.mxu0 0
    %1970 = vmatprep.subr.bf16.mxu0 0
    %1971 = vmatpush1.bf16.msra.mxu0 0
    %1972 = vmatprep.subr.bf16.mxu0 0
    %1973 = vmatpush1.bf16.msra.mxu0 0
    %1974 = vmatprep.mubr.bf16.mxu0 0
    %1975 = vmatmul.mubr.bf16.gmra.mrb[0].mxu0 %v1941
    %v1976 = vpop.f32.mrb[0].mxu0
    %v1977 = vadd.f32 %v166, %v1976
    %v1978 = vpop.f32.mrb[0].mxu0
    %v1979 = vpop.f32.mrb[0].mxu0
    %v1980 = vpop.f32.mrb[0].mxu0
    %1981 = vdwg.mxu0
    %v1982 = vtanh.pop %v1977
    %v1983 = vmul.f32 %v1982, %v259
    %1984 = vadd.xlane.f32.xlu0 %v1983
    %v1985 = vpop.xlane.xlu0 %1984
    %v1986 = vadd.f32 %v1985, %v263
    %v1987 = vand.u32 2147483647, %v1911
    %vm1988 = vcmp.le.f32.partialorder %v1987, 0.7853982
    %vm1989 = vcmp.lt.s32.totalorder %v1911, 0
    %v1990 = vand.u32 %v1911, 2139095040
    %v1991 = vshrl.u32 %v1990, 23
    %v1992 = vsub.s32 %v1991, 127
    %v1993 = vand.u32 2147483647, %v1911
    %v1994 = vand.u32 %v1993, 8388607
    %v1995 = vor.u32 %v1994, 8388608
    %v1996 = vsub.s32 0, %v1995
    %v1997 = vadd.s32 %v1992, 1
    %vm1998 = vcmp.gt.s32.totalorder %v1997, 0
    %v1999 = vsel %vm1998, %v1997, 0
    %v2000 = vshrl.u32 %v1999, 5
    %v2001 = vand.u32 %v1999, 31
    %v2002 = vsub.s32 32, %v2001
    %v2003 = vshrl.u32 683565275, %v2002
    %v2004 = vshll.u32 683565275, %v2001
    %v2005 = vshrl.u32 2475754826, %v2002
    %v2006 = vor.u32 %v2004, %v2005
    %v2007 = vshll.u32 2475754826, %v2001
    %v2008 = vshrl.u32 2131351028, %v2002
    %v2009 = vor.u32 %v2007, %v2008
    %v2010 = vshll.u32 2131351028, %v2001
    %v2011 = vshrl.u32 2102212464, %v2002
    %v2012 = vor.u32 %v2010, %v2011
    %v2013 = vshll.u32 2102212464, %v2001
    %v2014 = vshrl.u32 920167782, %v2002
    %v2015 = vor.u32 %v2013, %v2014
    %v2016 = vshll.u32 920167782, %v2001
    %v2017 = vshrl.u32 1326507024, %v2002
    %v2018 = vor.u32 %v2016, %v2017
    %vm2019 = vcmp.lt.s32.totalorder %v2000, 1
    %vm2020 = vcmp.lt.s32.totalorder %v2000, 2
    %vm2021 = vcmp.lt.s32.totalorder %v2000, 3
    %vm2022 = vcmp.lt.s32.totalorder %v2000, 4
    %v2023 = vsel %vm2019, %v2003, %v2006
    %v2024 = vsel %vm2022, %v2012, 2102212464
    %v2025 = vsel %vm2021, %v2009, %v2024
    %v2026 = vsel %vm2020, %v2023, %v2025
    %v2027 = vsel %vm2019, %v2006, %v2009
    %v2028 = vsel %vm2022, %v2015, 920167782
    %v2029 = vsel %vm2021, %v2012, %v2028
    %v2030 = vsel %vm2020, %v2027, %v2029
    %v2031 = vsel %vm2019, %v2009, %v2012
    %v2032 = vsel %vm2022, %v2018, 1326507024
    %v2033 = vsel %vm2021, %v2015, %v2032
    %v2034 = vsel %vm2020, %v2031, %v2033
    %v2035 = vshll.u32 %v1995, 8
    %v2036 = vmul.u32.u64.compose %v2035, %v2034
    %v2037 = vextract.low.u32 %v2036
    %v2038 = vextract.high.u32 %v2036
    %v2039 = vmul.u32.u64.compose %v2035, %v2030
    %v2040 = vextract.low.u32 %v2039
    %v2041 = vextract.high.u32 %v2039
    %v2042 = vmul.u32 %v2035, %v2026
    %v2043 = vadd.s32 %v2038, %v2040
    %vm2044 = vc.u32 %v2038, %v2040
    %v2045 = vadd.s32 %v2041, 1
    %v2046 = vsel %vm2044, %v2045, %v2041
    %v2047 = vadd.s32 %v2042, %v2046
    %v2048 = vadd.s32 %v2047, 536870912
    %v2049 = vshrl.u32 %v2048, 30
    %v2050 = vshll.u32 %v2049, 30
    %v2051 = vsub.s32 %v2047, %v2050
    %vm2052 = vcmp.lt.s32.totalorder %v2051, 0
    %v2053 = vsub.s32 0, %v2051
    %v2054 = vsel %vm2052, %v2053, %v2051
    %v2055 = vclz %v2054
    %v2056 = vsub.s32 %v2055, 2
    %vm2057 = vcmp.gt.s32.totalorder 0, %v2056
    %v2058 = vsel %vm2057, 0, %v2056
    %v2059 = vsub.s32 32, %v2058
    %v2060 = vshll.u32 %v2051, %v2058
    %v2061 = vshrl.u32 %v2043, %v2059
    %v2062 = vor.u32 %v2060, %v2061
    %v2063 = vsub.s32 4294967266, %v2058
    %v2064 = vadd.s32 %v2063, 127
    %v2065 = vshll.u32 %v2064, 23
    %v2066 = vor.u32 4788187, %v2065
    %v2067 = vand.u32 2147483647, %v2066
    %v2069 = vcvt.s32.f32 %v2062
    %v2070 = vmul.f32 %v2069, %v2067
    %v2071 = vxor.u32 %v2070, 2147483648
    %v2072 = vsel %vm1989, %v2071, %v2070
    %v2073 = vsub.s32 4, %v2049
    %v2074 = vsel %vm1989, %v2073, %v2049
    %v2075 = vsel %vm1988, %v1911, %v2072
    %v2076 = vsel %vm1988, 0, %v2074
    %v2077 = vcosq.f32.pop %v2075
    %v2078 = vsinq.f32.pop %v2075
    %vm2079 = vweird.f32 %v1911
    %v2080 = vadd.s32 %v2076, 3
    %v2081 = vand.u32 %v2080, 3
    %vm2082 = vcmp.lt.s32.totalorder %v2081, 2
    %vm2083 = vcmp.eq.s32.totalorder %v2081, 0
    %v2084 = vxor.u32 %v2078, 2147483648
    %v2085 = vsel %vm2083, %v2077, %v2084
    %vm2086 = vcmp.eq.s32.totalorder %v2081, 2
    %v2087 = vxor.u32 %v2077, 2147483648
    %v2088 = vsel %vm2086, %v2087, %v2078
    %v2089 = vsel %vm2082, %v2085, %v2088
    %v2090 = vsel %vm2079, nan, %v2089
    %2092 = vrot.lane.b32.xlu0 %v2090, 126
    %v2093 = vpop.permute.xlu0 %2092
    %v2095 = vmul.f32 %v265, %v2093
    %v2096 = vadd.f32 %v2095, %v1986
    %v2097 = vstv %s1920
    %v2098 = vmul.f32 %v2097, %v1913
    %2100 = vrot.lane.b32.xlu0 %v2098, 2
    %v2101 = vpop.permute.xlu0 %2100
    %v2103 = vadd.f32 %v1911, %v2101
    %v2104 = vmul.f32 %v2097, %v2096
    %v2105 = vadd.f32 %v1913, %v2104
    %2107 = vrot.lane.b32.xlu0 %v2103, 6
    %v2108 = vpop.permute.xlu0 %2107
    %vm2110 = vcmask 89168
    %2111 = vst.msk [vmem:[#allocation5] sm:$0xff] %vm2110, %v2108
    %s2112 = sld [smem:[#allocation2 + $0xa]]
    %v2113 = vld [vmem:[%s2 + $0x12] sm:$0x1]
    %2114 = vset.pattern.permute.xlu0 4
    %2115 = vperm.xlu0 %2114, %v2103
    %v2116 = vpop.permute.xlu0 %2115
    %v2118 = vmul.f32 %v2116, %v147
    %v2119 = vadd.f32 %v130, %v2118
    %2121 = vset.pattern.permute.xlu0 2
    %2122 = vperm.xlu0 %2121, %v2105
    %v2123 = vpop.permute.xlu0 %2122
    %v2125 = vmul.f32 %v2123, %v153
    %v2126 = vadd.f32 %v2119, %v2125
    %v2127 = vlaneseq
    %v2128 = vshrl.u32 %v2127, 7
    %v2129 = vsub.s32 0, %v2128
    %v2130 = vrot.slane %v2113, %v2129
    %v2131 = vadd.f32 %v2126, %v2130
    %v2132 = vtanh.pop %v2131
    %v2133 = vpack.c.bf16 %v2132, %v2132
    %2134 = vmatprep.subr.bf16.mxu0 0
    %2135 = vmatpush1.bf16.msra.mxu0 %v199
    %2136 = vmatprep.subr.bf16.mxu0 0
    %2137 = vmatpush1.bf16.msra.mxu0 %v200
    %2138 = vmatprep.subr.bf16.mxu0 0
    %2139 = vmatpush1.bf16.msra.mxu0 %v201
    %2140 = vmatprep.subr.bf16.mxu0 0
    %2141 = vmatpush1.bf16.msra.mxu0 %v202
    %2142 = vmatprep.subr.bf16.mxu0 0
    %2143 = vmatpush1.bf16.msra.mxu0 %v203
    %2144 = vmatprep.subr.bf16.mxu0 0
    %2145 = vmatpush1.bf16.msra.mxu0 %v204
    %2146 = vmatprep.subr.bf16.mxu0 0
    %2147 = vmatpush1.bf16.msra.mxu0 %v205
    %2148 = vmatprep.subr.bf16.mxu0 0
    %2149 = vmatpush1.bf16.msra.mxu0 %v206
    %2150 = vmatprep.subr.bf16.mxu0 0
    %2151 = vmatpush1.bf16.msra.mxu0 0
    %2152 = vmatprep.subr.bf16.mxu0 0
    %2153 = vmatpush1.bf16.msra.mxu0 0
    %2154 = vmatprep.subr.bf16.mxu0 0
    %2155 = vmatpush1.bf16.msra.mxu0 0
    %2156 = vmatprep.subr.bf16.mxu0 0
    %2157 = vmatpush1.bf16.msra.mxu0 0
    %2158 = vmatprep.subr.bf16.mxu0 0
    %2159 = vmatpush1.bf16.msra.mxu0 0
    %2160 = vmatprep.subr.bf16.mxu0 0
    %2161 = vmatpush1.bf16.msra.mxu0 0
    %2162 = vmatprep.subr.bf16.mxu0 0
    %2163 = vmatpush1.bf16.msra.mxu0 0
    %2164 = vmatprep.subr.bf16.mxu0 0
    %2165 = vmatpush1.bf16.msra.mxu0 0
    %2166 = vmatprep.mubr.bf16.mxu0 0
    %2167 = vmatmul.mubr.bf16.gmra.mrb[0].mxu0 %v2133
    %v2168 = vpop.f32.mrb[0].mxu0
    %v2169 = vadd.f32 %v166, %v2168
    %v2170 = vpop.f32.mrb[0].mxu0
    %v2171 = vpop.f32.mrb[0].mxu0
    %v2172 = vpop.f32.mrb[0].mxu0
    %2173 = vdwg.mxu0
    %v2174 = vtanh.pop %v2169
    %v2175 = vmul.f32 %v2174, %v259
    %2176 = vadd.xlane.f32.xlu0 %v2175
    %v2177 = vpop.xlane.xlu0 %2176
    %v2178 = vadd.f32 %v2177, %v263
    %v2179 = vand.u32 2147483647, %v2103
    %vm2180 = vcmp.le.f32.partialorder %v2179, 0.7853982
    %vm2181 = vcmp.lt.s32.totalorder %v2103, 0
    %v2182 = vand.u32 %v2103, 2139095040
    %v2183 = vshrl.u32 %v2182, 23
    %v2184 = vsub.s32 %v2183, 127
    %v2185 = vand.u32 2147483647, %v2103
    %v2186 = vand.u32 %v2185, 8388607
    %v2187 = vor.u32 %v2186, 8388608
    %v2188 = vsub.s32 0, %v2187
    %v2189 = vadd.s32 %v2184, 1
    %vm2190 = vcmp.gt.s32.totalorder %v2189, 0
    %v2191 = vsel %vm2190, %v2189, 0
    %v2192 = vshrl.u32 %v2191, 5
    %v2193 = vand.u32 %v2191, 31
    %v2194 = vsub.s32 32, %v2193
    %v2195 = vshrl.u32 683565275, %v2194
    %v2196 = vshll.u32 683565275, %v2193
    %v2197 = vshrl.u32 2475754826, %v2194
    %v2198 = vor.u32 %v2196, %v2197
    %v2199 = vshll.u32 2475754826, %v2193
    %v2200 = vshrl.u32 2131351028, %v2194
    %v2201 = vor.u32 %v2199, %v2200
    %v2202 = vshll.u32 2131351028, %v2193
    %v2203 = vshrl.u32 2102212464, %v2194
    %v2204 = vor.u32 %v2202, %v2203
    %v2205 = vshll.u32 2102212464, %v2193
    %v2206 = vshrl.u32 920167782, %v2194
    %v2207 = vor.u32 %v2205, %v2206
    %v2208 = vshll.u32 920167782, %v2193
    %v2209 = vshrl.u32 1326507024, %v2194
    %v2210 = vor.u32 %v2208, %v2209
    %vm2211 = vcmp.lt.s32.totalorder %v2192, 1
    %vm2212 = vcmp.lt.s32.totalorder %v2192, 2
    %vm2213 = vcmp.lt.s32.totalorder %v2192, 3
    %vm2214 = vcmp.lt.s32.totalorder %v2192, 4
    %v2215 = vsel %vm2211, %v2195, %v2198
    %v2216 = vsel %vm2214, %v2204, 2102212464
    %v2217 = vsel %vm2213, %v2201, %v2216
    %v2218 = vsel %vm2212, %v2215, %v2217
    %v2219 = vsel %vm2211, %v2198, %v2201
    %v2220 = vsel %vm2214, %v2207, 920167782
    %v2221 = vsel %vm2213, %v2204, %v2220
    %v2222 = vsel %vm2212, %v2219, %v2221
    %v2223 = vsel %vm2211, %v2201, %v2204
    %v2224 = vsel %vm2214, %v2210, 1326507024
    %v2225 = vsel %vm2213, %v2207, %v2224
    %v2226 = vsel %vm2212, %v2223, %v2225
    %v2227 = vshll.u32 %v2187, 8
    %v2228 = vmul.u32.u64.compose %v2227, %v2226
    %v2229 = vextract.low.u32 %v2228
    %v2230 = vextract.high.u32 %v2228
    %v2231 = vmul.u32.u64.compose %v2227, %v2222
    %v2232 = vextract.low.u32 %v2231
    %v2233 = vextract.high.u32 %v2231
    %v2234 = vmul.u32 %v2227, %v2218
    %v2235 = vadd.s32 %v2230, %v2232
    %vm2236 = vc.u32 %v2230, %v2232
    %v2237 = vadd.s32 %v2233, 1
    %v2238 = vsel %vm2236, %v2237, %v2233
    %v2239 = vadd.s32 %v2234, %v2238
    %v2240 = vadd.s32 %v2239, 536870912
    %v2241 = vshrl.u32 %v2240, 30
    %v2242 = vshll.u32 %v2241, 30
    %v2243 = vsub.s32 %v2239, %v2242
    %vm2244 = vcmp.lt.s32.totalorder %v2243, 0
    %v2245 = vsub.s32 0, %v2243
    %v2246 = vsel %vm2244, %v2245, %v2243
    %v2247 = vclz %v2246
    %v2248 = vsub.s32 %v2247, 2
    %vm2249 = vcmp.gt.s32.totalorder 0, %v2248
    %v2250 = vsel %vm2249, 0, %v2248
    %v2251 = vsub.s32 32, %v2250
    %v2252 = vshll.u32 %v2243, %v2250
    %v2253 = vshrl.u32 %v2235, %v2251
    %v2254 = vor.u32 %v2252, %v2253
    %v2255 = vsub.s32 4294967266, %v2250
    %v2256 = vadd.s32 %v2255, 127
    %v2257 = vshll.u32 %v2256, 23
    %v2258 = vor.u32 4788187, %v2257
    %v2259 = vand.u32 2147483647, %v2258
    %v2261 = vcvt.s32.f32 %v2254
    %v2262 = vmul.f32 %v2261, %v2259
    %v2263 = vxor.u32 %v2262, 2147483648
    %v2264 = vsel %vm2181, %v2263, %v2262
    %v2265 = vsub.s32 4, %v2241
    %v2266 = vsel %vm2181, %v2265, %v2241
    %v2267 = vsel %vm2180, %v2103, %v2264
    %v2268 = vsel %vm2180, 0, %v2266
    %v2269 = vcosq.f32.pop %v2267
    %v2270 = vsinq.f32.pop %v2267
    %vm2271 = vweird.f32 %v2103
    %v2272 = vadd.s32 %v2268, 3
    %v2273 = vand.u32 %v2272, 3
    %vm2274 = vcmp.lt.s32.totalorder %v2273, 2
    %vm2275 = vcmp.eq.s32.totalorder %v2273, 0
    %v2276 = vxor.u32 %v2270, 2147483648
    %v2277 = vsel %vm2275, %v2269, %v2276
    %vm2278 = vcmp.eq.s32.totalorder %v2273, 2
    %v2279 = vxor.u32 %v2269, 2147483648
    %v2280 = vsel %vm2278, %v2279, %v2270
    %v2281 = vsel %vm2274, %v2277, %v2280
    %v2282 = vsel %vm2271, nan, %v2281
    %2284 = vrot.lane.b32.xlu0 %v2282, 126
    %v2285 = vpop.permute.xlu0 %2284
    %v2287 = vmul.f32 %v265, %v2285
    %v2288 = vadd.f32 %v2287, %v2178
    %v2289 = vstv %s2112
    %v2290 = vmul.f32 %v2289, %v2105
    %2292 = vrot.lane.b32.xlu0 %v2290, 2
    %v2293 = vpop.permute.xlu0 %2292
    %v2295 = vadd.f32 %v2103, %v2293
    %v2296 = vmul.f32 %v2289, %v2288
    %v2297 = vadd.f32 %v2105, %v2296
    %2299 = vrot.lane.b32.xlu0 %v2295, 7
    %v2300 = vpop.permute.xlu0 %2299
    %vm2302 = vcmask 97368
    %2303 = vst.msk [vmem:[#allocation5] sm:$0xff] %vm2302, %v2300
    %s2304 = sld [smem:[#allocation2 + $0xb]]
    %v2305 = vld [vmem:[%s2 + $0x13] sm:$0x1]
    %2306 = vset.pattern.permute.xlu0 4
    %2307 = vperm.xlu0 %2306, %v2295
    %v2308 = vpop.permute.xlu0 %2307
    %v2310 = vmul.f32 %v2308, %v147
    %v2311 = vadd.f32 %v130, %v2310
    %2313 = vset.pattern.permute.xlu0 2
    %2314 = vperm.xlu0 %2313, %v2297
    %v2315 = vpop.permute.xlu0 %2314
    %v2317 = vmul.f32 %v2315, %v153
    %v2318 = vadd.f32 %v2311, %v2317
    %v2319 = vlaneseq
    %v2320 = vshrl.u32 %v2319, 7
    %v2321 = vsub.s32 0, %v2320
    %v2322 = vrot.slane %v2305, %v2321
    %v2323 = vadd.f32 %v2318, %v2322
    %v2324 = vtanh.pop %v2323
    %v2325 = vpack.c.bf16 %v2324, %v2324
    %2326 = vmatprep.subr.bf16.mxu0 0
    %2327 = vmatpush1.bf16.msra.mxu0 %v199
    %2328 = vmatprep.subr.bf16.mxu0 0
    %2329 = vmatpush1.bf16.msra.mxu0 %v200
    %2330 = vmatprep.subr.bf16.mxu0 0
    %2331 = vmatpush1.bf16.msra.mxu0 %v201
    %2332 = vmatprep.subr.bf16.mxu0 0
    %2333 = vmatpush1.bf16.msra.mxu0 %v202
    %2334 = vmatprep.subr.bf16.mxu0 0
    %2335 = vmatpush1.bf16.msra.mxu0 %v203
    %2336 = vmatprep.subr.bf16.mxu0 0
    %2337 = vmatpush1.bf16.msra.mxu0 %v204
    %2338 = vmatprep.subr.bf16.mxu0 0
    %2339 = vmatpush1.bf16.msra.mxu0 %v205
    %2340 = vmatprep.subr.bf16.mxu0 0
    %2341 = vmatpush1.bf16.msra.mxu0 %v206
    %2342 = vmatprep.subr.bf16.mxu0 0
    %2343 = vmatpush1.bf16.msra.mxu0 0
    %2344 = vmatprep.subr.bf16.mxu0 0
    %2345 = vmatpush1.bf16.msra.mxu0 0
    %2346 = vmatprep.subr.bf16.mxu0 0
    %2347 = vmatpush1.bf16.msra.mxu0 0
    %2348 = vmatprep.subr.bf16.mxu0 0
    %2349 = vmatpush1.bf16.msra.mxu0 0
    %2350 = vmatprep.subr.bf16.mxu0 0
    %2351 = vmatpush1.bf16.msra.mxu0 0
    %2352 = vmatprep.subr.bf16.mxu0 0
    %2353 = vmatpush1.bf16.msra.mxu0 0
    %2354 = vmatprep.subr.bf16.mxu0 0
    %2355 = vmatpush1.bf16.msra.mxu0 0
    %2356 = vmatprep.subr.bf16.mxu0 0
    %2357 = vmatpush1.bf16.msra.mxu0 0
    %2358 = vmatprep.mubr.bf16.mxu0 0
    %2359 = vmatmul.mubr.bf16.gmra.mrb[0].mxu0 %v2325
    %v2360 = vpop.f32.mrb[0].mxu0
    %v2361 = vadd.f32 %v166, %v2360
    %v2362 = vpop.f32.mrb[0].mxu0
    %v2363 = vpop.f32.mrb[0].mxu0
    %v2364 = vpop.f32.mrb[0].mxu0
    %2365 = vdwg.mxu0
    %v2366 = vtanh.pop %v2361
    %v2367 = vmul.f32 %v2366, %v259
    %2368 = vadd.xlane.f32.xlu0 %v2367
    %v2369 = vpop.xlane.xlu0 %2368
    %v2370 = vadd.f32 %v2369, %v263
    %v2371 = vand.u32 2147483647, %v2295
    %vm2372 = vcmp.le.f32.partialorder %v2371, 0.7853982
    %vm2373 = vcmp.lt.s32.totalorder %v2295, 0
    %v2374 = vand.u32 %v2295, 2139095040
    %v2375 = vshrl.u32 %v2374, 23
    %v2376 = vsub.s32 %v2375, 127
    %v2377 = vand.u32 2147483647, %v2295
    %v2378 = vand.u32 %v2377, 8388607
    %v2379 = vor.u32 %v2378, 8388608
    %v2380 = vsub.s32 0, %v2379
    %v2381 = vadd.s32 %v2376, 1
    %vm2382 = vcmp.gt.s32.totalorder %v2381, 0
    %v2383 = vsel %vm2382, %v2381, 0
    %v2384 = vshrl.u32 %v2383, 5
    %v2385 = vand.u32 %v2383, 31
    %v2386 = vsub.s32 32, %v2385
    %v2387 = vshrl.u32 683565275, %v2386
    %v2388 = vshll.u32 683565275, %v2385
    %v2389 = vshrl.u32 2475754826, %v2386
    %v2390 = vor.u32 %v2388, %v2389
    %v2391 = vshll.u32 2475754826, %v2385
    %v2392 = vshrl.u32 2131351028, %v2386
    %v2393 = vor.u32 %v2391, %v2392
    %v2394 = vshll.u32 2131351028, %v2385
    %v2395 = vshrl.u32 2102212464, %v2386
    %v2396 = vor.u32 %v2394, %v2395
    %v2397 = vshll.u32 2102212464, %v2385
    %v2398 = vshrl.u32 920167782, %v2386
    %v2399 = vor.u32 %v2397, %v2398
    %v2400 = vshll.u32 920167782, %v2385
    %v2401 = vshrl.u32 1326507024, %v2386
    %v2402 = vor.u32 %v2400, %v2401
    %vm2403 = vcmp.lt.s32.totalorder %v2384, 1
    %vm2404 = vcmp.lt.s32.totalorder %v2384, 2
    %vm2405 = vcmp.lt.s32.totalorder %v2384, 3
    %vm2406 = vcmp.lt.s32.totalorder %v2384, 4
    %v2407 = vsel %vm2403, %v2387, %v2390
    %v2408 = vsel %vm2406, %v2396, 2102212464
    %v2409 = vsel %vm2405, %v2393, %v2408
    %v2410 = vsel %vm2404, %v2407, %v2409
    %v2411 = vsel %vm2403, %v2390, %v2393
    %v2412 = vsel %vm2406, %v2399, 920167782
    %v2413 = vsel %vm2405, %v2396, %v2412
    %v2414 = vsel %vm2404, %v2411, %v2413
    %v2415 = vsel %vm2403, %v2393, %v2396
    %v2416 = vsel %vm2406, %v2402, 1326507024
    %v2417 = vsel %vm2405, %v2399, %v2416
    %v2418 = vsel %vm2404, %v2415, %v2417
    %v2419 = vshll.u32 %v2379, 8
    %v2420 = vmul.u32.u64.compose %v2419, %v2418
    %v2421 = vextract.low.u32 %v2420
    %v2422 = vextract.high.u32 %v2420
    %v2423 = vmul.u32.u64.compose %v2419, %v2414
    %v2424 = vextract.low.u32 %v2423
    %v2425 = vextract.high.u32 %v2423
    %v2426 = vmul.u32 %v2419, %v2410
    %v2427 = vadd.s32 %v2422, %v2424
    %vm2428 = vc.u32 %v2422, %v2424
    %v2429 = vadd.s32 %v2425, 1
    %v2430 = vsel %vm2428, %v2429, %v2425
    %v2431 = vadd.s32 %v2426, %v2430
    %v2432 = vadd.s32 %v2431, 536870912
    %v2433 = vshrl.u32 %v2432, 30
    %v2434 = vshll.u32 %v2433, 30
    %v2435 = vsub.s32 %v2431, %v2434
    %vm2436 = vcmp.lt.s32.totalorder %v2435, 0
    %v2437 = vsub.s32 0, %v2435
    %v2438 = vsel %vm2436, %v2437, %v2435
    %v2439 = vclz %v2438
    %v2440 = vsub.s32 %v2439, 2
    %vm2441 = vcmp.gt.s32.totalorder 0, %v2440
    %v2442 = vsel %vm2441, 0, %v2440
    %v2443 = vsub.s32 32, %v2442
    %v2444 = vshll.u32 %v2435, %v2442
    %v2445 = vshrl.u32 %v2427, %v2443
    %v2446 = vor.u32 %v2444, %v2445
    %v2447 = vsub.s32 4294967266, %v2442
    %v2448 = vadd.s32 %v2447, 127
    %v2449 = vshll.u32 %v2448, 23
    %v2450 = vor.u32 4788187, %v2449
    %v2451 = vand.u32 2147483647, %v2450
    %v2453 = vcvt.s32.f32 %v2446
    %v2454 = vmul.f32 %v2453, %v2451
    %v2455 = vxor.u32 %v2454, 2147483648
    %v2456 = vsel %vm2373, %v2455, %v2454
    %v2457 = vsub.s32 4, %v2433
    %v2458 = vsel %vm2373, %v2457, %v2433
    %v2459 = vsel %vm2372, %v2295, %v2456
    %v2460 = vsel %vm2372, 0, %v2458
    %v2461 = vcosq.f32.pop %v2459
    %v2462 = vsinq.f32.pop %v2459
    %vm2463 = vweird.f32 %v2295
    %v2464 = vadd.s32 %v2460, 3
    %v2465 = vand.u32 %v2464, 3
    %vm2466 = vcmp.lt.s32.totalorder %v2465, 2
    %vm2467 = vcmp.eq.s32.totalorder %v2465, 0
    %v2468 = vxor.u32 %v2462, 2147483648
    %v2469 = vsel %vm2467, %v2461, %v2468
    %vm2470 = vcmp.eq.s32.totalorder %v2465, 2
    %v2471 = vxor.u32 %v2461, 2147483648
    %v2472 = vsel %vm2470, %v2471, %v2462
    %v2473 = vsel %vm2466, %v2469, %v2472
    %v2474 = vsel %vm2463, nan, %v2473
    %2476 = vrot.lane.b32.xlu0 %v2474, 126
    %v2477 = vpop.permute.xlu0 %2476
    %v2479 = vmul.f32 %v265, %v2477
    %v2480 = vadd.f32 %v2479, %v2370
    %v2481 = vstv %s2304
    %v2482 = vmul.f32 %v2481, %v2297
    %2484 = vrot.lane.b32.xlu0 %v2482, 2
    %v2485 = vpop.permute.xlu0 %2484
    %v2487 = vadd.f32 %v2295, %v2485
    %v2488 = vmul.f32 %v2481, %v2480
    %v2489 = vadd.f32 %v2297, %v2488
    %2491 = vrot.lane.b32.xlu0 %v2487, 8
    %v2492 = vpop.permute.xlu0 %2491
    %vm2494 = vcmask 105568
    %2495 = vst.msk [vmem:[#allocation5] sm:$0xff] %vm2494, %v2492
    %s2496 = sld [smem:[#allocation2 + $0xc]]
    %v2497 = vld [vmem:[%s2 + $0x14] sm:$0x1]
    %2498 = vset.pattern.permute.xlu0 4
    %2499 = vperm.xlu0 %2498, %v2487
    %v2500 = vpop.permute.xlu0 %2499
    %v2502 = vmul.f32 %v2500, %v147
    %v2503 = vadd.f32 %v130, %v2502
    %2505 = vset.pattern.permute.xlu0 2
    %2506 = vperm.xlu0 %2505, %v2489
    %v2507 = vpop.permute.xlu0 %2506
    %v2509 = vmul.f32 %v2507, %v153
    %v2510 = vadd.f32 %v2503, %v2509
    %v2511 = vlaneseq
    %v2512 = vshrl.u32 %v2511, 7
    %v2513 = vsub.s32 0, %v2512
    %v2514 = vrot.slane %v2497, %v2513
    %v2515 = vadd.f32 %v2510, %v2514
    %v2516 = vtanh.pop %v2515
    %v2517 = vpack.c.bf16 %v2516, %v2516
    %2518 = vmatprep.subr.bf16.mxu0 0
    %2519 = vmatpush1.bf16.msra.mxu0 %v199
    %2520 = vmatprep.subr.bf16.mxu0 0
    %2521 = vmatpush1.bf16.msra.mxu0 %v200
    %2522 = vmatprep.subr.bf16.mxu0 0
    %2523 = vmatpush1.bf16.msra.mxu0 %v201
    %2524 = vmatprep.subr.bf16.mxu0 0
    %2525 = vmatpush1.bf16.msra.mxu0 %v202
    %2526 = vmatprep.subr.bf16.mxu0 0
    %2527 = vmatpush1.bf16.msra.mxu0 %v203
    %2528 = vmatprep.subr.bf16.mxu0 0
    %2529 = vmatpush1.bf16.msra.mxu0 %v204
    %2530 = vmatprep.subr.bf16.mxu0 0
    %2531 = vmatpush1.bf16.msra.mxu0 %v205
    %2532 = vmatprep.subr.bf16.mxu0 0
    %2533 = vmatpush1.bf16.msra.mxu0 %v206
    %2534 = vmatprep.subr.bf16.mxu0 0
    %2535 = vmatpush1.bf16.msra.mxu0 0
    %2536 = vmatprep.subr.bf16.mxu0 0
    %2537 = vmatpush1.bf16.msra.mxu0 0
    %2538 = vmatprep.subr.bf16.mxu0 0
    %2539 = vmatpush1.bf16.msra.mxu0 0
    %2540 = vmatprep.subr.bf16.mxu0 0
    %2541 = vmatpush1.bf16.msra.mxu0 0
    %2542 = vmatprep.subr.bf16.mxu0 0
    %2543 = vmatpush1.bf16.msra.mxu0 0
    %2544 = vmatprep.subr.bf16.mxu0 0
    %2545 = vmatpush1.bf16.msra.mxu0 0
    %2546 = vmatprep.subr.bf16.mxu0 0
    %2547 = vmatpush1.bf16.msra.mxu0 0
    %2548 = vmatprep.subr.bf16.mxu0 0
    %2549 = vmatpush1.bf16.msra.mxu0 0
    %2550 = vmatprep.mubr.bf16.mxu0 0
    %2551 = vmatmul.mubr.bf16.gmra.mrb[0].mxu0 %v2517
    %v2552 = vpop.f32.mrb[0].mxu0
    %v2553 = vadd.f32 %v166, %v2552
    %v2554 = vpop.f32.mrb[0].mxu0
    %v2555 = vpop.f32.mrb[0].mxu0
    %v2556 = vpop.f32.mrb[0].mxu0
    %2557 = vdwg.mxu0
    %v2558 = vtanh.pop %v2553
    %v2559 = vmul.f32 %v2558, %v259
    %2560 = vadd.xlane.f32.xlu0 %v2559
    %v2561 = vpop.xlane.xlu0 %2560
    %v2562 = vadd.f32 %v2561, %v263
    %v2563 = vand.u32 2147483647, %v2487
    %vm2564 = vcmp.le.f32.partialorder %v2563, 0.7853982
    %vm2565 = vcmp.lt.s32.totalorder %v2487, 0
    %v2566 = vand.u32 %v2487, 2139095040
    %v2567 = vshrl.u32 %v2566, 23
    %v2568 = vsub.s32 %v2567, 127
    %v2569 = vand.u32 2147483647, %v2487
    %v2570 = vand.u32 %v2569, 8388607
    %v2571 = vor.u32 %v2570, 8388608
    %v2572 = vsub.s32 0, %v2571
    %v2573 = vadd.s32 %v2568, 1
    %vm2574 = vcmp.gt.s32.totalorder %v2573, 0
    %v2575 = vsel %vm2574, %v2573, 0
    %v2576 = vshrl.u32 %v2575, 5
    %v2577 = vand.u32 %v2575, 31
    %v2578 = vsub.s32 32, %v2577
    %v2579 = vshrl.u32 683565275, %v2578
    %v2580 = vshll.u32 683565275, %v2577
    %v2581 = vshrl.u32 2475754826, %v2578
    %v2582 = vor.u32 %v2580, %v2581
    %v2583 = vshll.u32 2475754826, %v2577
    %v2584 = vshrl.u32 2131351028, %v2578
    %v2585 = vor.u32 %v2583, %v2584
    %v2586 = vshll.u32 2131351028, %v2577
    %v2587 = vshrl.u32 2102212464, %v2578
    %v2588 = vor.u32 %v2586, %v2587
    %v2589 = vshll.u32 2102212464, %v2577
    %v2590 = vshrl.u32 920167782, %v2578
    %v2591 = vor.u32 %v2589, %v2590
    %v2592 = vshll.u32 920167782, %v2577
    %v2593 = vshrl.u32 1326507024, %v2578
    %v2594 = vor.u32 %v2592, %v2593
    %vm2595 = vcmp.lt.s32.totalorder %v2576, 1
    %vm2596 = vcmp.lt.s32.totalorder %v2576, 2
    %vm2597 = vcmp.lt.s32.totalorder %v2576, 3
    %vm2598 = vcmp.lt.s32.totalorder %v2576, 4
    %v2599 = vsel %vm2595, %v2579, %v2582
    %v2600 = vsel %vm2598, %v2588, 2102212464
    %v2601 = vsel %vm2597, %v2585, %v2600
    %v2602 = vsel %vm2596, %v2599, %v2601
    %v2603 = vsel %vm2595, %v2582, %v2585
    %v2604 = vsel %vm2598, %v2591, 920167782
    %v2605 = vsel %vm2597, %v2588, %v2604
    %v2606 = vsel %vm2596, %v2603, %v2605
    %v2607 = vsel %vm2595, %v2585, %v2588
    %v2608 = vsel %vm2598, %v2594, 1326507024
    %v2609 = vsel %vm2597, %v2591, %v2608
    %v2610 = vsel %vm2596, %v2607, %v2609
    %v2611 = vshll.u32 %v2571, 8
    %v2612 = vmul.u32.u64.compose %v2611, %v2610
    %v2613 = vextract.low.u32 %v2612
    %v2614 = vextract.high.u32 %v2612
    %v2615 = vmul.u32.u64.compose %v2611, %v2606
    %v2616 = vextract.low.u32 %v2615
    %v2617 = vextract.high.u32 %v2615
    %v2618 = vmul.u32 %v2611, %v2602
    %v2619 = vadd.s32 %v2614, %v2616
    %vm2620 = vc.u32 %v2614, %v2616
    %v2621 = vadd.s32 %v2617, 1
    %v2622 = vsel %vm2620, %v2621, %v2617
    %v2623 = vadd.s32 %v2618, %v2622
    %v2624 = vadd.s32 %v2623, 536870912
    %v2625 = vshrl.u32 %v2624, 30
    %v2626 = vshll.u32 %v2625, 30
    %v2627 = vsub.s32 %v2623, %v2626
    %vm2628 = vcmp.lt.s32.totalorder %v2627, 0
    %v2629 = vsub.s32 0, %v2627
    %v2630 = vsel %vm2628, %v2629, %v2627
    %v2631 = vclz %v2630
    %v2632 = vsub.s32 %v2631, 2
    %vm2633 = vcmp.gt.s32.totalorder 0, %v2632
    %v2634 = vsel %vm2633, 0, %v2632
    %v2635 = vsub.s32 32, %v2634
    %v2636 = vshll.u32 %v2627, %v2634
    %v2637 = vshrl.u32 %v2619, %v2635
    %v2638 = vor.u32 %v2636, %v2637
    %v2639 = vsub.s32 4294967266, %v2634
    %v2640 = vadd.s32 %v2639, 127
    %v2641 = vshll.u32 %v2640, 23
    %v2642 = vor.u32 4788187, %v2641
    %v2643 = vand.u32 2147483647, %v2642
    %v2645 = vcvt.s32.f32 %v2638
    %v2646 = vmul.f32 %v2645, %v2643
    %v2647 = vxor.u32 %v2646, 2147483648
    %v2648 = vsel %vm2565, %v2647, %v2646
    %v2649 = vsub.s32 4, %v2625
    %v2650 = vsel %vm2565, %v2649, %v2625
    %v2651 = vsel %vm2564, %v2487, %v2648
    %v2652 = vsel %vm2564, 0, %v2650
    %v2653 = vcosq.f32.pop %v2651
    %v2654 = vsinq.f32.pop %v2651
    %vm2655 = vweird.f32 %v2487
    %v2656 = vadd.s32 %v2652, 3
    %v2657 = vand.u32 %v2656, 3
    %vm2658 = vcmp.lt.s32.totalorder %v2657, 2
    %vm2659 = vcmp.eq.s32.totalorder %v2657, 0
    %v2660 = vxor.u32 %v2654, 2147483648
    %v2661 = vsel %vm2659, %v2653, %v2660
    %vm2662 = vcmp.eq.s32.totalorder %v2657, 2
    %v2663 = vxor.u32 %v2653, 2147483648
    %v2664 = vsel %vm2662, %v2663, %v2654
    %v2665 = vsel %vm2658, %v2661, %v2664
    %v2666 = vsel %vm2655, nan, %v2665
    %2668 = vrot.lane.b32.xlu0 %v2666, 126
    %v2669 = vpop.permute.xlu0 %2668
    %v2671 = vmul.f32 %v265, %v2669
    %v2672 = vadd.f32 %v2671, %v2562
    %v2673 = vstv %s2496
    %v2674 = vmul.f32 %v2673, %v2489
    %2676 = vrot.lane.b32.xlu0 %v2674, 2
    %v2677 = vpop.permute.xlu0 %2676
    %v2679 = vadd.f32 %v2487, %v2677
    %v2680 = vmul.f32 %v2673, %v2672
    %v2681 = vadd.f32 %v2489, %v2680
    %2683 = vrot.lane.b32.xlu0 %v2679, 9
    %v2684 = vpop.permute.xlu0 %2683
    %vm2686 = vcmask 113768
    %2687 = vst.msk [vmem:[#allocation5] sm:$0xff] %vm2686, %v2684
    %s2688 = sld [smem:[#allocation2 + $0xd]]
    %v2689 = vld [vmem:[%s2 + $0x15] sm:$0x1]
    %2690 = vset.pattern.permute.xlu0 4
    %2691 = vperm.xlu0 %2690, %v2679
    %v2692 = vpop.permute.xlu0 %2691
    %v2694 = vmul.f32 %v2692, %v147
    %v2695 = vadd.f32 %v130, %v2694
    %2697 = vset.pattern.permute.xlu0 2
    %2698 = vperm.xlu0 %2697, %v2681
    %v2699 = vpop.permute.xlu0 %2698
    %v2701 = vmul.f32 %v2699, %v153
    %v2702 = vadd.f32 %v2695, %v2701
    %v2703 = vlaneseq
    %v2704 = vshrl.u32 %v2703, 7
    %v2705 = vsub.s32 0, %v2704
    %v2706 = vrot.slane %v2689, %v2705
    %v2707 = vadd.f32 %v2702, %v2706
    %v2708 = vtanh.pop %v2707
    %v2709 = vpack.c.bf16 %v2708, %v2708
    %2710 = vmatprep.subr.bf16.mxu0 0
    %2711 = vmatpush1.bf16.msra.mxu0 %v199
    %2712 = vmatprep.subr.bf16.mxu0 0
    %2713 = vmatpush1.bf16.msra.mxu0 %v200
    %2714 = vmatprep.subr.bf16.mxu0 0
    %2715 = vmatpush1.bf16.msra.mxu0 %v201
    %2716 = vmatprep.subr.bf16.mxu0 0
    %2717 = vmatpush1.bf16.msra.mxu0 %v202
    %2718 = vmatprep.subr.bf16.mxu0 0
    %2719 = vmatpush1.bf16.msra.mxu0 %v203
    %2720 = vmatprep.subr.bf16.mxu0 0
    %2721 = vmatpush1.bf16.msra.mxu0 %v204
    %2722 = vmatprep.subr.bf16.mxu0 0
    %2723 = vmatpush1.bf16.msra.mxu0 %v205
    %2724 = vmatprep.subr.bf16.mxu0 0
    %2725 = vmatpush1.bf16.msra.mxu0 %v206
    %2726 = vmatprep.subr.bf16.mxu0 0
    %2727 = vmatpush1.bf16.msra.mxu0 0
    %2728 = vmatprep.subr.bf16.mxu0 0
    %2729 = vmatpush1.bf16.msra.mxu0 0
    %2730 = vmatprep.subr.bf16.mxu0 0
    %2731 = vmatpush1.bf16.msra.mxu0 0
    %2732 = vmatprep.subr.bf16.mxu0 0
    %2733 = vmatpush1.bf16.msra.mxu0 0
    %2734 = vmatprep.subr.bf16.mxu0 0
    %2735 = vmatpush1.bf16.msra.mxu0 0
    %2736 = vmatprep.subr.bf16.mxu0 0
    %2737 = vmatpush1.bf16.msra.mxu0 0
    %2738 = vmatprep.subr.bf16.mxu0 0
    %2739 = vmatpush1.bf16.msra.mxu0 0
    %2740 = vmatprep.subr.bf16.mxu0 0
    %2741 = vmatpush1.bf16.msra.mxu0 0
    %2742 = vmatprep.mubr.bf16.mxu0 0
    %2743 = vmatmul.mubr.bf16.gmra.mrb[0].mxu0 %v2709
    %v2744 = vpop.f32.mrb[0].mxu0
    %v2745 = vadd.f32 %v166, %v2744
    %v2746 = vpop.f32.mrb[0].mxu0
    %v2747 = vpop.f32.mrb[0].mxu0
    %v2748 = vpop.f32.mrb[0].mxu0
    %2749 = vdwg.mxu0
    %v2750 = vtanh.pop %v2745
    %v2751 = vmul.f32 %v2750, %v259
    %2752 = vadd.xlane.f32.xlu0 %v2751
    %v2753 = vpop.xlane.xlu0 %2752
    %v2754 = vadd.f32 %v2753, %v263
    %v2755 = vand.u32 2147483647, %v2679
    %vm2756 = vcmp.le.f32.partialorder %v2755, 0.7853982
    %vm2757 = vcmp.lt.s32.totalorder %v2679, 0
    %v2758 = vand.u32 %v2679, 2139095040
    %v2759 = vshrl.u32 %v2758, 23
    %v2760 = vsub.s32 %v2759, 127
    %v2761 = vand.u32 2147483647, %v2679
    %v2762 = vand.u32 %v2761, 8388607
    %v2763 = vor.u32 %v2762, 8388608
    %v2764 = vsub.s32 0, %v2763
    %v2765 = vadd.s32 %v2760, 1
    %vm2766 = vcmp.gt.s32.totalorder %v2765, 0
    %v2767 = vsel %vm2766, %v2765, 0
    %v2768 = vshrl.u32 %v2767, 5
    %v2769 = vand.u32 %v2767, 31
    %v2770 = vsub.s32 32, %v2769
    %v2771 = vshrl.u32 683565275, %v2770
    %v2772 = vshll.u32 683565275, %v2769
    %v2773 = vshrl.u32 2475754826, %v2770
    %v2774 = vor.u32 %v2772, %v2773
    %v2775 = vshll.u32 2475754826, %v2769
    %v2776 = vshrl.u32 2131351028, %v2770
    %v2777 = vor.u32 %v2775, %v2776
    %v2778 = vshll.u32 2131351028, %v2769
    %v2779 = vshrl.u32 2102212464, %v2770
    %v2780 = vor.u32 %v2778, %v2779
    %v2781 = vshll.u32 2102212464, %v2769
    %v2782 = vshrl.u32 920167782, %v2770
    %v2783 = vor.u32 %v2781, %v2782
    %v2784 = vshll.u32 920167782, %v2769
    %v2785 = vshrl.u32 1326507024, %v2770
    %v2786 = vor.u32 %v2784, %v2785
    %vm2787 = vcmp.lt.s32.totalorder %v2768, 1
    %vm2788 = vcmp.lt.s32.totalorder %v2768, 2
    %vm2789 = vcmp.lt.s32.totalorder %v2768, 3
    %vm2790 = vcmp.lt.s32.totalorder %v2768, 4
    %v2791 = vsel %vm2787, %v2771, %v2774
    %v2792 = vsel %vm2790, %v2780, 2102212464
    %v2793 = vsel %vm2789, %v2777, %v2792
    %v2794 = vsel %vm2788, %v2791, %v2793
    %v2795 = vsel %vm2787, %v2774, %v2777
    %v2796 = vsel %vm2790, %v2783, 920167782
    %v2797 = vsel %vm2789, %v2780, %v2796
    %v2798 = vsel %vm2788, %v2795, %v2797
    %v2799 = vsel %vm2787, %v2777, %v2780
    %v2800 = vsel %vm2790, %v2786, 1326507024
    %v2801 = vsel %vm2789, %v2783, %v2800
    %v2802 = vsel %vm2788, %v2799, %v2801
    %v2803 = vshll.u32 %v2763, 8
    %v2804 = vmul.u32.u64.compose %v2803, %v2802
    %v2805 = vextract.low.u32 %v2804
    %v2806 = vextract.high.u32 %v2804
    %v2807 = vmul.u32.u64.compose %v2803, %v2798
    %v2808 = vextract.low.u32 %v2807
    %v2809 = vextract.high.u32 %v2807
    %v2810 = vmul.u32 %v2803, %v2794
    %v2811 = vadd.s32 %v2806, %v2808
    %vm2812 = vc.u32 %v2806, %v2808
    %v2813 = vadd.s32 %v2809, 1
    %v2814 = vsel %vm2812, %v2813, %v2809
    %v2815 = vadd.s32 %v2810, %v2814
    %v2816 = vadd.s32 %v2815, 536870912
    %v2817 = vshrl.u32 %v2816, 30
    %v2818 = vshll.u32 %v2817, 30
    %v2819 = vsub.s32 %v2815, %v2818
    %vm2820 = vcmp.lt.s32.totalorder %v2819, 0
    %v2821 = vsub.s32 0, %v2819
    %v2822 = vsel %vm2820, %v2821, %v2819
    %v2823 = vclz %v2822
    %v2824 = vsub.s32 %v2823, 2
    %vm2825 = vcmp.gt.s32.totalorder 0, %v2824
    %v2826 = vsel %vm2825, 0, %v2824
    %v2827 = vsub.s32 32, %v2826
    %v2828 = vshll.u32 %v2819, %v2826
    %v2829 = vshrl.u32 %v2811, %v2827
    %v2830 = vor.u32 %v2828, %v2829
    %v2831 = vsub.s32 4294967266, %v2826
    %v2832 = vadd.s32 %v2831, 127
    %v2833 = vshll.u32 %v2832, 23
    %v2834 = vor.u32 4788187, %v2833
    %v2835 = vand.u32 2147483647, %v2834
    %v2837 = vcvt.s32.f32 %v2830
    %v2838 = vmul.f32 %v2837, %v2835
    %v2839 = vxor.u32 %v2838, 2147483648
    %v2840 = vsel %vm2757, %v2839, %v2838
    %v2841 = vsub.s32 4, %v2817
    %v2842 = vsel %vm2757, %v2841, %v2817
    %v2843 = vsel %vm2756, %v2679, %v2840
    %v2844 = vsel %vm2756, 0, %v2842
    %v2845 = vcosq.f32.pop %v2843
    %v2846 = vsinq.f32.pop %v2843
    %vm2847 = vweird.f32 %v2679
    %v2848 = vadd.s32 %v2844, 3
    %v2849 = vand.u32 %v2848, 3
    %vm2850 = vcmp.lt.s32.totalorder %v2849, 2
    %vm2851 = vcmp.eq.s32.totalorder %v2849, 0
    %v2852 = vxor.u32 %v2846, 2147483648
    %v2853 = vsel %vm2851, %v2845, %v2852
    %vm2854 = vcmp.eq.s32.totalorder %v2849, 2
    %v2855 = vxor.u32 %v2845, 2147483648
    %v2856 = vsel %vm2854, %v2855, %v2846
    %v2857 = vsel %vm2850, %v2853, %v2856
    %v2858 = vsel %vm2847, nan, %v2857
    %2860 = vrot.lane.b32.xlu0 %v2858, 126
    %v2861 = vpop.permute.xlu0 %2860
    %v2863 = vmul.f32 %v265, %v2861
    %v2864 = vadd.f32 %v2863, %v2754
    %v2865 = vstv %s2688
    %v2866 = vmul.f32 %v2865, %v2681
    %2868 = vrot.lane.b32.xlu0 %v2866, 2
    %v2869 = vpop.permute.xlu0 %2868
    %v2871 = vadd.f32 %v2679, %v2869
    %v2872 = vmul.f32 %v2865, %v2864
    %v2873 = vadd.f32 %v2681, %v2872
    %2875 = vrot.lane.b32.xlu0 %v2871, 10
    %v2876 = vpop.permute.xlu0 %2875
    %vm2878 = vcmask 121968
    %2879 = vst.msk [vmem:[#allocation5] sm:$0xff] %vm2878, %v2876
    %s2880 = sld [smem:[#allocation2 + $0xe]]
    %v2881 = vstv %s2880
    %v2882 = vmul.f32 %v2881, %v2873
    %2884 = vrot.lane.b32.xlu0 %v2882, 2
    %v2885 = vpop.permute.xlu0 %2884
    %v2887 = vadd.f32 %v2871, %v2885
    %2889 = vrot.lane.b32.xlu0 %v2887, 11
    %v2890 = vpop.permute.xlu0 %2889
    %vm2892 = vcmask 130168
    %2893 = vst.msk [vmem:[#allocation5] sm:$0xff] %vm2892, %v2890
    // Predicated region
    $region22: #{neural_pendulum_simulate.1} parent=1 // pred_check
      _
    $region23: #{neural_pendulum_simulate.1} parent=1 // pred_check_branch
      %2895 = sbr.rel (0) target = $region25
    $region24: #{neural_pendulum_simulate.1} parent=1 // pred_region
      %s2897 = ssub.s32 128, 128
      %2898 = vsyncadd [#allocation3], %s2897
      %s2900 = sshll.u32 [#allocation5], 4
      %s2901 = int_to_ptr.vmem [resolvable:$true] %s2900
      %2903 = dma.vmem_to_hbm [thread:$0]  %s2901, 128, %s4, [#allocation3]
    $region25: #{neural_pendulum_simulate.1} parent=1 // pred_fallthru
      _
    // Predicated region
    $region26: #{neural_pendulum_simulate.1} parent=1 // pred_check
      _
    $region27: #{neural_pendulum_simulate.1} parent=1 // pred_check_branch
      %2905 = sbr.rel (0) target = $region29
    $region28: #{neural_pendulum_simulate.1} parent=1 // pred_region
      %2906 = dma.done [#allocation3], 128
    $region29: #{neural_pendulum_simulate.1} parent=1 // pred_fallthru
      _
    %2907 = vsyncpa [#allocation3], 1
    %2908 = vsyncpa [#allocation4], 1

</llo_original>
